<compile_context>
chip_gen: v6e
topology: v6e:2x2x1
jax: 0.10.0
libtpu: 0.0.40
codegen_flags: <defaults>
</compile_context>

<pallas_src>
import functools
from math import ceil

import jax
import jax.numpy as jnp
from jax import lax
from jax.experimental import pallas as pl
from jax.experimental.pallas import tpu as pltpu  # noqa: F401


# ============================================================================
# Fused forward kernel
# ============================================================================
def _fused_tcresnet_kernel(*refs, plan, batch, head_l):
    """refs = (x_ref, W0, b0, [Wa, ba, W1, b1] * n_blocks, Wh, bh, out_ref)."""
    x_ref = refs[0]
    out_ref = refs[-1]
    w = refs[1:-1]

    def pad_time(h, left, right):
        c = h.shape[1]
        parts = []
        if left > 0:
            parts.append(jnp.zeros((left, c), jnp.float32))
        parts.append(h)
        if right > 0:
            parts.append(jnp.zeros((right, c), jnp.float32))
        return jnp.concatenate(parts, axis=0) if len(parts) > 1 else h

    def conv(h, offsets, l_out, w_ref, b_ref):
        # im2col: lane-concat of the K (dilated) time-slices, one MXU matmul.
        cols = [h[off:off + l_out, :] for off in offsets]
        xim = cols[0] if len(cols) == 1 else jnp.concatenate(cols, axis=-1)
        return jnp.dot(xim, w_ref[...], preferred_element_type=jnp.float32) + b_ref[...]

    def take_even_rows(y, l_out):
        # stride-2 subsampling as a tiny matmul with an iota-built 0/1 matrix.
        p = y.shape[0]
        row = lax.broadcasted_iota(jnp.int32, (l_out, p), 0)
        col = lax.broadcasted_iota(jnp.int32, (l_out, p), 1)
        sel = jnp.where(col == 2 * row, 1.0, 0.0)
        return jnp.dot(sel, y, preferred_element_type=jnp.float32)

    feat_rows = []
    for b in range(batch):
        h = x_ref[b].astype(jnp.float32)                       # (L0, C_in)

        # ---- conv0: k=3, 'same', no BN, no ReLU ----
        c0 = plan[0]
        h = conv(pad_time(h, *c0['pad']), c0['offsets'], c0['l_out'], w[0], w[1])

        ri = 2
        for blk in plan[1:]:
            wa, ba, w1, b1 = w[ri], w[ri + 1], w[ri + 2], w[ri + 3]
            ri += 4
            co = blk['c_out']
            if blk['type'] == 2:
                # fused (tcn0: k, stride 2, valid) + (downsample: 1x1, stride 2):
                # stride-1 fused conv over all positions, then keep even rows.
                y = conv(h, blk['offsets_a'], blk['p_full'], wa, ba)
                y = take_even_rows(y, blk['l_out'])
            else:
                # fused (tcn0: 'same', dilated) + (downsample: 1x1, 'same')
                y = conv(pad_time(h, *blk['pad_a']), blk['offsets_a'],
                         blk['l_out'], wa, ba)
            x1 = jnp.maximum(y[:, :co], 0.0)                   # tcn0 + BN0 -> ReLU
            res = jnp.maximum(y[:, co:], 0.0)                  # downsample + BN -> ReLU
            # tcn1 ('same', dilated) + BN1, residual add, ReLU
            y2 = conv(pad_time(x1, *blk['pad_1']), blk['offsets_1'],
                      blk['l_out'], w1, b1)
            h = jnp.maximum(y2 + res, 0.0)

        # flatten (avgpool + NCW flatten + dropout(eval) are folded into Wh)
        feat_rows.append(jnp.concatenate([h[l:l + 1, :] for l in range(head_l)],
                                         axis=-1))

    feats = jnp.concatenate(feat_rows, axis=0)                 # (B, head_l * C)
    logits = jnp.dot(feats, w[-2][...], preferred_element_type=jnp.float32) + w[-1][...]
    m = jnp.max(logits, axis=-1, keepdims=True)
    lse = m + jnp.log(jnp.sum(jnp.exp(logits - m), axis=-1, keepdims=True))
    out_ref[...] = (logits - lse).astype(out_ref.dtype)


def tcresnet_forward(x_ncw, weights, plan, meta):
    """x_ncw: (B, C_in, L) like PyTorch NCW.  Returns (B, output_size) log-probs."""
    x = jnp.transpose(x_ncw, (0, 2, 1)).astype(jnp.float32)    # (B, L, C_in)
    batch = x.shape[0]
    kernel = functools.partial(_fused_tcresnet_kernel, plan=plan, batch=batch,
                               head_l=meta['head_l'])
    return pl.pallas_call(
        kernel,
        out_shape=jax.ShapeDtypeStruct((batch, meta['out_size']), jnp.float32),
    )(x, *weights)


# ============================================================================
# Parameter construction: BN folding + conv fusion done offline (host side)
# ============================================================================
def _conv_params(key, c_in, c_out, k):
    kw, kb = jax.random.split(key)
    w_torch = jax.random.normal(kw, (c_out, c_in, k), jnp.float32) * 0.05
    b = jax.random.normal(kb, (c_out,), jnp.float32) * 0.05
    return jnp.transpose(w_torch, (2, 1, 0)), b                # (K, C_in, C_out)


def _bn_params(key, c, eps=1e-5):
    k1, k2, k3, k4 = jax.random.split(key, 4)
    gamma = 1.0 + 0.1 * jax.random.normal(k1, (c,), jnp.float32)
    beta = 0.1 * jax.random.normal(k2, (c,), jnp.float32)
    mean = 0.1 * jax.random.normal(k3, (c,), jnp.float32)
    var = 1.0 + 0.1 * jax.random.uniform(k4, (c,), jnp.float32)
    scale = gamma / jnp.sqrt(var + eps)
    shift = beta - mean * scale
    return scale, shift


def _fold_bn(w, b, scale, shift):
    # y = BN(conv(x)) = conv(x)*scale + shift  ->  w' = w*scale, b' = b*scale + shift
    return w * scale[None, None, :], b * scale + shift


def _same_pad(k, dil):
    total = dil * (k - 1)
    left = total // 2
    return left, total - left          # PyTorch 'same': extra padding on the right


def build_model(config, key, l_in):
    """Returns (weights list, static plan, meta) with BN folded and convs fused."""
    keys = iter(jax.random.split(key, 64))
    weights, plan = [], []

    c_in0 = config['input_channels']
    nc_all = config['num_channels']
    ks = config['kernel_size']
    use_dil = config['use_dilation']

    # conv0: k=3, 'same', dil=1, bias, no BN / ReLU
    w, b = _conv_params(next(keys), c_in0, nc_all[0], 3)
    weights += [w.reshape(3 * c_in0, nc_all[0]), b.reshape(1, -1)]
    plan.append(dict(pad=_same_pad(3, 1), offsets=(0, 1, 2), l_out=l_in))
    L = l_in

    num_inputs, nc = nc_all[0], nc_all[1:]
    num_levels = len(nc)
    original_rf = [(ks - 1) * 2 ** i + 1 for i in range(num_levels)]

    for i in range(num_levels):
        dil = 2 ** i if use_dil else 1
        k = ceil(original_rf[i] / dil) if use_dil else original_rf[i]
        ci0 = num_inputs if i == 0 else nc[i - 1]
        ci1 = nc[0] if i == 0 else nc[i]
        co = nc[i]

        w0, b0 = _conv_params(next(keys), ci0, co, k)
        sc0, sh0 = _bn_params(next(keys), co)
        w1, b1 = _conv_params(next(keys), ci1, co, k)
        sc1, sh1 = _bn_params(next(keys), co)
        wd, bd = _conv_params(next(keys), ci0, co, 1)
        scd, shd = _bn_params(next(keys), co)

        w0f, b0f = _fold_bn(w0, b0, sc0, sh0)
        w1f, b1f = _fold_bn(w1, b1, sc1, sh1)
        wdf, bdf = _fold_bn(wd, bd, scd, shd)

        if i % 2 == 0:
            # --- TempBlock2: tcn0 (k, stride 2, valid) + downsample (1x1, stride 2) ---
            l_tcn0 = (L - k) // 2 + 1
            l_ds = (L - 1) // 2 + 1
            # NOTE: branches only match in length when PyTorch's residual add is
            # itself well defined (e.g. k=2, even L, as in this config).
            assert l_tcn0 == l_ds, "TempBlock2 branch length mismatch"
            l_out = l_tcn0
            wa = jnp.concatenate(
                [w0f.reshape(k * ci0, co),
                 jnp.concatenate([wdf[0]] + [jnp.zeros((ci0, co), jnp.float32)] * (k - 1),
                                 axis=0)],
                axis=1)
            ba = jnp.concatenate([b0f, bdf]).reshape(1, 2 * co)
            blk = dict(type=2, c_out=co, offsets_a=tuple(range(k)),
                       p_full=2 * (l_out - 1) + 1, l_out=l_out)
        else:
            # --- TempBlock1: tcn0 ('same', dilated) + downsample (1x1, 'same') ---
            l_out = L
            pad_a = _same_pad(k, dil)
            tcn0_offs = tuple(j * dil for j in range(k))
            ds_off = pad_a[0]                      # x[t] == x_padded[t + left]
            offs = sorted(set(tcn0_offs) | {ds_off})
            rows = {o: [jnp.zeros((ci0, co), jnp.float32),
                        jnp.zeros((ci0, co), jnp.float32)] for o in offs}
            for j, o in enumerate(tcn0_offs):
                rows[o][0] = rows[o][0] + w0f[j]
            rows[ds_off][1] = rows[ds_off][1] + wdf[0]
            wa = jnp.concatenate([jnp.concatenate(rows[o], axis=1) for o in offs],
                                 axis=0)
            ba = jnp.concatenate([b0f, bdf]).reshape(1, 2 * co)
            blk = dict(type=1, c_out=co, offsets_a=tuple(offs), pad_a=pad_a,
                       l_out=l_out)

        # tcn1: ('same', dilation=dil, kernel=k) — shared by both block types
        blk.update(pad_1=_same_pad(k, dil),
                   offsets_1=tuple(j * dil for j in range(k)))
        plan.append(blk)
        weights += [wa, ba, w1f.reshape(k * ci1, co), b1f.reshape(1, co)]
        L = l_out

    # Head: AvgPool1d(2) + NCW flatten + Linear folded into one (L*C, O) matmul.
    l_f, c_f = L, nc_all[-1]
    l_p = l_f // 2 if config['avg_pool'] else l_f
    f_in = c_f * l_p
    o_sz = config['output_size']
    kw, kb = jax.random.split(next(keys))
    w_out_t = jax.random.normal(kw, (o_sz, f_in), jnp.float32) * 0.05   # torch (O, F)
    b_out = jax.random.normal(kb, (o_sz,), jnp.float32) * 0.05
    out_w = jnp.transpose(w_out_t)                                      # (F, O)

    wh = jnp.zeros((l_f * c_f, o_sz), jnp.float32)
    pool_scale = 0.5 if config['avg_pool'] else 1.0
    for lp in range(l_f):
        l = lp // 2 if config['avg_pool'] else lp
        if l >= l_p:
            continue                                 # frame dropped by floor pooling
        for c in range(c_f):
            wh = wh.at[lp * c_f + c].set(pool_scale * out_w[c * l_p + l])
    weights += [wh, b_out.reshape(1, o_sz)]

    meta = dict(head_l=l_f, out_size=o_sz)
    return weights, plan, meta


# ============================================================================
# Main
# ============================================================================
if __name__ == "__main__":
    config = {
        'input_channels': 4,
        'num_channels': [8, 8, 8, 8, 8],   # conv0 out + 4 TCN levels (TB2, TB1, TB2, TB1)
        'kernel_size': 2,
        'use_bias': True,
        'use_dilation': True,
        'avg_pool': True,
        'dropout': 0.5,
        'output_size': 12,
    }
    B, C_in, L = 2, config['input_channels'], 24   # 24 -> 12 -> 12 -> 6 -> 6 -> pool -> 3

    key = jax.random.PRNGKey(0)
    k_params, k_x = jax.random.split(key)
    weights, plan, meta = build_model(config, k_params, L)
    x = jax.random.normal(k_x, (B, C_in, L), jnp.float32)     # NCW, like PyTorch

    fwd = jax.jit(lambda xx, ww: tcresnet_forward(xx, ww, plan, meta))
    out = jax.block_until_ready(fwd(x, weights))
    assert out.shape == (B, config['output_size'])
    assert bool(jnp.all(jnp.isfinite(out)))
    print("KERNEL_OK")
</pallas_src>

<mosaic_0001>
module attributes {stable_mosaic.version = 11 : i64} {
  func.func @_fused_tcresnet_kernel(%arg0: memref<2x24x4xf32, #tpu.memory_space<vmem>>, %arg1: memref<12x8xf32, #tpu.memory_space<vmem>>, %arg2: memref<1x8xf32, #tpu.memory_space<vmem>>, %arg3: memref<16x16xf32, #tpu.memory_space<vmem>>, %arg4: memref<1x16xf32, #tpu.memory_space<vmem>>, %arg5: memref<16x8xf32, #tpu.memory_space<vmem>>, %arg6: memref<1x8xf32, #tpu.memory_space<vmem>>, %arg7: memref<24x16xf32, #tpu.memory_space<vmem>>, %arg8: memref<1x16xf32, #tpu.memory_space<vmem>>, %arg9: memref<16x8xf32, #tpu.memory_space<vmem>>, %arg10: memref<1x8xf32, #tpu.memory_space<vmem>>, %arg11: memref<16x16xf32, #tpu.memory_space<vmem>>, %arg12: memref<1x16xf32, #tpu.memory_space<vmem>>, %arg13: memref<16x8xf32, #tpu.memory_space<vmem>>, %arg14: memref<1x8xf32, #tpu.memory_space<vmem>>, %arg15: memref<24x16xf32, #tpu.memory_space<vmem>>, %arg16: memref<1x16xf32, #tpu.memory_space<vmem>>, %arg17: memref<16x8xf32, #tpu.memory_space<vmem>>, %arg18: memref<1x8xf32, #tpu.memory_space<vmem>>, %arg19: memref<48x12xf32, #tpu.memory_space<vmem>>, %arg20: memref<1x12xf32, #tpu.memory_space<vmem>>, %arg21: memref<2x12xf32, #tpu.memory_space<vmem>>) attributes {dimension_semantics = [], scalar_prefetch = 0 : i64, scratch_operands = 0 : i64, tpu.core_type = #tpu.core_type<tc>} {
    %c0 = arith.constant 0 : index
    %c0_0 = arith.constant 0 : index
    %c0_1 = arith.constant 0 : index
    %0 = vector.load %arg0[%c0, %c0_0, %c0_1] : memref<2x24x4xf32, #tpu.memory_space<vmem>>, vector<1x24x4xf32>
    %1 = vector.shape_cast %0 : vector<1x24x4xf32> to vector<24x4xf32>
    %cst = arith.constant 0.000000e+00 : f32
    %2 = vector.broadcast %cst : f32 to vector<1x4xf32>
    %cst_2 = arith.constant 0.000000e+00 : f32
    %3 = vector.broadcast %cst_2 : f32 to vector<1x4xf32>
    %4 = tpu.concatenate %2, %1, %3 in 0 : vector<1x4xf32>, vector<24x4xf32>, vector<1x4xf32> -> vector<26x4xf32>
    %5 = vector.extract_strided_slice %4 {offsets = [0, 0], sizes = [24, 4], strides = [1, 1]} : vector<26x4xf32> to vector<24x4xf32>
    %6 = vector.extract_strided_slice %4 {offsets = [1, 0], sizes = [24, 4], strides = [1, 1]} : vector<26x4xf32> to vector<24x4xf32>
    %7 = vector.extract_strided_slice %4 {offsets = [2, 0], sizes = [24, 4], strides = [1, 1]} : vector<26x4xf32> to vector<24x4xf32>
    %8 = tpu.concatenate %5, %6, %7 in 1 : vector<24x4xf32>, vector<24x4xf32>, vector<24x4xf32> -> vector<24x12xf32>
    %c0_3 = arith.constant 0 : index
    %c0_4 = arith.constant 0 : index
    %9 = vector.load %arg1[%c0_3, %c0_4] : memref<12x8xf32, #tpu.memory_space<vmem>>, vector<12x8xf32>
    %cst_5 = arith.constant dense<0.000000e+00> : vector<24x8xf32>
    %10 = tpu.matmul %8, %9, %cst_5 {dimension_numbers = #tpu.dot_dimension_numbers<[1], [0], [0], [1], [0, 0, 1, 1], [], []>} : vector<24x12xf32>, vector<12x8xf32>, vector<24x8xf32> -> vector<24x8xf32>
    %c0_6 = arith.constant 0 : index
    %c0_7 = arith.constant 0 : index
    %11 = vector.load %arg2[%c0_6, %c0_7] : memref<1x8xf32, #tpu.memory_space<vmem>>, vector<1x8xf32>
    %12 = vector.broadcast %11 : vector<1x8xf32> to vector<24x8xf32>
    %13 = arith.addf %10, %12 : vector<24x8xf32>
    %14 = vector.extract_strided_slice %13 {offsets = [0, 0], sizes = [23, 8], strides = [1, 1]} : vector<24x8xf32> to vector<23x8xf32>
    %15 = vector.extract_strided_slice %13 {offsets = [1, 0], sizes = [23, 8], strides = [1, 1]} : vector<24x8xf32> to vector<23x8xf32>
    %16 = tpu.concatenate %14, %15 in 1 : vector<23x8xf32>, vector<23x8xf32> -> vector<23x16xf32>
    %c0_8 = arith.constant 0 : index
    %c0_9 = arith.constant 0 : index
    %17 = vector.load %arg3[%c0_8, %c0_9] : memref<16x16xf32, #tpu.memory_space<vmem>>, vector<16x16xf32>
    %cst_10 = arith.constant dense<0.000000e+00> : vector<23x16xf32>
    %18 = tpu.matmul %16, %17, %cst_10 {dimension_numbers = #tpu.dot_dimension_numbers<[1], [0], [0], [1], [0, 0, 1, 1], [], []>} : vector<23x16xf32>, vector<16x16xf32>, vector<23x16xf32> -> vector<23x16xf32>
    %c0_11 = arith.constant 0 : index
    %c0_12 = arith.constant 0 : index
    %19 = vector.load %arg4[%c0_11, %c0_12] : memref<1x16xf32, #tpu.memory_space<vmem>>, vector<1x16xf32>
    %20 = vector.broadcast %19 : vector<1x16xf32> to vector<23x16xf32>
    %21 = arith.addf %18, %20 : vector<23x16xf32>
    %22 = tpu.iota {dimensions = array<i32: 0>} : vector<12x23xi32>
    %23 = tpu.iota {dimensions = array<i32: 1>} : vector<12x23xi32>
    %c2_i32 = arith.constant 2 : i32
    %24 = vector.broadcast %c2_i32 : i32 to vector<12x23xi32>
    %25 = arith.muli %24, %22 : vector<12x23xi32>
    %26 = arith.cmpi eq, %23, %25 : vector<12x23xi32>
    %cst_13 = arith.constant 1.000000e+00 : f32
    %cst_14 = arith.constant 0.000000e+00 : f32
    %27 = vector.broadcast %cst_13 : f32 to vector<12x23xf32>
    %28 = vector.broadcast %cst_14 : f32 to vector<12x23xf32>
    %29 = arith.select %26, %27, %28 : vector<12x23xi1>, vector<12x23xf32>
    %cst_15 = arith.constant dense<0.000000e+00> : vector<12x16xf32>
    %30 = tpu.matmul %29, %21, %cst_15 {dimension_numbers = #tpu.dot_dimension_numbers<[1], [0], [0], [1], [0, 0, 1, 1], [], []>} : vector<12x23xf32>, vector<23x16xf32>, vector<12x16xf32> -> vector<12x16xf32>
    %31 = vector.extract_strided_slice %30 {offsets = [0, 0], sizes = [12, 8], strides = [1, 1]} : vector<12x16xf32> to vector<12x8xf32>
    %cst_16 = arith.constant 0.000000e+00 : f32
    %32 = vector.broadcast %cst_16 : f32 to vector<12x8xf32>
    %33 = arith.maximumf %31, %32 : vector<12x8xf32>
    %34 = vector.extract_strided_slice %30 {offsets = [0, 8], sizes = [12, 8], strides = [1, 1]} : vector<12x16xf32> to vector<12x8xf32>
    %cst_17 = arith.constant 0.000000e+00 : f32
    %35 = vector.broadcast %cst_17 : f32 to vector<12x8xf32>
    %36 = arith.maximumf %34, %35 : vector<12x8xf32>
    %cst_18 = arith.constant 0.000000e+00 : f32
    %37 = vector.broadcast %cst_18 : f32 to vector<1x8xf32>
    %38 = tpu.concatenate %33, %37 in 0 : vector<12x8xf32>, vector<1x8xf32> -> vector<13x8xf32>
    %39 = vector.extract_strided_slice %38 {offsets = [0, 0], sizes = [12, 8], strides = [1, 1]} : vector<13x8xf32> to vector<12x8xf32>
    %40 = vector.extract_strided_slice %38 {offsets = [1, 0], sizes = [12, 8], strides = [1, 1]} : vector<13x8xf32> to vector<12x8xf32>
    %41 = tpu.concatenate %39, %40 in 1 : vector<12x8xf32>, vector<12x8xf32> -> vector<12x16xf32>
    %c0_19 = arith.constant 0 : index
    %c0_20 = arith.constant 0 : index
    %42 = vector.load %arg5[%c0_19, %c0_20] : memref<16x8xf32, #tpu.memory_space<vmem>>, vector<16x8xf32>
    %cst_21 = arith.constant dense<0.000000e+00> : vector<12x8xf32>
    %43 = tpu.matmul %41, %42, %cst_21 {dimension_numbers = #tpu.dot_dimension_numbers<[1], [0], [0], [1], [0, 0, 1, 1], [], []>} : vector<12x16xf32>, vector<16x8xf32>, vector<12x8xf32> -> vector<12x8xf32>
    %c0_22 = arith.constant 0 : index
    %c0_23 = arith.constant 0 : index
    %44 = vector.load %arg6[%c0_22, %c0_23] : memref<1x8xf32, #tpu.memory_space<vmem>>, vector<1x8xf32>
    %45 = vector.broadcast %44 : vector<1x8xf32> to vector<12x8xf32>
    %46 = arith.addf %43, %45 : vector<12x8xf32>
    %47 = arith.addf %46, %36 : vector<12x8xf32>
    %cst_24 = arith.constant 0.000000e+00 : f32
    %48 = vector.broadcast %cst_24 : f32 to vector<12x8xf32>
    %49 = arith.maximumf %47, %48 : vector<12x8xf32>
    %cst_25 = arith.constant 0.000000e+00 : f32
    %50 = vector.broadcast %cst_25 : f32 to vector<1x8xf32>
    %cst_26 = arith.constant 0.000000e+00 : f32
    %51 = vector.broadcast %cst_26 : f32 to vector<1x8xf32>
    %52 = tpu.concatenate %50, %49, %51 in 0 : vector<1x8xf32>, vector<12x8xf32>, vector<1x8xf32> -> vector<14x8xf32>
    %53 = vector.extract_strided_slice %52 {offsets = [0, 0], sizes = [12, 8], strides = [1, 1]} : vector<14x8xf32> to vector<12x8xf32>
    %54 = vector.extract_strided_slice %52 {offsets = [1, 0], sizes = [12, 8], strides = [1, 1]} : vector<14x8xf32> to vector<12x8xf32>
    %55 = vector.extract_strided_slice %52 {offsets = [2, 0], sizes = [12, 8], strides = [1, 1]} : vector<14x8xf32> to vector<12x8xf32>
    %56 = tpu.concatenate %53, %54, %55 in 1 : vector<12x8xf32>, vector<12x8xf32>, vector<12x8xf32> -> vector<12x24xf32>
    %c0_27 = arith.constant 0 : index
    %c0_28 = arith.constant 0 : index
    %57 = vector.load %arg7[%c0_27, %c0_28] : memref<24x16xf32, #tpu.memory_space<vmem>>, vector<24x16xf32>
    %cst_29 = arith.constant dense<0.000000e+00> : vector<12x16xf32>
    %58 = tpu.matmul %56, %57, %cst_29 {dimension_numbers = #tpu.dot_dimension_numbers<[1], [0], [0], [1], [0, 0, 1, 1], [], []>} : vector<12x24xf32>, vector<24x16xf32>, vector<12x16xf32> -> vector<12x16xf32>
    %c0_30 = arith.constant 0 : index
    %c0_31 = arith.constant 0 : index
    %59 = vector.load %arg8[%c0_30, %c0_31] : memref<1x16xf32, #tpu.memory_space<vmem>>, vector<1x16xf32>
    %60 = vector.broadcast %59 : vector<1x16xf32> to vector<12x16xf32>
    %61 = arith.addf %58, %60 : vector<12x16xf32>
    %62 = vector.extract_strided_slice %61 {offsets = [0, 0], sizes = [12, 8], strides = [1, 1]} : vector<12x16xf32> to vector<12x8xf32>
    %cst_32 = arith.constant 0.000000e+00 : f32
    %63 = vector.broadcast %cst_32 : f32 to vector<12x8xf32>
    %64 = arith.maximumf %62, %63 : vector<12x8xf32>
    %65 = vector.extract_strided_slice %61 {offsets = [0, 8], sizes = [12, 8], strides = [1, 1]} : vector<12x16xf32> to vector<12x8xf32>
    %cst_33 = arith.constant 0.000000e+00 : f32
    %66 = vector.broadcast %cst_33 : f32 to vector<12x8xf32>
    %67 = arith.maximumf %65, %66 : vector<12x8xf32>
    %cst_34 = arith.constant 0.000000e+00 : f32
    %68 = vector.broadcast %cst_34 : f32 to vector<1x8xf32>
    %cst_35 = arith.constant 0.000000e+00 : f32
    %69 = vector.broadcast %cst_35 : f32 to vector<1x8xf32>
    %70 = tpu.concatenate %68, %64, %69 in 0 : vector<1x8xf32>, vector<12x8xf32>, vector<1x8xf32> -> vector<14x8xf32>
    %71 = vector.extract_strided_slice %70 {offsets = [0, 0], sizes = [12, 8], strides = [1, 1]} : vector<14x8xf32> to vector<12x8xf32>
    %72 = vector.extract_strided_slice %70 {offsets = [2, 0], sizes = [12, 8], strides = [1, 1]} : vector<14x8xf32> to vector<12x8xf32>
    %73 = tpu.concatenate %71, %72 in 1 : vector<12x8xf32>, vector<12x8xf32> -> vector<12x16xf32>
    %c0_36 = arith.constant 0 : index
    %c0_37 = arith.constant 0 : index
    %74 = vector.load %arg9[%c0_36, %c0_37] : memref<16x8xf32, #tpu.memory_space<vmem>>, vector<16x8xf32>
    %cst_38 = arith.constant dense<0.000000e+00> : vector<12x8xf32>
    %75 = tpu.matmul %73, %74, %cst_38 {dimension_numbers = #tpu.dot_dimension_numbers<[1], [0], [0], [1], [0, 0, 1, 1], [], []>} : vector<12x16xf32>, vector<16x8xf32>, vector<12x8xf32> -> vector<12x8xf32>
    %c0_39 = arith.constant 0 : index
    %c0_40 = arith.constant 0 : index
    %76 = vector.load %arg10[%c0_39, %c0_40] : memref<1x8xf32, #tpu.memory_space<vmem>>, vector<1x8xf32>
    %77 = vector.broadcast %76 : vector<1x8xf32> to vector<12x8xf32>
    %78 = arith.addf %75, %77 : vector<12x8xf32>
    %79 = arith.addf %78, %67 : vector<12x8xf32>
    %cst_41 = arith.constant 0.000000e+00 : f32
    %80 = vector.broadcast %cst_41 : f32 to vector<12x8xf32>
    %81 = arith.maximumf %79, %80 : vector<12x8xf32>
    %82 = vector.extract_strided_slice %81 {offsets = [0, 0], sizes = [11, 8], strides = [1, 1]} : vector<12x8xf32> to vector<11x8xf32>
    %83 = vector.extract_strided_slice %81 {offsets = [1, 0], sizes = [11, 8], strides = [1, 1]} : vector<12x8xf32> to vector<11x8xf32>
    %84 = tpu.concatenate %82, %83 in 1 : vector<11x8xf32>, vector<11x8xf32> -> vector<11x16xf32>
    %c0_42 = arith.constant 0 : index
    %c0_43 = arith.constant 0 : index
    %85 = vector.load %arg11[%c0_42, %c0_43] : memref<16x16xf32, #tpu.memory_space<vmem>>, vector<16x16xf32>
    %cst_44 = arith.constant dense<0.000000e+00> : vector<11x16xf32>
    %86 = tpu.matmul %84, %85, %cst_44 {dimension_numbers = #tpu.dot_dimension_numbers<[1], [0], [0], [1], [0, 0, 1, 1], [], []>} : vector<11x16xf32>, vector<16x16xf32>, vector<11x16xf32> -> vector<11x16xf32>
    %c0_45 = arith.constant 0 : index
    %c0_46 = arith.constant 0 : index
    %87 = vector.load %arg12[%c0_45, %c0_46] : memref<1x16xf32, #tpu.memory_space<vmem>>, vector<1x16xf32>
    %88 = vector.broadcast %87 : vector<1x16xf32> to vector<11x16xf32>
    %89 = arith.addf %86, %88 : vector<11x16xf32>
    %90 = tpu.iota {dimensions = array<i32: 0>} : vector<6x11xi32>
    %91 = tpu.iota {dimensions = array<i32: 1>} : vector<6x11xi32>
    %c2_i32_47 = arith.constant 2 : i32
    %92 = vector.broadcast %c2_i32_47 : i32 to vector<6x11xi32>
    %93 = arith.muli %92, %90 : vector<6x11xi32>
    %94 = arith.cmpi eq, %91, %93 : vector<6x11xi32>
    %cst_48 = arith.constant 1.000000e+00 : f32
    %cst_49 = arith.constant 0.000000e+00 : f32
    %95 = vector.broadcast %cst_48 : f32 to vector<6x11xf32>
    %96 = vector.broadcast %cst_49 : f32 to vector<6x11xf32>
    %97 = arith.select %94, %95, %96 : vector<6x11xi1>, vector<6x11xf32>
    %cst_50 = arith.constant dense<0.000000e+00> : vector<6x16xf32>
    %98 = tpu.matmul %97, %89, %cst_50 {dimension_numbers = #tpu.dot_dimension_numbers<[1], [0], [0], [1], [0, 0, 1, 1], [], []>} : vector<6x11xf32>, vector<11x16xf32>, vector<6x16xf32> -> vector<6x16xf32>
    %99 = vector.extract_strided_slice %98 {offsets = [0, 0], sizes = [6, 8], strides = [1, 1]} : vector<6x16xf32> to vector<6x8xf32>
    %cst_51 = arith.constant 0.000000e+00 : f32
    %100 = vector.broadcast %cst_51 : f32 to vector<6x8xf32>
    %101 = arith.maximumf %99, %100 : vector<6x8xf32>
    %102 = vector.extract_strided_slice %98 {offsets = [0, 8], sizes = [6, 8], strides = [1, 1]} : vector<6x16xf32> to vector<6x8xf32>
    %cst_52 = arith.constant 0.000000e+00 : f32
    %103 = vector.broadcast %cst_52 : f32 to vector<6x8xf32>
    %104 = arith.maximumf %102, %103 : vector<6x8xf32>
    %cst_53 = arith.constant 0.000000e+00 : f32
    %105 = vector.broadcast %cst_53 : f32 to vector<2x8xf32>
    %cst_54 = arith.constant 0.000000e+00 : f32
    %106 = vector.broadcast %cst_54 : f32 to vector<2x8xf32>
    %107 = tpu.concatenate %105, %101, %106 in 0 : vector<2x8xf32>, vector<6x8xf32>, vector<2x8xf32> -> vector<10x8xf32>
    %108 = vector.extract_strided_slice %107 {offsets = [0, 0], sizes = [6, 8], strides = [1, 1]} : vector<10x8xf32> to vector<6x8xf32>
    %109 = vector.extract_strided_slice %107 {offsets = [4, 0], sizes = [6, 8], strides = [1, 1]} : vector<10x8xf32> to vector<6x8xf32>
    %110 = tpu.concatenate %108, %109 in 1 : vector<6x8xf32>, vector<6x8xf32> -> vector<6x16xf32>
    %c0_55 = arith.constant 0 : index
    %c0_56 = arith.constant 0 : index
    %111 = vector.load %arg13[%c0_55, %c0_56] : memref<16x8xf32, #tpu.memory_space<vmem>>, vector<16x8xf32>
    %cst_57 = arith.constant dense<0.000000e+00> : vector<6x8xf32>
    %112 = tpu.matmul %110, %111, %cst_57 {dimension_numbers = #tpu.dot_dimension_numbers<[1], [0], [0], [1], [0, 0, 1, 1], [], []>} : vector<6x16xf32>, vector<16x8xf32>, vector<6x8xf32> -> vector<6x8xf32>
    %c0_58 = arith.constant 0 : index
    %c0_59 = arith.constant 0 : index
    %113 = vector.load %arg14[%c0_58, %c0_59] : memref<1x8xf32, #tpu.memory_space<vmem>>, vector<1x8xf32>
    %114 = vector.broadcast %113 : vector<1x8xf32> to vector<6x8xf32>
    %115 = arith.addf %112, %114 : vector<6x8xf32>
    %116 = arith.addf %115, %104 : vector<6x8xf32>
    %cst_60 = arith.constant 0.000000e+00 : f32
    %117 = vector.broadcast %cst_60 : f32 to vector<6x8xf32>
    %118 = arith.maximumf %116, %117 : vector<6x8xf32>
    %cst_61 = arith.constant 0.000000e+00 : f32
    %119 = vector.broadcast %cst_61 : f32 to vector<4x8xf32>
    %cst_62 = arith.constant 0.000000e+00 : f32
    %120 = vector.broadcast %cst_62 : f32 to vector<4x8xf32>
    %121 = tpu.concatenate %119, %118, %120 in 0 : vector<4x8xf32>, vector<6x8xf32>, vector<4x8xf32> -> vector<14x8xf32>
    %122 = vector.extract_strided_slice %121 {offsets = [0, 0], sizes = [6, 8], strides = [1, 1]} : vector<14x8xf32> to vector<6x8xf32>
    %123 = vector.extract_strided_slice %121 {offsets = [4, 0], sizes = [6, 8], strides = [1, 1]} : vector<14x8xf32> to vector<6x8xf32>
    %124 = vector.extract_strided_slice %121 {offsets = [8, 0], sizes = [6, 8], strides = [1, 1]} : vector<14x8xf32> to vector<6x8xf32>
    %125 = tpu.concatenate %122, %123, %124 in 1 : vector<6x8xf32>, vector<6x8xf32>, vector<6x8xf32> -> vector<6x24xf32>
    %c0_63 = arith.constant 0 : index
    %c0_64 = arith.constant 0 : index
    %126 = vector.load %arg15[%c0_63, %c0_64] : memref<24x16xf32, #tpu.memory_space<vmem>>, vector<24x16xf32>
    %cst_65 = arith.constant dense<0.000000e+00> : vector<6x16xf32>
    %127 = tpu.matmul %125, %126, %cst_65 {dimension_numbers = #tpu.dot_dimension_numbers<[1], [0], [0], [1], [0, 0, 1, 1], [], []>} : vector<6x24xf32>, vector<24x16xf32>, vector<6x16xf32> -> vector<6x16xf32>
    %c0_66 = arith.constant 0 : index
    %c0_67 = arith.constant 0 : index
    %128 = vector.load %arg16[%c0_66, %c0_67] : memref<1x16xf32, #tpu.memory_space<vmem>>, vector<1x16xf32>
    %129 = vector.broadcast %128 : vector<1x16xf32> to vector<6x16xf32>
    %130 = arith.addf %127, %129 : vector<6x16xf32>
    %131 = vector.extract_strided_slice %130 {offsets = [0, 0], sizes = [6, 8], strides = [1, 1]} : vector<6x16xf32> to vector<6x8xf32>
    %cst_68 = arith.constant 0.000000e+00 : f32
    %132 = vector.broadcast %cst_68 : f32 to vector<6x8xf32>
    %133 = arith.maximumf %131, %132 : vector<6x8xf32>
    %134 = vector.extract_strided_slice %130 {offsets = [0, 8], sizes = [6, 8], strides = [1, 1]} : vector<6x16xf32> to vector<6x8xf32>
    %cst_69 = arith.constant 0.000000e+00 : f32
    %135 = vector.broadcast %cst_69 : f32 to vector<6x8xf32>
    %136 = arith.maximumf %134, %135 : vector<6x8xf32>
    %cst_70 = arith.constant 0.000000e+00 : f32
    %137 = vector.broadcast %cst_70 : f32 to vector<4x8xf32>
    %cst_71 = arith.constant 0.000000e+00 : f32
    %138 = vector.broadcast %cst_71 : f32 to vector<4x8xf32>
    %139 = tpu.concatenate %137, %133, %138 in 0 : vector<4x8xf32>, vector<6x8xf32>, vector<4x8xf32> -> vector<14x8xf32>
    %140 = vector.extract_strided_slice %139 {offsets = [0, 0], sizes = [6, 8], strides = [1, 1]} : vector<14x8xf32> to vector<6x8xf32>
    %141 = vector.extract_strided_slice %139 {offsets = [8, 0], sizes = [6, 8], strides = [1, 1]} : vector<14x8xf32> to vector<6x8xf32>
    %142 = tpu.concatenate %140, %141 in 1 : vector<6x8xf32>, vector<6x8xf32> -> vector<6x16xf32>
    %c0_72 = arith.constant 0 : index
    %c0_73 = arith.constant 0 : index
    %143 = vector.load %arg17[%c0_72, %c0_73] : memref<16x8xf32, #tpu.memory_space<vmem>>, vector<16x8xf32>
    %cst_74 = arith.constant dense<0.000000e+00> : vector<6x8xf32>
    %144 = tpu.matmul %142, %143, %cst_74 {dimension_numbers = #tpu.dot_dimension_numbers<[1], [0], [0], [1], [0, 0, 1, 1], [], []>} : vector<6x16xf32>, vector<16x8xf32>, vector<6x8xf32> -> vector<6x8xf32>
    %c0_75 = arith.constant 0 : index
    %c0_76 = arith.constant 0 : index
    %145 = vector.load %arg18[%c0_75, %c0_76] : memref<1x8xf32, #tpu.memory_space<vmem>>, vector<1x8xf32>
    %146 = vector.broadcast %145 : vector<1x8xf32> to vector<6x8xf32>
    %147 = arith.addf %144, %146 : vector<6x8xf32>
    %148 = arith.addf %147, %136 : vector<6x8xf32>
    %cst_77 = arith.constant 0.000000e+00 : f32
    %149 = vector.broadcast %cst_77 : f32 to vector<6x8xf32>
    %150 = arith.maximumf %148, %149 : vector<6x8xf32>
    %151 = vector.extract_strided_slice %150 {offsets = [0, 0], sizes = [1, 8], strides = [1, 1]} : vector<6x8xf32> to vector<1x8xf32>
    %152 = vector.extract_strided_slice %150 {offsets = [1, 0], sizes = [1, 8], strides = [1, 1]} : vector<6x8xf32> to vector<1x8xf32>
    %153 = vector.extract_strided_slice %150 {offsets = [2, 0], sizes = [1, 8], strides = [1, 1]} : vector<6x8xf32> to vector<1x8xf32>
    %154 = vector.extract_strided_slice %150 {offsets = [3, 0], sizes = [1, 8], strides = [1, 1]} : vector<6x8xf32> to vector<1x8xf32>
    %155 = vector.extract_strided_slice %150 {offsets = [4, 0], sizes = [1, 8], strides = [1, 1]} : vector<6x8xf32> to vector<1x8xf32>
    %156 = vector.extract_strided_slice %150 {offsets = [5, 0], sizes = [1, 8], strides = [1, 1]} : vector<6x8xf32> to vector<1x8xf32>
    %157 = tpu.concatenate %151, %152, %153, %154, %155, %156 in 1 : vector<1x8xf32>, vector<1x8xf32>, vector<1x8xf32>, vector<1x8xf32>, vector<1x8xf32>, vector<1x8xf32> -> vector<1x48xf32>
    %c1 = arith.constant 1 : index
    %c0_78 = arith.constant 0 : index
    %c0_79 = arith.constant 0 : index
    %158 = vector.load %arg0[%c1, %c0_78, %c0_79] : memref<2x24x4xf32, #tpu.memory_space<vmem>>, vector<1x24x4xf32>
    %159 = vector.shape_cast %158 : vector<1x24x4xf32> to vector<24x4xf32>
    %cst_80 = arith.constant 0.000000e+00 : f32
    %160 = vector.broadcast %cst_80 : f32 to vector<1x4xf32>
    %cst_81 = arith.constant 0.000000e+00 : f32
    %161 = vector.broadcast %cst_81 : f32 to vector<1x4xf32>
    %162 = tpu.concatenate %160, %159, %161 in 0 : vector<1x4xf32>, vector<24x4xf32>, vector<1x4xf32> -> vector<26x4xf32>
    %163 = vector.extract_strided_slice %162 {offsets = [0, 0], sizes = [24, 4], strides = [1, 1]} : vector<26x4xf32> to vector<24x4xf32>
    %164 = vector.extract_strided_slice %162 {offsets = [1, 0], sizes = [24, 4], strides = [1, 1]} : vector<26x4xf32> to vector<24x4xf32>
    %165 = vector.extract_strided_slice %162 {offsets = [2, 0], sizes = [24, 4], strides = [1, 1]} : vector<26x4xf32> to vector<24x4xf32>
    %166 = tpu.concatenate %163, %164, %165 in 1 : vector<24x4xf32>, vector<24x4xf32>, vector<24x4xf32> -> vector<24x12xf32>
    %c0_82 = arith.constant 0 : index
    %c0_83 = arith.constant 0 : index
    %167 = vector.load %arg1[%c0_82, %c0_83] : memref<12x8xf32, #tpu.memory_space<vmem>>, vector<12x8xf32>
    %cst_84 = arith.constant dense<0.000000e+00> : vector<24x8xf32>
    %168 = tpu.matmul %166, %167, %cst_84 {dimension_numbers = #tpu.dot_dimension_numbers<[1], [0], [0], [1], [0, 0, 1, 1], [], []>} : vector<24x12xf32>, vector<12x8xf32>, vector<24x8xf32> -> vector<24x8xf32>
    %c0_85 = arith.constant 0 : index
    %c0_86 = arith.constant 0 : index
    %169 = vector.load %arg2[%c0_85, %c0_86] : memref<1x8xf32, #tpu.memory_space<vmem>>, vector<1x8xf32>
    %170 = vector.broadcast %169 : vector<1x8xf32> to vector<24x8xf32>
    %171 = arith.addf %168, %170 : vector<24x8xf32>
    %172 = vector.extract_strided_slice %171 {offsets = [0, 0], sizes = [23, 8], strides = [1, 1]} : vector<24x8xf32> to vector<23x8xf32>
    %173 = vector.extract_strided_slice %171 {offsets = [1, 0], sizes = [23, 8], strides = [1, 1]} : vector<24x8xf32> to vector<23x8xf32>
    %174 = tpu.concatenate %172, %173 in 1 : vector<23x8xf32>, vector<23x8xf32> -> vector<23x16xf32>
    %c0_87 = arith.constant 0 : index
    %c0_88 = arith.constant 0 : index
    %175 = vector.load %arg3[%c0_87, %c0_88] : memref<16x16xf32, #tpu.memory_space<vmem>>, vector<16x16xf32>
    %cst_89 = arith.constant dense<0.000000e+00> : vector<23x16xf32>
    %176 = tpu.matmul %174, %175, %cst_89 {dimension_numbers = #tpu.dot_dimension_numbers<[1], [0], [0], [1], [0, 0, 1, 1], [], []>} : vector<23x16xf32>, vector<16x16xf32>, vector<23x16xf32> -> vector<23x16xf32>
    %c0_90 = arith.constant 0 : index
    %c0_91 = arith.constant 0 : index
    %177 = vector.load %arg4[%c0_90, %c0_91] : memref<1x16xf32, #tpu.memory_space<vmem>>, vector<1x16xf32>
    %178 = vector.broadcast %177 : vector<1x16xf32> to vector<23x16xf32>
    %179 = arith.addf %176, %178 : vector<23x16xf32>
    %180 = tpu.iota {dimensions = array<i32: 0>} : vector<12x23xi32>
    %181 = tpu.iota {dimensions = array<i32: 1>} : vector<12x23xi32>
    %c2_i32_92 = arith.constant 2 : i32
    %182 = vector.broadcast %c2_i32_92 : i32 to vector<12x23xi32>
    %183 = arith.muli %182, %180 : vector<12x23xi32>
    %184 = arith.cmpi eq, %181, %183 : vector<12x23xi32>
    %cst_93 = arith.constant 1.000000e+00 : f32
    %cst_94 = arith.constant 0.000000e+00 : f32
    %185 = vector.broadcast %cst_93 : f32 to vector<12x23xf32>
    %186 = vector.broadcast %cst_94 : f32 to vector<12x23xf32>
    %187 = arith.select %184, %185, %186 : vector<12x23xi1>, vector<12x23xf32>
    %cst_95 = arith.constant dense<0.000000e+00> : vector<12x16xf32>
    %188 = tpu.matmul %187, %179, %cst_95 {dimension_numbers = #tpu.dot_dimension_numbers<[1], [0], [0], [1], [0, 0, 1, 1], [], []>} : vector<12x23xf32>, vector<23x16xf32>, vector<12x16xf32> -> vector<12x16xf32>
    %189 = vector.extract_strided_slice %188 {offsets = [0, 0], sizes = [12, 8], strides = [1, 1]} : vector<12x16xf32> to vector<12x8xf32>
    %cst_96 = arith.constant 0.000000e+00 : f32
    %190 = vector.broadcast %cst_96 : f32 to vector<12x8xf32>
    %191 = arith.maximumf %189, %190 : vector<12x8xf32>
    %192 = vector.extract_strided_slice %188 {offsets = [0, 8], sizes = [12, 8], strides = [1, 1]} : vector<12x16xf32> to vector<12x8xf32>
    %cst_97 = arith.constant 0.000000e+00 : f32
    %193 = vector.broadcast %cst_97 : f32 to vector<12x8xf32>
    %194 = arith.maximumf %192, %193 : vector<12x8xf32>
    %cst_98 = arith.constant 0.000000e+00 : f32
    %195 = vector.broadcast %cst_98 : f32 to vector<1x8xf32>
    %196 = tpu.concatenate %191, %195 in 0 : vector<12x8xf32>, vector<1x8xf32> -> vector<13x8xf32>
    %197 = vector.extract_strided_slice %196 {offsets = [0, 0], sizes = [12, 8], strides = [1, 1]} : vector<13x8xf32> to vector<12x8xf32>
    %198 = vector.extract_strided_slice %196 {offsets = [1, 0], sizes = [12, 8], strides = [1, 1]} : vector<13x8xf32> to vector<12x8xf32>
    %199 = tpu.concatenate %197, %198 in 1 : vector<12x8xf32>, vector<12x8xf32> -> vector<12x16xf32>
    %c0_99 = arith.constant 0 : index
    %c0_100 = arith.constant 0 : index
    %200 = vector.load %arg5[%c0_99, %c0_100] : memref<16x8xf32, #tpu.memory_space<vmem>>, vector<16x8xf32>
    %cst_101 = arith.constant dense<0.000000e+00> : vector<12x8xf32>
    %201 = tpu.matmul %199, %200, %cst_101 {dimension_numbers = #tpu.dot_dimension_numbers<[1], [0], [0], [1], [0, 0, 1, 1], [], []>} : vector<12x16xf32>, vector<16x8xf32>, vector<12x8xf32> -> vector<12x8xf32>
    %c0_102 = arith.constant 0 : index
    %c0_103 = arith.constant 0 : index
    %202 = vector.load %arg6[%c0_102, %c0_103] : memref<1x8xf32, #tpu.memory_space<vmem>>, vector<1x8xf32>
    %203 = vector.broadcast %202 : vector<1x8xf32> to vector<12x8xf32>
    %204 = arith.addf %201, %203 : vector<12x8xf32>
    %205 = arith.addf %204, %194 : vector<12x8xf32>
    %cst_104 = arith.constant 0.000000e+00 : f32
    %206 = vector.broadcast %cst_104 : f32 to vector<12x8xf32>
    %207 = arith.maximumf %205, %206 : vector<12x8xf32>
    %cst_105 = arith.constant 0.000000e+00 : f32
    %208 = vector.broadcast %cst_105 : f32 to vector<1x8xf32>
    %cst_106 = arith.constant 0.000000e+00 : f32
    %209 = vector.broadcast %cst_106 : f32 to vector<1x8xf32>
    %210 = tpu.concatenate %208, %207, %209 in 0 : vector<1x8xf32>, vector<12x8xf32>, vector<1x8xf32> -> vector<14x8xf32>
    %211 = vector.extract_strided_slice %210 {offsets = [0, 0], sizes = [12, 8], strides = [1, 1]} : vector<14x8xf32> to vector<12x8xf32>
    %212 = vector.extract_strided_slice %210 {offsets = [1, 0], sizes = [12, 8], strides = [1, 1]} : vector<14x8xf32> to vector<12x8xf32>
    %213 = vector.extract_strided_slice %210 {offsets = [2, 0], sizes = [12, 8], strides = [1, 1]} : vector<14x8xf32> to vector<12x8xf32>
    %214 = tpu.concatenate %211, %212, %213 in 1 : vector<12x8xf32>, vector<12x8xf32>, vector<12x8xf32> -> vector<12x24xf32>
    %c0_107 = arith.constant 0 : index
    %c0_108 = arith.constant 0 : index
    %215 = vector.load %arg7[%c0_107, %c0_108] : memref<24x16xf32, #tpu.memory_space<vmem>>, vector<24x16xf32>
    %cst_109 = arith.constant dense<0.000000e+00> : vector<12x16xf32>
    %216 = tpu.matmul %214, %215, %cst_109 {dimension_numbers = #tpu.dot_dimension_numbers<[1], [0], [0], [1], [0, 0, 1, 1], [], []>} : vector<12x24xf32>, vector<24x16xf32>, vector<12x16xf32> -> vector<12x16xf32>
    %c0_110 = arith.constant 0 : index
    %c0_111 = arith.constant 0 : index
    %217 = vector.load %arg8[%c0_110, %c0_111] : memref<1x16xf32, #tpu.memory_space<vmem>>, vector<1x16xf32>
    %218 = vector.broadcast %217 : vector<1x16xf32> to vector<12x16xf32>
    %219 = arith.addf %216, %218 : vector<12x16xf32>
    %220 = vector.extract_strided_slice %219 {offsets = [0, 0], sizes = [12, 8], strides = [1, 1]} : vector<12x16xf32> to vector<12x8xf32>
    %cst_112 = arith.constant 0.000000e+00 : f32
    %221 = vector.broadcast %cst_112 : f32 to vector<12x8xf32>
    %222 = arith.maximumf %220, %221 : vector<12x8xf32>
    %223 = vector.extract_strided_slice %219 {offsets = [0, 8], sizes = [12, 8], strides = [1, 1]} : vector<12x16xf32> to vector<12x8xf32>
    %cst_113 = arith.constant 0.000000e+00 : f32
    %224 = vector.broadcast %cst_113 : f32 to vector<12x8xf32>
    %225 = arith.maximumf %223, %224 : vector<12x8xf32>
    %cst_114 = arith.constant 0.000000e+00 : f32
    %226 = vector.broadcast %cst_114 : f32 to vector<1x8xf32>
    %cst_115 = arith.constant 0.000000e+00 : f32
    %227 = vector.broadcast %cst_115 : f32 to vector<1x8xf32>
    %228 = tpu.concatenate %226, %222, %227 in 0 : vector<1x8xf32>, vector<12x8xf32>, vector<1x8xf32> -> vector<14x8xf32>
    %229 = vector.extract_strided_slice %228 {offsets = [0, 0], sizes = [12, 8], strides = [1, 1]} : vector<14x8xf32> to vector<12x8xf32>
    %230 = vector.extract_strided_slice %228 {offsets = [2, 0], sizes = [12, 8], strides = [1, 1]} : vector<14x8xf32> to vector<12x8xf32>
    %231 = tpu.concatenate %229, %230 in 1 : vector<12x8xf32>, vector<12x8xf32> -> vector<12x16xf32>
    %c0_116 = arith.constant 0 : index
    %c0_117 = arith.constant 0 : index
    %232 = vector.load %arg9[%c0_116, %c0_117] : memref<16x8xf32, #tpu.memory_space<vmem>>, vector<16x8xf32>
    %cst_118 = arith.constant dense<0.000000e+00> : vector<12x8xf32>
    %233 = tpu.matmul %231, %232, %cst_118 {dimension_numbers = #tpu.dot_dimension_numbers<[1], [0], [0], [1], [0, 0, 1, 1], [], []>} : vector<12x16xf32>, vector<16x8xf32>, vector<12x8xf32> -> vector<12x8xf32>
    %c0_119 = arith.constant 0 : index
    %c0_120 = arith.constant 0 : index
    %234 = vector.load %arg10[%c0_119, %c0_120] : memref<1x8xf32, #tpu.memory_space<vmem>>, vector<1x8xf32>
    %235 = vector.broadcast %234 : vector<1x8xf32> to vector<12x8xf32>
    %236 = arith.addf %233, %235 : vector<12x8xf32>
    %237 = arith.addf %236, %225 : vector<12x8xf32>
    %cst_121 = arith.constant 0.000000e+00 : f32
    %238 = vector.broadcast %cst_121 : f32 to vector<12x8xf32>
    %239 = arith.maximumf %237, %238 : vector<12x8xf32>
    %240 = vector.extract_strided_slice %239 {offsets = [0, 0], sizes = [11, 8], strides = [1, 1]} : vector<12x8xf32> to vector<11x8xf32>
    %241 = vector.extract_strided_slice %239 {offsets = [1, 0], sizes = [11, 8], strides = [1, 1]} : vector<12x8xf32> to vector<11x8xf32>
    %242 = tpu.concatenate %240, %241 in 1 : vector<11x8xf32>, vector<11x8xf32> -> vector<11x16xf32>
    %c0_122 = arith.constant 0 : index
    %c0_123 = arith.constant 0 : index
    %243 = vector.load %arg11[%c0_122, %c0_123] : memref<16x16xf32, #tpu.memory_space<vmem>>, vector<16x16xf32>
    %cst_124 = arith.constant dense<0.000000e+00> : vector<11x16xf32>
    %244 = tpu.matmul %242, %243, %cst_124 {dimension_numbers = #tpu.dot_dimension_numbers<[1], [0], [0], [1], [0, 0, 1, 1], [], []>} : vector<11x16xf32>, vector<16x16xf32>, vector<11x16xf32> -> vector<11x16xf32>
    %c0_125 = arith.constant 0 : index
    %c0_126 = arith.constant 0 : index
    %245 = vector.load %arg12[%c0_125, %c0_126] : memref<1x16xf32, #tpu.memory_space<vmem>>, vector<1x16xf32>
    %246 = vector.broadcast %245 : vector<1x16xf32> to vector<11x16xf32>
    %247 = arith.addf %244, %246 : vector<11x16xf32>
    %248 = tpu.iota {dimensions = array<i32: 0>} : vector<6x11xi32>
    %249 = tpu.iota {dimensions = array<i32: 1>} : vector<6x11xi32>
    %c2_i32_127 = arith.constant 2 : i32
    %250 = vector.broadcast %c2_i32_127 : i32 to vector<6x11xi32>
    %251 = arith.muli %250, %248 : vector<6x11xi32>
    %252 = arith.cmpi eq, %249, %251 : vector<6x11xi32>
    %cst_128 = arith.constant 1.000000e+00 : f32
    %cst_129 = arith.constant 0.000000e+00 : f32
    %253 = vector.broadcast %cst_128 : f32 to vector<6x11xf32>
    %254 = vector.broadcast %cst_129 : f32 to vector<6x11xf32>
    %255 = arith.select %252, %253, %254 : vector<6x11xi1>, vector<6x11xf32>
    %cst_130 = arith.constant dense<0.000000e+00> : vector<6x16xf32>
    %256 = tpu.matmul %255, %247, %cst_130 {dimension_numbers = #tpu.dot_dimension_numbers<[1], [0], [0], [1], [0, 0, 1, 1], [], []>} : vector<6x11xf32>, vector<11x16xf32>, vector<6x16xf32> -> vector<6x16xf32>
    %257 = vector.extract_strided_slice %256 {offsets = [0, 0], sizes = [6, 8], strides = [1, 1]} : vector<6x16xf32> to vector<6x8xf32>
    %cst_131 = arith.constant 0.000000e+00 : f32
    %258 = vector.broadcast %cst_131 : f32 to vector<6x8xf32>
    %259 = arith.maximumf %257, %258 : vector<6x8xf32>
    %260 = vector.extract_strided_slice %256 {offsets = [0, 8], sizes = [6, 8], strides = [1, 1]} : vector<6x16xf32> to vector<6x8xf32>
    %cst_132 = arith.constant 0.000000e+00 : f32
    %261 = vector.broadcast %cst_132 : f32 to vector<6x8xf32>
    %262 = arith.maximumf %260, %261 : vector<6x8xf32>
    %cst_133 = arith.constant 0.000000e+00 : f32
    %263 = vector.broadcast %cst_133 : f32 to vector<2x8xf32>
    %cst_134 = arith.constant 0.000000e+00 : f32
    %264 = vector.broadcast %cst_134 : f32 to vector<2x8xf32>
    %265 = tpu.concatenate %263, %259, %264 in 0 : vector<2x8xf32>, vector<6x8xf32>, vector<2x8xf32> -> vector<10x8xf32>
    %266 = vector.extract_strided_slice %265 {offsets = [0, 0], sizes = [6, 8], strides = [1, 1]} : vector<10x8xf32> to vector<6x8xf32>
    %267 = vector.extract_strided_slice %265 {offsets = [4, 0], sizes = [6, 8], strides = [1, 1]} : vector<10x8xf32> to vector<6x8xf32>
    %268 = tpu.concatenate %266, %267 in 1 : vector<6x8xf32>, vector<6x8xf32> -> vector<6x16xf32>
    %c0_135 = arith.constant 0 : index
    %c0_136 = arith.constant 0 : index
    %269 = vector.load %arg13[%c0_135, %c0_136] : memref<16x8xf32, #tpu.memory_space<vmem>>, vector<16x8xf32>
    %cst_137 = arith.constant dense<0.000000e+00> : vector<6x8xf32>
    %270 = tpu.matmul %268, %269, %cst_137 {dimension_numbers = #tpu.dot_dimension_numbers<[1], [0], [0], [1], [0, 0, 1, 1], [], []>} : vector<6x16xf32>, vector<16x8xf32>, vector<6x8xf32> -> vector<6x8xf32>
    %c0_138 = arith.constant 0 : index
    %c0_139 = arith.constant 0 : index
    %271 = vector.load %arg14[%c0_138, %c0_139] : memref<1x8xf32, #tpu.memory_space<vmem>>, vector<1x8xf32>
    %272 = vector.broadcast %271 : vector<1x8xf32> to vector<6x8xf32>
    %273 = arith.addf %270, %272 : vector<6x8xf32>
    %274 = arith.addf %273, %262 : vector<6x8xf32>
    %cst_140 = arith.constant 0.000000e+00 : f32
    %275 = vector.broadcast %cst_140 : f32 to vector<6x8xf32>
    %276 = arith.maximumf %274, %275 : vector<6x8xf32>
    %cst_141 = arith.constant 0.000000e+00 : f32
    %277 = vector.broadcast %cst_141 : f32 to vector<4x8xf32>
    %cst_142 = arith.constant 0.000000e+00 : f32
    %278 = vector.broadcast %cst_142 : f32 to vector<4x8xf32>
    %279 = tpu.concatenate %277, %276, %278 in 0 : vector<4x8xf32>, vector<6x8xf32>, vector<4x8xf32> -> vector<14x8xf32>
    %280 = vector.extract_strided_slice %279 {offsets = [0, 0], sizes = [6, 8], strides = [1, 1]} : vector<14x8xf32> to vector<6x8xf32>
    %281 = vector.extract_strided_slice %279 {offsets = [4, 0], sizes = [6, 8], strides = [1, 1]} : vector<14x8xf32> to vector<6x8xf32>
    %282 = vector.extract_strided_slice %279 {offsets = [8, 0], sizes = [6, 8], strides = [1, 1]} : vector<14x8xf32> to vector<6x8xf32>
    %283 = tpu.concatenate %280, %281, %282 in 1 : vector<6x8xf32>, vector<6x8xf32>, vector<6x8xf32> -> vector<6x24xf32>
    %c0_143 = arith.constant 0 : index
    %c0_144 = arith.constant 0 : index
    %284 = vector.load %arg15[%c0_143, %c0_144] : memref<24x16xf32, #tpu.memory_space<vmem>>, vector<24x16xf32>
    %cst_145 = arith.constant dense<0.000000e+00> : vector<6x16xf32>
    %285 = tpu.matmul %283, %284, %cst_145 {dimension_numbers = #tpu.dot_dimension_numbers<[1], [0], [0], [1], [0, 0, 1, 1], [], []>} : vector<6x24xf32>, vector<24x16xf32>, vector<6x16xf32> -> vector<6x16xf32>
    %c0_146 = arith.constant 0 : index
    %c0_147 = arith.constant 0 : index
    %286 = vector.load %arg16[%c0_146, %c0_147] : memref<1x16xf32, #tpu.memory_space<vmem>>, vector<1x16xf32>
    %287 = vector.broadcast %286 : vector<1x16xf32> to vector<6x16xf32>
    %288 = arith.addf %285, %287 : vector<6x16xf32>
    %289 = vector.extract_strided_slice %288 {offsets = [0, 0], sizes = [6, 8], strides = [1, 1]} : vector<6x16xf32> to vector<6x8xf32>
    %cst_148 = arith.constant 0.000000e+00 : f32
    %290 = vector.broadcast %cst_148 : f32 to vector<6x8xf32>
    %291 = arith.maximumf %289, %290 : vector<6x8xf32>
    %292 = vector.extract_strided_slice %288 {offsets = [0, 8], sizes = [6, 8], strides = [1, 1]} : vector<6x16xf32> to vector<6x8xf32>
    %cst_149 = arith.constant 0.000000e+00 : f32
    %293 = vector.broadcast %cst_149 : f32 to vector<6x8xf32>
    %294 = arith.maximumf %292, %293 : vector<6x8xf32>
    %cst_150 = arith.constant 0.000000e+00 : f32
    %295 = vector.broadcast %cst_150 : f32 to vector<4x8xf32>
    %cst_151 = arith.constant 0.000000e+00 : f32
    %296 = vector.broadcast %cst_151 : f32 to vector<4x8xf32>
    %297 = tpu.concatenate %295, %291, %296 in 0 : vector<4x8xf32>, vector<6x8xf32>, vector<4x8xf32> -> vector<14x8xf32>
    %298 = vector.extract_strided_slice %297 {offsets = [0, 0], sizes = [6, 8], strides = [1, 1]} : vector<14x8xf32> to vector<6x8xf32>
    %299 = vector.extract_strided_slice %297 {offsets = [8, 0], sizes = [6, 8], strides = [1, 1]} : vector<14x8xf32> to vector<6x8xf32>
    %300 = tpu.concatenate %298, %299 in 1 : vector<6x8xf32>, vector<6x8xf32> -> vector<6x16xf32>
    %c0_152 = arith.constant 0 : index
    %c0_153 = arith.constant 0 : index
    %301 = vector.load %arg17[%c0_152, %c0_153] : memref<16x8xf32, #tpu.memory_space<vmem>>, vector<16x8xf32>
    %cst_154 = arith.constant dense<0.000000e+00> : vector<6x8xf32>
    %302 = tpu.matmul %300, %301, %cst_154 {dimension_numbers = #tpu.dot_dimension_numbers<[1], [0], [0], [1], [0, 0, 1, 1], [], []>} : vector<6x16xf32>, vector<16x8xf32>, vector<6x8xf32> -> vector<6x8xf32>
    %c0_155 = arith.constant 0 : index
    %c0_156 = arith.constant 0 : index
    %303 = vector.load %arg18[%c0_155, %c0_156] : memref<1x8xf32, #tpu.memory_space<vmem>>, vector<1x8xf32>
    %304 = vector.broadcast %303 : vector<1x8xf32> to vector<6x8xf32>
    %305 = arith.addf %302, %304 : vector<6x8xf32>
    %306 = arith.addf %305, %294 : vector<6x8xf32>
    %cst_157 = arith.constant 0.000000e+00 : f32
    %307 = vector.broadcast %cst_157 : f32 to vector<6x8xf32>
    %308 = arith.maximumf %306, %307 : vector<6x8xf32>
    %309 = vector.extract_strided_slice %308 {offsets = [0, 0], sizes = [1, 8], strides = [1, 1]} : vector<6x8xf32> to vector<1x8xf32>
    %310 = vector.extract_strided_slice %308 {offsets = [1, 0], sizes = [1, 8], strides = [1, 1]} : vector<6x8xf32> to vector<1x8xf32>
    %311 = vector.extract_strided_slice %308 {offsets = [2, 0], sizes = [1, 8], strides = [1, 1]} : vector<6x8xf32> to vector<1x8xf32>
    %312 = vector.extract_strided_slice %308 {offsets = [3, 0], sizes = [1, 8], strides = [1, 1]} : vector<6x8xf32> to vector<1x8xf32>
    %313 = vector.extract_strided_slice %308 {offsets = [4, 0], sizes = [1, 8], strides = [1, 1]} : vector<6x8xf32> to vector<1x8xf32>
    %314 = vector.extract_strided_slice %308 {offsets = [5, 0], sizes = [1, 8], strides = [1, 1]} : vector<6x8xf32> to vector<1x8xf32>
    %315 = tpu.concatenate %309, %310, %311, %312, %313, %314 in 1 : vector<1x8xf32>, vector<1x8xf32>, vector<1x8xf32>, vector<1x8xf32>, vector<1x8xf32>, vector<1x8xf32> -> vector<1x48xf32>
    %316 = tpu.concatenate %157, %315 in 0 : vector<1x48xf32>, vector<1x48xf32> -> vector<2x48xf32>
    %c0_158 = arith.constant 0 : index
    %c0_159 = arith.constant 0 : index
    %317 = vector.load %arg19[%c0_158, %c0_159] : memref<48x12xf32, #tpu.memory_space<vmem>>, vector<48x12xf32>
    %cst_160 = arith.constant dense<0.000000e+00> : vector<2x12xf32>
    %318 = tpu.matmul %316, %317, %cst_160 {dimension_numbers = #tpu.dot_dimension_numbers<[1], [0], [0], [1], [0, 0, 1, 1], [], []>} : vector<2x48xf32>, vector<48x12xf32>, vector<2x12xf32> -> vector<2x12xf32>
    %c0_161 = arith.constant 0 : index
    %c0_162 = arith.constant 0 : index
    %319 = vector.load %arg20[%c0_161, %c0_162] : memref<1x12xf32, #tpu.memory_space<vmem>>, vector<1x12xf32>
    %320 = vector.broadcast %319 : vector<1x12xf32> to vector<2x12xf32>
    %321 = arith.addf %318, %320 : vector<2x12xf32>
    %cst_163 = arith.constant dense<0xFF800000> : vector<2xf32>
    %322 = vector.multi_reduction <maximumf>, %321, %cst_163 [1] : vector<2x12xf32> to vector<2xf32>
    %323 = vector.shape_cast %322 : vector<2xf32> to vector<2x1xf32>
    %324 = vector.broadcast %323 : vector<2x1xf32> to vector<2x12xf32>
    %325 = arith.subf %321, %324 : vector<2x12xf32>
    %326 = math.exp %325 : vector<2x12xf32>
    %cst_164 = arith.constant dense<0.000000e+00> : vector<2xf32>
    %327 = vector.multi_reduction <add>, %326, %cst_164 [1] : vector<2x12xf32> to vector<2xf32>
    %328 = vector.shape_cast %327 : vector<2xf32> to vector<2x1xf32>
    %329 = math.log %328 : vector<2x1xf32>
    %330 = arith.addf %323, %329 : vector<2x1xf32>
    %331 = vector.broadcast %330 : vector<2x1xf32> to vector<2x12xf32>
    %332 = arith.subf %321, %331 : vector<2x12xf32>
    %c0_165 = arith.constant 0 : index
    %c0_166 = arith.constant 0 : index
    %333 = vector.load %arg21[%c0_165, %c0_166] : memref<2x12xf32, #tpu.memory_space<vmem>>, vector<2x12xf32>
    tpu.vector_store %arg21[%c0_165, %c0_166], %332 {strides = array<i32>} : memref<2x12xf32, #tpu.memory_space<vmem>>, vector<2x12xf32>,
    return
  }
}

</mosaic_0001>

<llo_original>
// kernel: _lambda_.1
$region0: #{_lambda_.1}
  #allocation0 [shape = 'u32[]', space=smem, size = 0x4, offset = 0x4, fixed_abs, tag = 'smem constant byte address 0x4 - core index']
  #allocation1 [shape = 'u32[144,128]{1,0:T(1,128)}', space=vmem, size = 0x12000, scoped, tag = 'internal scratch']
  %s0 = inlined_call_operand.vmem [shape: f32[2,24,4], index: 0, kind: input, shape index: {}]
  %s1 = inlined_call_operand.vmem [shape: f32[12,8], index: 1, kind: input, shape index: {}]
  %s2 = inlined_call_operand.vmem [shape: f32[1,8], index: 2, kind: input, shape index: {}]
  %s3 = inlined_call_operand.vmem [shape: f32[16,16], index: 3, kind: input, shape index: {}]
  %s4 = inlined_call_operand.vmem [shape: f32[1,16], index: 4, kind: input, shape index: {}]
  %s5 = inlined_call_operand.vmem [shape: f32[16,8], index: 5, kind: input, shape index: {}]
  %s6 = inlined_call_operand.vmem [shape: f32[1,8], index: 6, kind: input, shape index: {}]
  %s7 = inlined_call_operand.vmem [shape: f32[24,16], index: 7, kind: input, shape index: {}]
  %s8 = inlined_call_operand.vmem [shape: f32[1,16], index: 8, kind: input, shape index: {}]
  %s9 = inlined_call_operand.vmem [shape: f32[16,8], index: 9, kind: input, shape index: {}]
  %s10 = inlined_call_operand.vmem [shape: f32[1,8], index: 10, kind: input, shape index: {}]
  %s11 = inlined_call_operand.vmem [shape: f32[16,16], index: 11, kind: input, shape index: {}]
  %s12 = inlined_call_operand.vmem [shape: f32[1,16], index: 12, kind: input, shape index: {}]
  %s13 = inlined_call_operand.vmem [shape: f32[16,8], index: 13, kind: input, shape index: {}]
  %s14 = inlined_call_operand.vmem [shape: f32[1,8], index: 14, kind: input, shape index: {}]
  %s15 = inlined_call_operand.vmem [shape: f32[24,16], index: 15, kind: input, shape index: {}]
  %s16 = inlined_call_operand.vmem [shape: f32[1,16], index: 16, kind: input, shape index: {}]
  %s17 = inlined_call_operand.vmem [shape: f32[16,8], index: 17, kind: input, shape index: {}]
  %s18 = inlined_call_operand.vmem [shape: f32[1,8], index: 18, kind: input, shape index: {}]
  %s19 = inlined_call_operand.vmem [shape: f32[48,12], index: 19, kind: input, shape index: {}]
  %s20 = inlined_call_operand.vmem [shape: f32[1,12], index: 20, kind: input, shape index: {}]
  %s21 = inlined_call_operand.hbm [shape: f32[2,12], index: 21, kind: output, shape index: {}]
  %s22 = sld [smem:[#allocation0]]
  $region94: #{_lambda_.1} parent=0
    _
  %s24 = ssub.s32 1, %s22
  %s25 = scalar_select 0, %s24, %s22
  $region1: #{_lambda_.1} parent=0
    #allocation2 [shape = 'u8[1024]{0}', space=vmem, size = 0x400, scoped, tag = 'output window, operand 0, single buffered']
    #allocation3 [shape = 's32[1]{0}', space=sflag, size = 0x4, scoped, tag = 'scoped memory for _lambda_.1']
    %26 = vsyncpa [#allocation3], 0
    // Predicated region
    $region2: #{_lambda_.1} parent=1 // pred_check
      _
    $region3: #{_lambda_.1} parent=1 // pred_check_branch
      %28 = sbr.rel (0) target = $region5
    $region4: #{_lambda_.1} parent=1 // pred_region
      _
    $region5: #{_lambda_.1} parent=1 // pred_fallthru
      _
    // Predicated region
    $region6: #{_lambda_.1} parent=1 // pred_check
      _
    $region7: #{_lambda_.1} parent=1 // pred_check_branch
      %30 = sbr.rel (0) target = $region9
    $region8: #{_lambda_.1} parent=1 // pred_region
      _
    $region9: #{_lambda_.1} parent=1 // pred_fallthru
      _
    // Predicated region
    $region10: #{_lambda_.1} parent=1 // pred_check
      _
    $region11: #{_lambda_.1} parent=1 // pred_check_branch
      %32 = sbr.rel (0) target = $region13
    $region12: #{_lambda_.1} parent=1 // pred_region
      _
    $region13: #{_lambda_.1} parent=1 // pred_fallthru
      _
    // Predicated region
    $region14: #{_lambda_.1} parent=1 // pred_check
      _
    $region15: #{_lambda_.1} parent=1 // pred_check_branch
      %34 = sbr.rel (0) target = $region17
    $region16: #{_lambda_.1} parent=1 // pred_region
      _
    $region17: #{_lambda_.1} parent=1 // pred_fallthru
      _
    // Predicated region
    $region18: #{_lambda_.1} parent=1 // pred_check
      _
    $region19: #{_lambda_.1} parent=1 // pred_check_branch
      %36 = sbr.rel (0) target = $region21
    $region20: #{_lambda_.1} parent=1 // pred_region
      _
    $region21: #{_lambda_.1} parent=1 // pred_fallthru
      _
    // Predicated region
    $region22: #{_lambda_.1} parent=1 // pred_check
      _
    $region23: #{_lambda_.1} parent=1 // pred_check_branch
      %38 = sbr.rel (0) target = $region25
    $region24: #{_lambda_.1} parent=1 // pred_region
      _
    $region25: #{_lambda_.1} parent=1 // pred_fallthru
      _
    // Predicated region
    $region26: #{_lambda_.1} parent=1 // pred_check
      _
    $region27: #{_lambda_.1} parent=1 // pred_check_branch
      %40 = sbr.rel (0) target = $region29
    $region28: #{_lambda_.1} parent=1 // pred_region
      _
    $region29: #{_lambda_.1} parent=1 // pred_fallthru
      _
    // Predicated region
    $region30: #{_lambda_.1} parent=1 // pred_check
      _
    $region31: #{_lambda_.1} parent=1 // pred_check_branch
      %42 = sbr.rel (0) target = $region33
    $region32: #{_lambda_.1} parent=1 // pred_region
      _
    $region33: #{_lambda_.1} parent=1 // pred_fallthru
      _
    // Predicated region
    $region34: #{_lambda_.1} parent=1 // pred_check
      _
    $region35: #{_lambda_.1} parent=1 // pred_check_branch
      %44 = sbr.rel (0) target = $region37
    $region36: #{_lambda_.1} parent=1 // pred_region
      _
    $region37: #{_lambda_.1} parent=1 // pred_fallthru
      _
    // Predicated region
    $region38: #{_lambda_.1} parent=1 // pred_check
      _
    $region39: #{_lambda_.1} parent=1 // pred_check_branch
      %46 = sbr.rel (0) target = $region41
    $region40: #{_lambda_.1} parent=1 // pred_region
      _
    $region41: #{_lambda_.1} parent=1 // pred_fallthru
      _
    // Predicated region
    $region42: #{_lambda_.1} parent=1 // pred_check
      _
    $region43: #{_lambda_.1} parent=1 // pred_check_branch
      %48 = sbr.rel (0) target = $region45
    $region44: #{_lambda_.1} parent=1 // pred_region
      _
    $region45: #{_lambda_.1} parent=1 // pred_fallthru
      _
    // Predicated region
    $region46: #{_lambda_.1} parent=1 // pred_check
      _
    $region47: #{_lambda_.1} parent=1 // pred_check_branch
      %50 = sbr.rel (0) target = $region49
    $region48: #{_lambda_.1} parent=1 // pred_region
      _
    $region49: #{_lambda_.1} parent=1 // pred_fallthru
      _
    // Predicated region
    $region50: #{_lambda_.1} parent=1 // pred_check
      _
    $region51: #{_lambda_.1} parent=1 // pred_check_branch
      %52 = sbr.rel (0) target = $region53
    $region52: #{_lambda_.1} parent=1 // pred_region
      _
    $region53: #{_lambda_.1} parent=1 // pred_fallthru
      _
    // Predicated region
    $region54: #{_lambda_.1} parent=1 // pred_check
      _
    $region55: #{_lambda_.1} parent=1 // pred_check_branch
      %54 = sbr.rel (0) target = $region57
    $region56: #{_lambda_.1} parent=1 // pred_region
      _
    $region57: #{_lambda_.1} parent=1 // pred_fallthru
      _
    // Predicated region
    $region58: #{_lambda_.1} parent=1 // pred_check
      _
    $region59: #{_lambda_.1} parent=1 // pred_check_branch
      %56 = sbr.rel (0) target = $region61
    $region60: #{_lambda_.1} parent=1 // pred_region
      _
    $region61: #{_lambda_.1} parent=1 // pred_fallthru
      _
    // Predicated region
    $region62: #{_lambda_.1} parent=1 // pred_check
      _
    $region63: #{_lambda_.1} parent=1 // pred_check_branch
      %58 = sbr.rel (0) target = $region65
    $region64: #{_lambda_.1} parent=1 // pred_region
      _
    $region65: #{_lambda_.1} parent=1 // pred_fallthru
      _
    // Predicated region
    $region66: #{_lambda_.1} parent=1 // pred_check
      _
    $region67: #{_lambda_.1} parent=1 // pred_check_branch
      %60 = sbr.rel (0) target = $region69
    $region68: #{_lambda_.1} parent=1 // pred_region
      _
    $region69: #{_lambda_.1} parent=1 // pred_fallthru
      _
    // Predicated region
    $region70: #{_lambda_.1} parent=1 // pred_check
      _
    $region71: #{_lambda_.1} parent=1 // pred_check_branch
      %62 = sbr.rel (0) target = $region73
    $region72: #{_lambda_.1} parent=1 // pred_region
      _
    $region73: #{_lambda_.1} parent=1 // pred_fallthru
      _
    // Predicated region
    $region74: #{_lambda_.1} parent=1 // pred_check
      _
    $region75: #{_lambda_.1} parent=1 // pred_check_branch
      %64 = sbr.rel (0) target = $region77
    $region76: #{_lambda_.1} parent=1 // pred_region
      _
    $region77: #{_lambda_.1} parent=1 // pred_fallthru
      _
    // Predicated region
    $region78: #{_lambda_.1} parent=1 // pred_check
      _
    $region79: #{_lambda_.1} parent=1 // pred_check_branch
      %66 = sbr.rel (0) target = $region81
    $region80: #{_lambda_.1} parent=1 // pred_region
      _
    $region81: #{_lambda_.1} parent=1 // pred_fallthru
      _
    // Predicated region
    $region82: #{_lambda_.1} parent=1 // pred_check
      _
    $region83: #{_lambda_.1} parent=1 // pred_check_branch
      %68 = sbr.rel (0) target = $region85
    $region84: #{_lambda_.1} parent=1 // pred_region
      _
    $region85: #{_lambda_.1} parent=1 // pred_fallthru
      _
    %v69 = vld [vmem:[%s0] sm:$0xff]
    %v70 = vld [vmem:[%s0 + $0x8] sm:$0xff]
    %v71 = vld [vmem:[%s0 + $0x10] sm:$0xff]
    %vm75 = vcmask 1040384
    %v76 = vrot.slane %v69, 7
    %v77 = vrot.slane %v70, 7
    %v78 = vsel %vm75, %v76, %v77
    %v79 = vrot.slane %v71, 7
    %v80 = vsel %vm75, %v77, %v79
    %v85 = vsel %vm75, 0.0, %v76
    %v86 = vsel %vm75, %v79, 0.0
    %vm89 = vcmask 1046528
    %v90 = vrot.slane %v85, 1
    %v91 = vrot.slane %v78, 1
    %v92 = vsel %vm89, %v90, %v91
    %v93 = vrot.slane %v80, 1
    %v94 = vsel %vm89, %v91, %v93
    %v95 = vrot.slane %v86, 1
    %v96 = vsel %vm89, %v93, %v95
    %97 = vrot.lane.b32.xlu0 %v92, 4
    %v98 = vpop.permute.xlu0 %97
    %99 = vrot.lane.b32.xlu0 %v94, 4
    %v100 = vpop.permute.xlu0 %99
    %101 = vrot.lane.b32.xlu0 %v96, 4
    %v102 = vpop.permute.xlu0 %101
    %vm106 = vcmask 1045504
    %v107 = vrot.slane %v85, 2
    %v108 = vrot.slane %v78, 2
    %v109 = vsel %vm106, %v107, %v108
    %v110 = vrot.slane %v80, 2
    %v111 = vsel %vm106, %v108, %v110
    %v112 = vrot.slane %v86, 2
    %v113 = vsel %vm106, %v110, %v112
    %114 = vrot.lane.b32.xlu0 %v109, 8
    %v115 = vpop.permute.xlu0 %114
    %116 = vrot.lane.b32.xlu0 %v111, 8
    %v117 = vpop.permute.xlu0 %116
    %118 = vrot.lane.b32.xlu0 %v113, 8
    %v119 = vpop.permute.xlu0 %118
    %vm123 = vcmask 31744
    %v124 = vsel %vm123, %v85, %v98
    %v125 = vsel %vm123, %v78, %v100
    %v126 = vsel %vm123, %v80, %v102
    %vm127 = vcmask 64512
    %v128 = vsel %vm127, %v124, %v115
    %v129 = vsel %vm127, %v125, %v117
    %v130 = vsel %vm127, %v126, %v119
    %v131 = vld [vmem:[%s1] sm:$0xff]
    %v132 = vld [vmem:[%s1 + $0x8] sm:$0xf]
    %v133 = vld [vmem:[%s2] sm:$0x1]
    %v135 = vlaneseq
    %v136 = vshrl.u32 %v135, 7
    %v137 = vsub.s32 0, %v136
    %v138 = vrot.slane %v133, %v137
    %vm140 = vcmask 97280
    %v142 = vsel %vm140, %v128, 0
    %v145 = vsel %vm140, %v129, 0
    %v148 = vsel %vm140, %v130, 0
    %vm150 = vcmask 1043456
    %v152 = vsel %vm150, %v132, 0
    %154 = vmatprep.subr.mxu0 0.0
    %155 = vmatpush1.msra.mxu0 0.0
    %156 = vmatprep.subr.mxu0 0.0
    %157 = vmatpush1.msra.mxu0 0.0
    %158 = vmatprep.subr.mxu0 0.0
    %159 = vmatpush1.msra.mxu0 0.0
    %160 = vmatprep.subr.mxu0 0.0
    %161 = vmatpush1.msra.mxu0 0.0
    %162 = vmatprep.subr.mxu0 0.0
    %163 = vmatpush1.msra.mxu0 0.0
    %164 = vmatprep.subr.mxu0 0.0
    %165 = vmatpush1.msra.mxu0 0.0
    %166 = vmatprep.subr.mxu0 0.0
    %167 = vmatpush1.msra.mxu0 0.0
    %168 = vmatprep.subr.mxu0 0.0
    %169 = vmatpush1.msra.mxu0 0.0
    %170 = vmatprep.subr.mxu0 0.0
    %171 = vmatpush1.msra.mxu0 0.0
    %172 = vmatprep.subr.mxu0 0.0
    %173 = vmatpush1.msra.mxu0 0.0
    %174 = vmatprep.subr.mxu0 0.0
    %175 = vmatpush1.msra.mxu0 0.0
    %176 = vmatprep.subr.mxu0 0.0
    %177 = vmatpush1.msra.mxu0 0.0
    %178 = vmatprep.subr.mxu0 0.0
    %179 = vmatpush1.msra.mxu0 0.0
    %180 = vmatprep.subr.mxu0 0.0
    %181 = vmatpush1.msra.mxu0 0.0
    %182 = vmatprep.subr.mxu0 0.0
    %183 = vmatpush1.msra.mxu0 %v152
    %184 = vmatprep.subr.mxu0 0.0
    %185 = vmatpush1.msra.mxu0 %v131
    %186 = vmatprep.subr.mxu0 0.0
    %187 = vmatpush2.msra.mxu0 0.0
    %188 = vmatprep.subr.mxu0 0.0
    %189 = vmatpush2.msra.mxu0 0.0
    %190 = vmatprep.subr.mxu0 0.0
    %191 = vmatpush2.msra.mxu0 0.0
    %192 = vmatprep.subr.mxu0 0.0
    %193 = vmatpush2.msra.mxu0 0.0
    %194 = vmatprep.subr.mxu0 0.0
    %195 = vmatpush2.msra.mxu0 0.0
    %196 = vmatprep.subr.mxu0 0.0
    %197 = vmatpush2.msra.mxu0 0.0
    %198 = vmatprep.subr.mxu0 0.0
    %199 = vmatpush2.msra.mxu0 0.0
    %200 = vmatprep.subr.mxu0 0.0
    %201 = vmatpush2.msra.mxu0 0.0
    %202 = vmatprep.subr.mxu0 0.0
    %203 = vmatpush2.msra.mxu0 0.0
    %204 = vmatprep.subr.mxu0 0.0
    %205 = vmatpush2.msra.mxu0 0.0
    %206 = vmatprep.subr.mxu0 0.0
    %207 = vmatpush2.msra.mxu0 0.0
    %208 = vmatprep.subr.mxu0 0.0
    %209 = vmatpush2.msra.mxu0 0.0
    %210 = vmatprep.subr.mxu0 0.0
    %211 = vmatpush2.msra.mxu0 0.0
    %212 = vmatprep.subr.mxu0 0.0
    %213 = vmatpush2.msra.mxu0 0.0
    %214 = vmatprep.subr.mxu0 0.0
    %215 = vmatpush2.msra.mxu0 0.0
    %216 = vmatprep.subr.mxu0 0.0
    %217 = vmatpush2.msra.mxu0 0.0
    %218 = vmatprep.mubr.f32.mxu0 0.0
    %219 = vmatmul.mubr.f32.gmra.mxu0 %v142
    %v220 = vpop.f32.mrf.mxu0
    %v221 = vadd.f32 %v138, %v220
    %v222 = vpop.f32.mrf.mxu0
    %223 = vmatprep.mubr.f32.mxu0 0.0
    %224 = vmatmul.mubr.f32.gmra.mxu0 %v145
    %v225 = vpop.f32.mrf.mxu0
    %v226 = vadd.f32 %v138, %v225
    %v227 = vpop.f32.mrf.mxu0
    %228 = vmatprep.mubr.f32.mxu0 0.0
    %229 = vmatmul.mubr.f32.gmra.mxu0 %v148
    %v230 = vpop.f32.mrf.mxu0
    %v231 = vadd.f32 %v138, %v230
    %v232 = vpop.f32.mrf.mxu0
    %233 = vdwg.mxu0
    %v237 = vrot.slane %v221, 1
    %v238 = vrot.slane %v226, 1
    %v239 = vsel %vm89, %v237, %v238
    %v240 = vrot.slane %v231, 1
    %v241 = vsel %vm89, %v238, %v240
    %242 = vrot.lane.b32.xlu0 %v239, 8
    %v243 = vpop.permute.xlu0 %242
    %244 = vrot.lane.b32.xlu0 %v241, 8
    %v245 = vpop.permute.xlu0 %244
    %246 = vrot.lane.b32.xlu0 %v240, 8
    %v247 = vpop.permute.xlu0 %246
    %v251 = vsel %vm127, %v221, %v243
    %v252 = vsel %vm127, %v226, %v245
    %v253 = vsel %vm127, %v231, %v247
    %v254 = vld [vmem:[%s3] sm:$0xff]
    %v255 = vld [vmem:[%s3 + $0x8] sm:$0xff]
    %v256 = vld [vmem:[%s4] sm:$0x1]
    %v258 = vlaneseq
    %v259 = vshrl.u32 %v258, 7
    %v260 = vsub.s32 0, %v259
    %v261 = vrot.slane %v256, %v260
    %vm263 = vcmask 130048
    %v265 = vsel %vm263, %v251, 0
    %v268 = vsel %vm263, %v252, 0
    %v271 = vsel %vm263, %v253, 0
    %273 = vmatprep.subr.mxu0 0.0
    %274 = vmatpush1.msra.mxu0 0.0
    %275 = vmatprep.subr.mxu0 0.0
    %276 = vmatpush1.msra.mxu0 0.0
    %277 = vmatprep.subr.mxu0 0.0
    %278 = vmatpush1.msra.mxu0 0.0
    %279 = vmatprep.subr.mxu0 0.0
    %280 = vmatpush1.msra.mxu0 0.0
    %281 = vmatprep.subr.mxu0 0.0
    %282 = vmatpush1.msra.mxu0 0.0
    %283 = vmatprep.subr.mxu0 0.0
    %284 = vmatpush1.msra.mxu0 0.0
    %285 = vmatprep.subr.mxu0 0.0
    %286 = vmatpush1.msra.mxu0 0.0
    %287 = vmatprep.subr.mxu0 0.0
    %288 = vmatpush1.msra.mxu0 0.0
    %289 = vmatprep.subr.mxu0 0.0
    %290 = vmatpush1.msra.mxu0 0.0
    %291 = vmatprep.subr.mxu0 0.0
    %292 = vmatpush1.msra.mxu0 0.0
    %293 = vmatprep.subr.mxu0 0.0
    %294 = vmatpush1.msra.mxu0 0.0
    %295 = vmatprep.subr.mxu0 0.0
    %296 = vmatpush1.msra.mxu0 0.0
    %297 = vmatprep.subr.mxu0 0.0
    %298 = vmatpush1.msra.mxu0 0.0
    %299 = vmatprep.subr.mxu0 0.0
    %300 = vmatpush1.msra.mxu0 0.0
    %301 = vmatprep.subr.mxu0 0.0
    %302 = vmatpush1.msra.mxu0 %v255
    %303 = vmatprep.subr.mxu0 0.0
    %304 = vmatpush1.msra.mxu0 %v254
    %305 = vmatprep.subr.mxu0 0.0
    %306 = vmatpush2.msra.mxu0 0.0
    %307 = vmatprep.subr.mxu0 0.0
    %308 = vmatpush2.msra.mxu0 0.0
    %309 = vmatprep.subr.mxu0 0.0
    %310 = vmatpush2.msra.mxu0 0.0
    %311 = vmatprep.subr.mxu0 0.0
    %312 = vmatpush2.msra.mxu0 0.0
    %313 = vmatprep.subr.mxu0 0.0
    %314 = vmatpush2.msra.mxu0 0.0
    %315 = vmatprep.subr.mxu0 0.0
    %316 = vmatpush2.msra.mxu0 0.0
    %317 = vmatprep.subr.mxu0 0.0
    %318 = vmatpush2.msra.mxu0 0.0
    %319 = vmatprep.subr.mxu0 0.0
    %320 = vmatpush2.msra.mxu0 0.0
    %321 = vmatprep.subr.mxu0 0.0
    %322 = vmatpush2.msra.mxu0 0.0
    %323 = vmatprep.subr.mxu0 0.0
    %324 = vmatpush2.msra.mxu0 0.0
    %325 = vmatprep.subr.mxu0 0.0
    %326 = vmatpush2.msra.mxu0 0.0
    %327 = vmatprep.subr.mxu0 0.0
    %328 = vmatpush2.msra.mxu0 0.0
    %329 = vmatprep.subr.mxu0 0.0
    %330 = vmatpush2.msra.mxu0 0.0
    %331 = vmatprep.subr.mxu0 0.0
    %332 = vmatpush2.msra.mxu0 0.0
    %333 = vmatprep.subr.mxu0 0.0
    %334 = vmatpush2.msra.mxu0 0.0
    %335 = vmatprep.subr.mxu0 0.0
    %336 = vmatpush2.msra.mxu0 0.0
    %337 = vmatprep.mubr.f32.mxu0 0.0
    %338 = vmatmul.mubr.f32.gmra.mxu0 %v265
    %v339 = vpop.f32.mrf.mxu0
    %v340 = vadd.f32 %v261, %v339
    %v341 = vpop.f32.mrf.mxu0
    %342 = vmatprep.mubr.f32.mxu0 0.0
    %343 = vmatmul.mubr.f32.gmra.mxu0 %v268
    %v344 = vpop.f32.mrf.mxu0
    %v345 = vadd.f32 %v261, %v344
    %v346 = vpop.f32.mrf.mxu0
    %347 = vmatprep.mubr.f32.mxu0 0.0
    %348 = vmatmul.mubr.f32.gmra.mxu0 %v271
    %v349 = vpop.f32.mrf.mxu0
    %v350 = vadd.f32 %v261, %v349
    %v351 = vpop.f32.mrf.mxu0
    %352 = vdwg.mxu0
    %v353 = vlaneseq
    %v354 = vshrl.u32 %v353, 7
    %v355 = vadd.s32 %v354, 8
    %v356 = vlaneseq
    %v357 = vand.u32 %v356, 127
    %v358 = vmul.u32 %v354, 2
    %v359 = vmul.u32 %v355, 2
    %vm360 = vcmp.eq.s32.totalorder %v357, %v358
    %vm361 = vcmp.eq.s32.totalorder %v357, %v359
    %v362 = vsel %vm360, 1.0, 0.0
    %v363 = vsel %vm361, 1.0, 0.0
    %vm364 = vcmask 187392
    %v366 = vsel %vm364, %v362, 0
    %v369 = vsel %vm364, %v363, 0
    %v372 = vsel %vm89, %v350, 0
    %374 = vmatprep.subr.mxu0 0.0
    %375 = vmatpush1.msra.mxu0 0.0
    %376 = vmatprep.subr.mxu0 0.0
    %377 = vmatpush1.msra.mxu0 0.0
    %378 = vmatprep.subr.mxu0 0.0
    %379 = vmatpush1.msra.mxu0 0.0
    %380 = vmatprep.subr.mxu0 0.0
    %381 = vmatpush1.msra.mxu0 0.0
    %382 = vmatprep.subr.mxu0 0.0
    %383 = vmatpush1.msra.mxu0 0.0
    %384 = vmatprep.subr.mxu0 0.0
    %385 = vmatpush1.msra.mxu0 0.0
    %386 = vmatprep.subr.mxu0 0.0
    %387 = vmatpush1.msra.mxu0 0.0
    %388 = vmatprep.subr.mxu0 0.0
    %389 = vmatpush1.msra.mxu0 0.0
    %390 = vmatprep.subr.mxu0 0.0
    %391 = vmatpush1.msra.mxu0 0.0
    %392 = vmatprep.subr.mxu0 0.0
    %393 = vmatpush1.msra.mxu0 0.0
    %394 = vmatprep.subr.mxu0 0.0
    %395 = vmatpush1.msra.mxu0 0.0
    %396 = vmatprep.subr.mxu0 0.0
    %397 = vmatpush1.msra.mxu0 0.0
    %398 = vmatprep.subr.mxu0 0.0
    %399 = vmatpush1.msra.mxu0 0.0
    %400 = vmatprep.subr.mxu0 0.0
    %401 = vmatpush1.msra.mxu0 %v372
    %402 = vmatprep.subr.mxu0 0.0
    %403 = vmatpush1.msra.mxu0 %v345
    %404 = vmatprep.subr.mxu0 0.0
    %405 = vmatpush1.msra.mxu0 %v340
    %406 = vmatprep.subr.mxu0 0.0
    %407 = vmatpush2.msra.mxu0 0.0
    %408 = vmatprep.subr.mxu0 0.0
    %409 = vmatpush2.msra.mxu0 0.0
    %410 = vmatprep.subr.mxu0 0.0
    %411 = vmatpush2.msra.mxu0 0.0
    %412 = vmatprep.subr.mxu0 0.0
    %413 = vmatpush2.msra.mxu0 0.0
    %414 = vmatprep.subr.mxu0 0.0
    %415 = vmatpush2.msra.mxu0 0.0
    %416 = vmatprep.subr.mxu0 0.0
    %417 = vmatpush2.msra.mxu0 0.0
    %418 = vmatprep.subr.mxu0 0.0
    %419 = vmatpush2.msra.mxu0 0.0
    %420 = vmatprep.subr.mxu0 0.0
    %421 = vmatpush2.msra.mxu0 0.0
    %422 = vmatprep.subr.mxu0 0.0
    %423 = vmatpush2.msra.mxu0 0.0
    %424 = vmatprep.subr.mxu0 0.0
    %425 = vmatpush2.msra.mxu0 0.0
    %426 = vmatprep.subr.mxu0 0.0
    %427 = vmatpush2.msra.mxu0 0.0
    %428 = vmatprep.subr.mxu0 0.0
    %429 = vmatpush2.msra.mxu0 0.0
    %430 = vmatprep.subr.mxu0 0.0
    %431 = vmatpush2.msra.mxu0 0.0
    %432 = vmatprep.subr.mxu0 0.0
    %433 = vmatpush2.msra.mxu0 0.0
    %434 = vmatprep.subr.mxu0 0.0
    %435 = vmatpush2.msra.mxu0 0.0
    %436 = vmatprep.subr.mxu0 0.0
    %437 = vmatpush2.msra.mxu0 0.0
    %438 = vmatprep.mubr.f32.mxu0 0.0
    %439 = vmatmul.mubr.f32.gmra.mxu0 %v366
    %v440 = vpop.f32.mrf.mxu0
    %v441 = vadd.f32 0.0, %v440
    %v442 = vpop.f32.mrf.mxu0
    %443 = vmatprep.mubr.f32.mxu0 0.0
    %444 = vmatmul.mubr.f32.gmra.mxu0 %v369
    %v445 = vpop.f32.mrf.mxu0
    %v446 = vadd.f32 0.0, %v445
    %v447 = vpop.f32.mrf.mxu0
    %448 = vdwg.mxu0
    %v449 = vmax.f32 %v441, 0.0
    %v450 = vmax.f32 %v446, 0.0
    %v451 = vsel %vm150, %v450, 0.0
    %v454 = vrot.slane %v449, 1
    %v455 = vrot.slane %v451, 1
    %v456 = vsel %vm89, %v454, %v455
    %457 = vrot.lane.b32.xlu0 %v456, 8
    %v458 = vpop.permute.xlu0 %457
    %459 = vrot.lane.b32.xlu0 %v455, 8
    %v460 = vpop.permute.xlu0 %459
    %v463 = vsel %vm127, %v449, %v458
    %v464 = vsel %vm127, %v451, %v460
    %v465 = vld [vmem:[%s5] sm:$0xff]
    %v466 = vld [vmem:[%s5 + $0x8] sm:$0xff]
    %v467 = vld [vmem:[%s6] sm:$0x1]
    %v469 = vlaneseq
    %v470 = vshrl.u32 %v469, 7
    %v471 = vsub.s32 0, %v470
    %v472 = vrot.slane %v467, %v471
    %v475 = vsel %vm263, %v463, 0
    %v478 = vsel %vm263, %v464, 0
    %480 = vmatprep.subr.mxu0 0.0
    %481 = vmatpush1.msra.mxu0 0.0
    %482 = vmatprep.subr.mxu0 0.0
    %483 = vmatpush1.msra.mxu0 0.0
    %484 = vmatprep.subr.mxu0 0.0
    %485 = vmatpush1.msra.mxu0 0.0
    %486 = vmatprep.subr.mxu0 0.0
    %487 = vmatpush1.msra.mxu0 0.0
    %488 = vmatprep.subr.mxu0 0.0
    %489 = vmatpush1.msra.mxu0 0.0
    %490 = vmatprep.subr.mxu0 0.0
    %491 = vmatpush1.msra.mxu0 0.0
    %492 = vmatprep.subr.mxu0 0.0
    %493 = vmatpush1.msra.mxu0 0.0
    %494 = vmatprep.subr.mxu0 0.0
    %495 = vmatpush1.msra.mxu0 0.0
    %496 = vmatprep.subr.mxu0 0.0
    %497 = vmatpush1.msra.mxu0 0.0
    %498 = vmatprep.subr.mxu0 0.0
    %499 = vmatpush1.msra.mxu0 0.0
    %500 = vmatprep.subr.mxu0 0.0
    %501 = vmatpush1.msra.mxu0 0.0
    %502 = vmatprep.subr.mxu0 0.0
    %503 = vmatpush1.msra.mxu0 0.0
    %504 = vmatprep.subr.mxu0 0.0
    %505 = vmatpush1.msra.mxu0 0.0
    %506 = vmatprep.subr.mxu0 0.0
    %507 = vmatpush1.msra.mxu0 0.0
    %508 = vmatprep.subr.mxu0 0.0
    %509 = vmatpush1.msra.mxu0 %v466
    %510 = vmatprep.subr.mxu0 0.0
    %511 = vmatpush1.msra.mxu0 %v465
    %512 = vmatprep.subr.mxu0 0.0
    %513 = vmatpush2.msra.mxu0 0.0
    %514 = vmatprep.subr.mxu0 0.0
    %515 = vmatpush2.msra.mxu0 0.0
    %516 = vmatprep.subr.mxu0 0.0
    %517 = vmatpush2.msra.mxu0 0.0
    %518 = vmatprep.subr.mxu0 0.0
    %519 = vmatpush2.msra.mxu0 0.0
    %520 = vmatprep.subr.mxu0 0.0
    %521 = vmatpush2.msra.mxu0 0.0
    %522 = vmatprep.subr.mxu0 0.0
    %523 = vmatpush2.msra.mxu0 0.0
    %524 = vmatprep.subr.mxu0 0.0
    %525 = vmatpush2.msra.mxu0 0.0
    %526 = vmatprep.subr.mxu0 0.0
    %527 = vmatpush2.msra.mxu0 0.0
    %528 = vmatprep.subr.mxu0 0.0
    %529 = vmatpush2.msra.mxu0 0.0
    %530 = vmatprep.subr.mxu0 0.0
    %531 = vmatpush2.msra.mxu0 0.0
    %532 = vmatprep.subr.mxu0 0.0
    %533 = vmatpush2.msra.mxu0 0.0
    %534 = vmatprep.subr.mxu0 0.0
    %535 = vmatpush2.msra.mxu0 0.0
    %536 = vmatprep.subr.mxu0 0.0
    %537 = vmatpush2.msra.mxu0 0.0
    %538 = vmatprep.subr.mxu0 0.0
    %539 = vmatpush2.msra.mxu0 0.0
    %540 = vmatprep.subr.mxu0 0.0
    %541 = vmatpush2.msra.mxu0 0.0
    %542 = vmatprep.subr.mxu0 0.0
    %543 = vmatpush2.msra.mxu0 0.0
    %544 = vmatprep.mubr.f32.mxu0 0.0
    %545 = vmatmul.mubr.f32.gmra.mxu0 %v475
    %v546 = vpop.f32.mrf.mxu0
    %v547 = vadd.f32 %v472, %v546
    %v548 = vpop.f32.mrf.mxu0
    %549 = vmatprep.mubr.f32.mxu0 0.0
    %550 = vmatmul.mubr.f32.gmra.mxu0 %v478
    %v551 = vpop.f32.mrf.mxu0
    %v552 = vadd.f32 %v472, %v551
    %v553 = vpop.f32.mrf.mxu0
    %554 = vdwg.mxu0
    %556 = vrot.lane.b32.xlu0 %v449, 120
    %v557 = vpop.permute.xlu0 %556
    %558 = vrot.lane.b32.xlu0 %v450, 120
    %v559 = vpop.permute.xlu0 %558
    %v562 = vadd.f32 %v547, %v557
    %v563 = vadd.f32 %v552, %v559
    %v564 = vmax.f32 %v562, 0.0
    %v565 = vmax.f32 %v563, 0.0
    %v568 = vrot.slane %v564, 7
    %v569 = vrot.slane %v565, 7
    %v570 = vsel %vm75, %v568, %v569
    %v573 = vsel %vm75, 0.0, %v568
    %vm574 = vcmask 1044480
    %v575 = vsel %vm574, %v570, 0.0
    %v578 = vrot.slane %v573, 1
    %v579 = vrot.slane %v575, 1
    %v580 = vsel %vm89, %v578, %v579
    %581 = vrot.lane.b32.xlu0 %v580, 8
    %v582 = vpop.permute.xlu0 %581
    %583 = vrot.lane.b32.xlu0 %v579, 8
    %v584 = vpop.permute.xlu0 %583
    %v587 = vrot.slane %v573, 2
    %v588 = vrot.slane %v575, 2
    %v589 = vsel %vm106, %v587, %v588
    %590 = vrot.lane.b32.xlu0 %v589, 16
    %v591 = vpop.permute.xlu0 %590
    %592 = vrot.lane.b32.xlu0 %v588, 16
    %v593 = vpop.permute.xlu0 %592
    %v596 = vsel %vm127, %v573, %v582
    %v597 = vsel %vm127, %v575, %v584
    %v598 = vsel %vm263, %v596, %v591
    %v599 = vsel %vm263, %v597, %v593
    %v600 = vld [vmem:[%s7] sm:$0xff]
    %v601 = vld [vmem:[%s7 + $0x8] sm:$0xff]
    %v602 = vld [vmem:[%s7 + $0x10] sm:$0xff]
    %v603 = vld [vmem:[%s8] sm:$0x1]
    %v605 = vlaneseq
    %v606 = vshrl.u32 %v605, 7
    %v607 = vsub.s32 0, %v606
    %v608 = vrot.slane %v603, %v607
    %vm610 = vcmask 195584
    %v612 = vsel %vm610, %v598, 0
    %v615 = vsel %vm610, %v599, 0
    %617 = vmatprep.subr.mxu0 0.0
    %618 = vmatpush1.msra.mxu0 0.0
    %619 = vmatprep.subr.mxu0 0.0
    %620 = vmatpush1.msra.mxu0 0.0
    %621 = vmatprep.subr.mxu0 0.0
    %622 = vmatpush1.msra.mxu0 0.0
    %623 = vmatprep.subr.mxu0 0.0
    %624 = vmatpush1.msra.mxu0 0.0
    %625 = vmatprep.subr.mxu0 0.0
    %626 = vmatpush1.msra.mxu0 0.0
    %627 = vmatprep.subr.mxu0 0.0
    %628 = vmatpush1.msra.mxu0 0.0
    %629 = vmatprep.subr.mxu0 0.0
    %630 = vmatpush1.msra.mxu0 0.0
    %631 = vmatprep.subr.mxu0 0.0
    %632 = vmatpush1.msra.mxu0 0.0
    %633 = vmatprep.subr.mxu0 0.0
    %634 = vmatpush1.msra.mxu0 0.0
    %635 = vmatprep.subr.mxu0 0.0
    %636 = vmatpush1.msra.mxu0 0.0
    %637 = vmatprep.subr.mxu0 0.0
    %638 = vmatpush1.msra.mxu0 0.0
    %639 = vmatprep.subr.mxu0 0.0
    %640 = vmatpush1.msra.mxu0 0.0
    %641 = vmatprep.subr.mxu0 0.0
    %642 = vmatpush1.msra.mxu0 0.0
    %643 = vmatprep.subr.mxu0 0.0
    %644 = vmatpush1.msra.mxu0 %v602
    %645 = vmatprep.subr.mxu0 0.0
    %646 = vmatpush1.msra.mxu0 %v601
    %647 = vmatprep.subr.mxu0 0.0
    %648 = vmatpush1.msra.mxu0 %v600
    %649 = vmatprep.subr.mxu0 0.0
    %650 = vmatpush2.msra.mxu0 0.0
    %651 = vmatprep.subr.mxu0 0.0
    %652 = vmatpush2.msra.mxu0 0.0
    %653 = vmatprep.subr.mxu0 0.0
    %654 = vmatpush2.msra.mxu0 0.0
    %655 = vmatprep.subr.mxu0 0.0
    %656 = vmatpush2.msra.mxu0 0.0
    %657 = vmatprep.subr.mxu0 0.0
    %658 = vmatpush2.msra.mxu0 0.0
    %659 = vmatprep.subr.mxu0 0.0
    %660 = vmatpush2.msra.mxu0 0.0
    %661 = vmatprep.subr.mxu0 0.0
    %662 = vmatpush2.msra.mxu0 0.0
    %663 = vmatprep.subr.mxu0 0.0
    %664 = vmatpush2.msra.mxu0 0.0
    %665 = vmatprep.subr.mxu0 0.0
    %666 = vmatpush2.msra.mxu0 0.0
    %667 = vmatprep.subr.mxu0 0.0
    %668 = vmatpush2.msra.mxu0 0.0
    %669 = vmatprep.subr.mxu0 0.0
    %670 = vmatpush2.msra.mxu0 0.0
    %671 = vmatprep.subr.mxu0 0.0
    %672 = vmatpush2.msra.mxu0 0.0
    %673 = vmatprep.subr.mxu0 0.0
    %674 = vmatpush2.msra.mxu0 0.0
    %675 = vmatprep.subr.mxu0 0.0
    %676 = vmatpush2.msra.mxu0 0.0
    %677 = vmatprep.subr.mxu0 0.0
    %678 = vmatpush2.msra.mxu0 0.0
    %679 = vmatprep.subr.mxu0 0.0
    %680 = vmatpush2.msra.mxu0 0.0
    %681 = vmatprep.mubr.f32.mxu0 0.0
    %682 = vmatmul.mubr.f32.gmra.mxu0 %v612
    %v683 = vpop.f32.mrf.mxu0
    %v684 = vadd.f32 %v608, %v683
    %v685 = vpop.f32.mrf.mxu0
    %686 = vmatprep.mubr.f32.mxu0 0.0
    %687 = vmatmul.mubr.f32.gmra.mxu0 %v615
    %v688 = vpop.f32.mrf.mxu0
    %v689 = vadd.f32 %v608, %v688
    %v690 = vpop.f32.mrf.mxu0
    %691 = vdwg.mxu0
    %v692 = vmax.f32 %v684, 0.0
    %v693 = vmax.f32 %v689, 0.0
    %v696 = vrot.slane %v692, 7
    %v697 = vrot.slane %v693, 7
    %v698 = vsel %vm75, %v696, %v697
    %v701 = vsel %vm75, 0.0, %v696
    %v702 = vsel %vm574, %v698, 0.0
    %v705 = vrot.slane %v701, 2
    %v706 = vrot.slane %v702, 2
    %v707 = vsel %vm106, %v705, %v706
    %708 = vrot.lane.b32.xlu0 %v707, 8
    %v709 = vpop.permute.xlu0 %708
    %710 = vrot.lane.b32.xlu0 %v706, 8
    %v711 = vpop.permute.xlu0 %710
    %v714 = vsel %vm127, %v701, %v709
    %v715 = vsel %vm127, %v702, %v711
    %v716 = vld [vmem:[%s9] sm:$0xff]
    %v717 = vld [vmem:[%s9 + $0x8] sm:$0xff]
    %v718 = vld [vmem:[%s10] sm:$0x1]
    %v720 = vlaneseq
    %v721 = vshrl.u32 %v720, 7
    %v722 = vsub.s32 0, %v721
    %v723 = vrot.slane %v718, %v722
    %v726 = vsel %vm263, %v714, 0
    %v729 = vsel %vm263, %v715, 0
    %731 = vmatprep.subr.mxu0 0.0
    %732 = vmatpush1.msra.mxu0 0.0
    %733 = vmatprep.subr.mxu0 0.0
    %734 = vmatpush1.msra.mxu0 0.0
    %735 = vmatprep.subr.mxu0 0.0
    %736 = vmatpush1.msra.mxu0 0.0
    %737 = vmatprep.subr.mxu0 0.0
    %738 = vmatpush1.msra.mxu0 0.0
    %739 = vmatprep.subr.mxu0 0.0
    %740 = vmatpush1.msra.mxu0 0.0
    %741 = vmatprep.subr.mxu0 0.0
    %742 = vmatpush1.msra.mxu0 0.0
    %743 = vmatprep.subr.mxu0 0.0
    %744 = vmatpush1.msra.mxu0 0.0
    %745 = vmatprep.subr.mxu0 0.0
    %746 = vmatpush1.msra.mxu0 0.0
    %747 = vmatprep.subr.mxu0 0.0
    %748 = vmatpush1.msra.mxu0 0.0
    %749 = vmatprep.subr.mxu0 0.0
    %750 = vmatpush1.msra.mxu0 0.0
    %751 = vmatprep.subr.mxu0 0.0
    %752 = vmatpush1.msra.mxu0 0.0
    %753 = vmatprep.subr.mxu0 0.0
    %754 = vmatpush1.msra.mxu0 0.0
    %755 = vmatprep.subr.mxu0 0.0
    %756 = vmatpush1.msra.mxu0 0.0
    %757 = vmatprep.subr.mxu0 0.0
    %758 = vmatpush1.msra.mxu0 0.0
    %759 = vmatprep.subr.mxu0 0.0
    %760 = vmatpush1.msra.mxu0 %v717
    %761 = vmatprep.subr.mxu0 0.0
    %762 = vmatpush1.msra.mxu0 %v716
    %763 = vmatprep.subr.mxu0 0.0
    %764 = vmatpush2.msra.mxu0 0.0
    %765 = vmatprep.subr.mxu0 0.0
    %766 = vmatpush2.msra.mxu0 0.0
    %767 = vmatprep.subr.mxu0 0.0
    %768 = vmatpush2.msra.mxu0 0.0
    %769 = vmatprep.subr.mxu0 0.0
    %770 = vmatpush2.msra.mxu0 0.0
    %771 = vmatprep.subr.mxu0 0.0
    %772 = vmatpush2.msra.mxu0 0.0
    %773 = vmatprep.subr.mxu0 0.0
    %774 = vmatpush2.msra.mxu0 0.0
    %775 = vmatprep.subr.mxu0 0.0
    %776 = vmatpush2.msra.mxu0 0.0
    %777 = vmatprep.subr.mxu0 0.0
    %778 = vmatpush2.msra.mxu0 0.0
    %779 = vmatprep.subr.mxu0 0.0
    %780 = vmatpush2.msra.mxu0 0.0
    %781 = vmatprep.subr.mxu0 0.0
    %782 = vmatpush2.msra.mxu0 0.0
    %783 = vmatprep.subr.mxu0 0.0
    %784 = vmatpush2.msra.mxu0 0.0
    %785 = vmatprep.subr.mxu0 0.0
    %786 = vmatpush2.msra.mxu0 0.0
    %787 = vmatprep.subr.mxu0 0.0
    %788 = vmatpush2.msra.mxu0 0.0
    %789 = vmatprep.subr.mxu0 0.0
    %790 = vmatpush2.msra.mxu0 0.0
    %791 = vmatprep.subr.mxu0 0.0
    %792 = vmatpush2.msra.mxu0 0.0
    %793 = vmatprep.subr.mxu0 0.0
    %794 = vmatpush2.msra.mxu0 0.0
    %795 = vmatprep.mubr.f32.mxu0 0.0
    %796 = vmatmul.mubr.f32.gmra.mxu0 %v726
    %v797 = vpop.f32.mrf.mxu0
    %v798 = vadd.f32 %v723, %v797
    %v799 = vpop.f32.mrf.mxu0
    %800 = vmatprep.mubr.f32.mxu0 0.0
    %801 = vmatmul.mubr.f32.gmra.mxu0 %v729
    %v802 = vpop.f32.mrf.mxu0
    %v803 = vadd.f32 %v723, %v802
    %v804 = vpop.f32.mrf.mxu0
    %805 = vdwg.mxu0
    %806 = vrot.lane.b32.xlu0 %v692, 120
    %v807 = vpop.permute.xlu0 %806
    %808 = vrot.lane.b32.xlu0 %v693, 120
    %v809 = vpop.permute.xlu0 %808
    %v812 = vadd.f32 %v798, %v807
    %v813 = vadd.f32 %v803, %v809
    %v814 = vmax.f32 %v812, 0.0
    %v815 = vmax.f32 %v813, 0.0
    %v818 = vrot.slane %v814, 1
    %v819 = vrot.slane %v815, 1
    %v820 = vsel %vm89, %v818, %v819
    %821 = vrot.lane.b32.xlu0 %v820, 8
    %v822 = vpop.permute.xlu0 %821
    %823 = vrot.lane.b32.xlu0 %v819, 8
    %v824 = vpop.permute.xlu0 %823
    %v827 = vsel %vm127, %v814, %v822
    %v828 = vsel %vm127, %v815, %v824
    %v829 = vld [vmem:[%s11] sm:$0xff]
    %v830 = vld [vmem:[%s11 + $0x8] sm:$0xff]
    %v831 = vld [vmem:[%s12] sm:$0x1]
    %v833 = vlaneseq
    %v834 = vshrl.u32 %v833, 7
    %v835 = vsub.s32 0, %v834
    %v836 = vrot.slane %v831, %v835
    %v839 = vsel %vm263, %v827, 0
    %v842 = vsel %vm263, %v828, 0
    %844 = vmatprep.subr.mxu0 0.0
    %845 = vmatpush1.msra.mxu0 0.0
    %846 = vmatprep.subr.mxu0 0.0
    %847 = vmatpush1.msra.mxu0 0.0
    %848 = vmatprep.subr.mxu0 0.0
    %849 = vmatpush1.msra.mxu0 0.0
    %850 = vmatprep.subr.mxu0 0.0
    %851 = vmatpush1.msra.mxu0 0.0
    %852 = vmatprep.subr.mxu0 0.0
    %853 = vmatpush1.msra.mxu0 0.0
    %854 = vmatprep.subr.mxu0 0.0
    %855 = vmatpush1.msra.mxu0 0.0
    %856 = vmatprep.subr.mxu0 0.0
    %857 = vmatpush1.msra.mxu0 0.0
    %858 = vmatprep.subr.mxu0 0.0
    %859 = vmatpush1.msra.mxu0 0.0
    %860 = vmatprep.subr.mxu0 0.0
    %861 = vmatpush1.msra.mxu0 0.0
    %862 = vmatprep.subr.mxu0 0.0
    %863 = vmatpush1.msra.mxu0 0.0
    %864 = vmatprep.subr.mxu0 0.0
    %865 = vmatpush1.msra.mxu0 0.0
    %866 = vmatprep.subr.mxu0 0.0
    %867 = vmatpush1.msra.mxu0 0.0
    %868 = vmatprep.subr.mxu0 0.0
    %869 = vmatpush1.msra.mxu0 0.0
    %870 = vmatprep.subr.mxu0 0.0
    %871 = vmatpush1.msra.mxu0 0.0
    %872 = vmatprep.subr.mxu0 0.0
    %873 = vmatpush1.msra.mxu0 %v830
    %874 = vmatprep.subr.mxu0 0.0
    %875 = vmatpush1.msra.mxu0 %v829
    %876 = vmatprep.subr.mxu0 0.0
    %877 = vmatpush2.msra.mxu0 0.0
    %878 = vmatprep.subr.mxu0 0.0
    %879 = vmatpush2.msra.mxu0 0.0
    %880 = vmatprep.subr.mxu0 0.0
    %881 = vmatpush2.msra.mxu0 0.0
    %882 = vmatprep.subr.mxu0 0.0
    %883 = vmatpush2.msra.mxu0 0.0
    %884 = vmatprep.subr.mxu0 0.0
    %885 = vmatpush2.msra.mxu0 0.0
    %886 = vmatprep.subr.mxu0 0.0
    %887 = vmatpush2.msra.mxu0 0.0
    %888 = vmatprep.subr.mxu0 0.0
    %889 = vmatpush2.msra.mxu0 0.0
    %890 = vmatprep.subr.mxu0 0.0
    %891 = vmatpush2.msra.mxu0 0.0
    %892 = vmatprep.subr.mxu0 0.0
    %893 = vmatpush2.msra.mxu0 0.0
    %894 = vmatprep.subr.mxu0 0.0
    %895 = vmatpush2.msra.mxu0 0.0
    %896 = vmatprep.subr.mxu0 0.0
    %897 = vmatpush2.msra.mxu0 0.0
    %898 = vmatprep.subr.mxu0 0.0
    %899 = vmatpush2.msra.mxu0 0.0
    %900 = vmatprep.subr.mxu0 0.0
    %901 = vmatpush2.msra.mxu0 0.0
    %902 = vmatprep.subr.mxu0 0.0
    %903 = vmatpush2.msra.mxu0 0.0
    %904 = vmatprep.subr.mxu0 0.0
    %905 = vmatpush2.msra.mxu0 0.0
    %906 = vmatprep.subr.mxu0 0.0
    %907 = vmatpush2.msra.mxu0 0.0
    %908 = vmatprep.mubr.f32.mxu0 0.0
    %909 = vmatmul.mubr.f32.gmra.mxu0 %v839
    %v910 = vpop.f32.mrf.mxu0
    %v911 = vadd.f32 %v836, %v910
    %v912 = vpop.f32.mrf.mxu0
    %913 = vmatprep.mubr.f32.mxu0 0.0
    %914 = vmatmul.mubr.f32.gmra.mxu0 %v842
    %v915 = vpop.f32.mrf.mxu0
    %v916 = vadd.f32 %v836, %v915
    %v917 = vpop.f32.mrf.mxu0
    %918 = vdwg.mxu0
    %vm919 = vcmask 89088
    %v920 = vsel %vm919, %v362, 0
    %vm922 = vcmask 1042432
    %v924 = vsel %vm922, %v916, 0
    %926 = vmatprep.subr.mxu0 0.0
    %927 = vmatpush1.msra.mxu0 0.0
    %928 = vmatprep.subr.mxu0 0.0
    %929 = vmatpush1.msra.mxu0 0.0
    %930 = vmatprep.subr.mxu0 0.0
    %931 = vmatpush1.msra.mxu0 0.0
    %932 = vmatprep.subr.mxu0 0.0
    %933 = vmatpush1.msra.mxu0 0.0
    %934 = vmatprep.subr.mxu0 0.0
    %935 = vmatpush1.msra.mxu0 0.0
    %936 = vmatprep.subr.mxu0 0.0
    %937 = vmatpush1.msra.mxu0 0.0
    %938 = vmatprep.subr.mxu0 0.0
    %939 = vmatpush1.msra.mxu0 0.0
    %940 = vmatprep.subr.mxu0 0.0
    %941 = vmatpush1.msra.mxu0 0.0
    %942 = vmatprep.subr.mxu0 0.0
    %943 = vmatpush1.msra.mxu0 0.0
    %944 = vmatprep.subr.mxu0 0.0
    %945 = vmatpush1.msra.mxu0 0.0
    %946 = vmatprep.subr.mxu0 0.0
    %947 = vmatpush1.msra.mxu0 0.0
    %948 = vmatprep.subr.mxu0 0.0
    %949 = vmatpush1.msra.mxu0 0.0
    %950 = vmatprep.subr.mxu0 0.0
    %951 = vmatpush1.msra.mxu0 0.0
    %952 = vmatprep.subr.mxu0 0.0
    %953 = vmatpush1.msra.mxu0 0.0
    %954 = vmatprep.subr.mxu0 0.0
    %955 = vmatpush1.msra.mxu0 %v924
    %956 = vmatprep.subr.mxu0 0.0
    %957 = vmatpush1.msra.mxu0 %v911
    %958 = vmatprep.subr.mxu0 0.0
    %959 = vmatpush2.msra.mxu0 0.0
    %960 = vmatprep.subr.mxu0 0.0
    %961 = vmatpush2.msra.mxu0 0.0
    %962 = vmatprep.subr.mxu0 0.0
    %963 = vmatpush2.msra.mxu0 0.0
    %964 = vmatprep.subr.mxu0 0.0
    %965 = vmatpush2.msra.mxu0 0.0
    %966 = vmatprep.subr.mxu0 0.0
    %967 = vmatpush2.msra.mxu0 0.0
    %968 = vmatprep.subr.mxu0 0.0
    %969 = vmatpush2.msra.mxu0 0.0
    %970 = vmatprep.subr.mxu0 0.0
    %971 = vmatpush2.msra.mxu0 0.0
    %972 = vmatprep.subr.mxu0 0.0
    %973 = vmatpush2.msra.mxu0 0.0
    %974 = vmatprep.subr.mxu0 0.0
    %975 = vmatpush2.msra.mxu0 0.0
    %976 = vmatprep.subr.mxu0 0.0
    %977 = vmatpush2.msra.mxu0 0.0
    %978 = vmatprep.subr.mxu0 0.0
    %979 = vmatpush2.msra.mxu0 0.0
    %980 = vmatprep.subr.mxu0 0.0
    %981 = vmatpush2.msra.mxu0 0.0
    %982 = vmatprep.subr.mxu0 0.0
    %983 = vmatpush2.msra.mxu0 0.0
    %984 = vmatprep.subr.mxu0 0.0
    %985 = vmatpush2.msra.mxu0 0.0
    %986 = vmatprep.subr.mxu0 0.0
    %987 = vmatpush2.msra.mxu0 0.0
    %988 = vmatprep.subr.mxu0 0.0
    %989 = vmatpush2.msra.mxu0 0.0
    %990 = vmatprep.mubr.f32.mxu0 0.0
    %991 = vmatmul.mubr.f32.gmra.mxu0 %v920
    %v992 = vpop.f32.mrf.mxu0
    %v993 = vadd.f32 0.0, %v992
    %v994 = vpop.f32.mrf.mxu0
    %995 = vdwg.mxu0
    %v996 = vmax.f32 %v993, 0.0
    %v998 = vrot.slane %v996, 6
    %vm1000 = vcmask 1041408
    %v1001 = vsel %vm1000, 0.0, %v998
    %v1004 = vrot.slane %v1001, 4
    %v1005 = vrot.slane 0.0, 4
    %v1006 = vsel %vm150, %v1004, %v1005
    %1007 = vrot.lane.b32.xlu0 %v1006, 8
    %v1008 = vpop.permute.xlu0 %1007
    %v1010 = vsel %vm127, %v1001, %v1008
    %v1011 = vld [vmem:[%s13] sm:$0xff]
    %v1012 = vld [vmem:[%s13 + $0x8] sm:$0xff]
    %v1013 = vld [vmem:[%s14] sm:$0x1]
    %v1015 = vlaneseq
    %v1016 = vshrl.u32 %v1015, 7
    %v1017 = vsub.s32 0, %v1016
    %v1018 = vrot.slane %v1013, %v1017
    %v1021 = vsel %vm263, %v1010, 0
    %1023 = vmatprep.subr.mxu0 0.0
    %1024 = vmatpush1.msra.mxu0 0.0
    %1025 = vmatprep.subr.mxu0 0.0
    %1026 = vmatpush1.msra.mxu0 0.0
    %1027 = vmatprep.subr.mxu0 0.0
    %1028 = vmatpush1.msra.mxu0 0.0
    %1029 = vmatprep.subr.mxu0 0.0
    %1030 = vmatpush1.msra.mxu0 0.0
    %1031 = vmatprep.subr.mxu0 0.0
    %1032 = vmatpush1.msra.mxu0 0.0
    %1033 = vmatprep.subr.mxu0 0.0
    %1034 = vmatpush1.msra.mxu0 0.0
    %1035 = vmatprep.subr.mxu0 0.0
    %1036 = vmatpush1.msra.mxu0 0.0
    %1037 = vmatprep.subr.mxu0 0.0
    %1038 = vmatpush1.msra.mxu0 0.0
    %1039 = vmatprep.subr.mxu0 0.0
    %1040 = vmatpush1.msra.mxu0 0.0
    %1041 = vmatprep.subr.mxu0 0.0
    %1042 = vmatpush1.msra.mxu0 0.0
    %1043 = vmatprep.subr.mxu0 0.0
    %1044 = vmatpush1.msra.mxu0 0.0
    %1045 = vmatprep.subr.mxu0 0.0
    %1046 = vmatpush1.msra.mxu0 0.0
    %1047 = vmatprep.subr.mxu0 0.0
    %1048 = vmatpush1.msra.mxu0 0.0
    %1049 = vmatprep.subr.mxu0 0.0
    %1050 = vmatpush1.msra.mxu0 0.0
    %1051 = vmatprep.subr.mxu0 0.0
    %1052 = vmatpush1.msra.mxu0 %v1012
    %1053 = vmatprep.subr.mxu0 0.0
    %1054 = vmatpush1.msra.mxu0 %v1011
    %1055 = vmatprep.subr.mxu0 0.0
    %1056 = vmatpush2.msra.mxu0 0.0
    %1057 = vmatprep.subr.mxu0 0.0
    %1058 = vmatpush2.msra.mxu0 0.0
    %1059 = vmatprep.subr.mxu0 0.0
    %1060 = vmatpush2.msra.mxu0 0.0
    %1061 = vmatprep.subr.mxu0 0.0
    %1062 = vmatpush2.msra.mxu0 0.0
    %1063 = vmatprep.subr.mxu0 0.0
    %1064 = vmatpush2.msra.mxu0 0.0
    %1065 = vmatprep.subr.mxu0 0.0
    %1066 = vmatpush2.msra.mxu0 0.0
    %1067 = vmatprep.subr.mxu0 0.0
    %1068 = vmatpush2.msra.mxu0 0.0
    %1069 = vmatprep.subr.mxu0 0.0
    %1070 = vmatpush2.msra.mxu0 0.0
    %1071 = vmatprep.subr.mxu0 0.0
    %1072 = vmatpush2.msra.mxu0 0.0
    %1073 = vmatprep.subr.mxu0 0.0
    %1074 = vmatpush2.msra.mxu0 0.0
    %1075 = vmatprep.subr.mxu0 0.0
    %1076 = vmatpush2.msra.mxu0 0.0
    %1077 = vmatprep.subr.mxu0 0.0
    %1078 = vmatpush2.msra.mxu0 0.0
    %1079 = vmatprep.subr.mxu0 0.0
    %1080 = vmatpush2.msra.mxu0 0.0
    %1081 = vmatprep.subr.mxu0 0.0
    %1082 = vmatpush2.msra.mxu0 0.0
    %1083 = vmatprep.subr.mxu0 0.0
    %1084 = vmatpush2.msra.mxu0 0.0
    %1085 = vmatprep.subr.mxu0 0.0
    %1086 = vmatpush2.msra.mxu0 0.0
    %1087 = vmatprep.mubr.f32.mxu0 0.0
    %1088 = vmatmul.mubr.f32.gmra.mxu0 %v1021
    %v1089 = vpop.f32.mrf.mxu0
    %v1090 = vadd.f32 %v1018, %v1089
    %v1091 = vpop.f32.mrf.mxu0
    %1092 = vdwg.mxu0
    %1093 = vrot.lane.b32.xlu0 %v996, 120
    %v1094 = vpop.permute.xlu0 %1093
    %v1096 = vadd.f32 %v1090, %v1094
    %v1097 = vmax.f32 %v1096, 0.0
    %v1099 = vrot.slane %v1097, 4
    %v1101 = vsel %vm150, 0.0, %v1099
    %v1102 = vsel %vm1000, %v1099, 0.0
    %v1105 = vrot.slane %v1101, 4
    %v1106 = vrot.slane %v1102, 4
    %v1107 = vsel %vm150, %v1105, %v1106
    %1108 = vrot.lane.b32.xlu0 %v1107, 8
    %v1109 = vpop.permute.xlu0 %1108
    %1111 = vrot.lane.b32.xlu0 %v1102, 16
    %v1112 = vpop.permute.xlu0 %1111
    %v1114 = vsel %vm127, %v1101, %v1109
    %v1115 = vsel %vm263, %v1114, %v1112
    %v1116 = vld [vmem:[%s15] sm:$0xff]
    %v1117 = vld [vmem:[%s15 + $0x8] sm:$0xff]
    %v1118 = vld [vmem:[%s15 + $0x10] sm:$0xff]
    %v1119 = vld [vmem:[%s16] sm:$0x1]
    %v1121 = vlaneseq
    %v1122 = vshrl.u32 %v1121, 7
    %v1123 = vsub.s32 0, %v1122
    %v1124 = vrot.slane %v1119, %v1123
    %v1127 = vsel %vm610, %v1115, 0
    %1129 = vmatprep.subr.mxu0 0.0
    %1130 = vmatpush1.msra.mxu0 0.0
    %1131 = vmatprep.subr.mxu0 0.0
    %1132 = vmatpush1.msra.mxu0 0.0
    %1133 = vmatprep.subr.mxu0 0.0
    %1134 = vmatpush1.msra.mxu0 0.0
    %1135 = vmatprep.subr.mxu0 0.0
    %1136 = vmatpush1.msra.mxu0 0.0
    %1137 = vmatprep.subr.mxu0 0.0
    %1138 = vmatpush1.msra.mxu0 0.0
    %1139 = vmatprep.subr.mxu0 0.0
    %1140 = vmatpush1.msra.mxu0 0.0
    %1141 = vmatprep.subr.mxu0 0.0
    %1142 = vmatpush1.msra.mxu0 0.0
    %1143 = vmatprep.subr.mxu0 0.0
    %1144 = vmatpush1.msra.mxu0 0.0
    %1145 = vmatprep.subr.mxu0 0.0
    %1146 = vmatpush1.msra.mxu0 0.0
    %1147 = vmatprep.subr.mxu0 0.0
    %1148 = vmatpush1.msra.mxu0 0.0
    %1149 = vmatprep.subr.mxu0 0.0
    %1150 = vmatpush1.msra.mxu0 0.0
    %1151 = vmatprep.subr.mxu0 0.0
    %1152 = vmatpush1.msra.mxu0 0.0
    %1153 = vmatprep.subr.mxu0 0.0
    %1154 = vmatpush1.msra.mxu0 0.0
    %1155 = vmatprep.subr.mxu0 0.0
    %1156 = vmatpush1.msra.mxu0 %v1118
    %1157 = vmatprep.subr.mxu0 0.0
    %1158 = vmatpush1.msra.mxu0 %v1117
    %1159 = vmatprep.subr.mxu0 0.0
    %1160 = vmatpush1.msra.mxu0 %v1116
    %1161 = vmatprep.subr.mxu0 0.0
    %1162 = vmatpush2.msra.mxu0 0.0
    %1163 = vmatprep.subr.mxu0 0.0
    %1164 = vmatpush2.msra.mxu0 0.0
    %1165 = vmatprep.subr.mxu0 0.0
    %1166 = vmatpush2.msra.mxu0 0.0
    %1167 = vmatprep.subr.mxu0 0.0
    %1168 = vmatpush2.msra.mxu0 0.0
    %1169 = vmatprep.subr.mxu0 0.0
    %1170 = vmatpush2.msra.mxu0 0.0
    %1171 = vmatprep.subr.mxu0 0.0
    %1172 = vmatpush2.msra.mxu0 0.0
    %1173 = vmatprep.subr.mxu0 0.0
    %1174 = vmatpush2.msra.mxu0 0.0
    %1175 = vmatprep.subr.mxu0 0.0
    %1176 = vmatpush2.msra.mxu0 0.0
    %1177 = vmatprep.subr.mxu0 0.0
    %1178 = vmatpush2.msra.mxu0 0.0
    %1179 = vmatprep.subr.mxu0 0.0
    %1180 = vmatpush2.msra.mxu0 0.0
    %1181 = vmatprep.subr.mxu0 0.0
    %1182 = vmatpush2.msra.mxu0 0.0
    %1183 = vmatprep.subr.mxu0 0.0
    %1184 = vmatpush2.msra.mxu0 0.0
    %1185 = vmatprep.subr.mxu0 0.0
    %1186 = vmatpush2.msra.mxu0 0.0
    %1187 = vmatprep.subr.mxu0 0.0
    %1188 = vmatpush2.msra.mxu0 0.0
    %1189 = vmatprep.subr.mxu0 0.0
    %1190 = vmatpush2.msra.mxu0 0.0
    %1191 = vmatprep.subr.mxu0 0.0
    %1192 = vmatpush2.msra.mxu0 0.0
    %1193 = vmatprep.mubr.f32.mxu0 0.0
    %1194 = vmatmul.mubr.f32.gmra.mxu0 %v1127
    %v1195 = vpop.f32.mrf.mxu0
    %v1196 = vadd.f32 %v1124, %v1195
    %v1197 = vpop.f32.mrf.mxu0
    %1198 = vdwg.mxu0
    %v1199 = vmax.f32 %v1196, 0.0
    %v1201 = vrot.slane %v1199, 4
    %v1203 = vsel %vm150, 0.0, %v1201
    %v1204 = vsel %vm1000, %v1201, 0.0
    %1206 = vrot.lane.b32.xlu0 %v1204, 8
    %v1207 = vpop.permute.xlu0 %1206
    %v1209 = vsel %vm127, %v1203, %v1207
    %v1210 = vld [vmem:[%s17] sm:$0xff]
    %v1211 = vld [vmem:[%s17 + $0x8] sm:$0xff]
    %v1212 = vld [vmem:[%s18] sm:$0x1]
    %v1214 = vlaneseq
    %v1215 = vshrl.u32 %v1214, 7
    %v1216 = vsub.s32 0, %v1215
    %v1217 = vrot.slane %v1212, %v1216
    %v1220 = vsel %vm263, %v1209, 0
    %1222 = vmatprep.subr.mxu0 0.0
    %1223 = vmatpush1.msra.mxu0 0.0
    %1224 = vmatprep.subr.mxu0 0.0
    %1225 = vmatpush1.msra.mxu0 0.0
    %1226 = vmatprep.subr.mxu0 0.0
    %1227 = vmatpush1.msra.mxu0 0.0
    %1228 = vmatprep.subr.mxu0 0.0
    %1229 = vmatpush1.msra.mxu0 0.0
    %1230 = vmatprep.subr.mxu0 0.0
    %1231 = vmatpush1.msra.mxu0 0.0
    %1232 = vmatprep.subr.mxu0 0.0
    %1233 = vmatpush1.msra.mxu0 0.0
    %1234 = vmatprep.subr.mxu0 0.0
    %1235 = vmatpush1.msra.mxu0 0.0
    %1236 = vmatprep.subr.mxu0 0.0
    %1237 = vmatpush1.msra.mxu0 0.0
    %1238 = vmatprep.subr.mxu0 0.0
    %1239 = vmatpush1.msra.mxu0 0.0
    %1240 = vmatprep.subr.mxu0 0.0
    %1241 = vmatpush1.msra.mxu0 0.0
    %1242 = vmatprep.subr.mxu0 0.0
    %1243 = vmatpush1.msra.mxu0 0.0
    %1244 = vmatprep.subr.mxu0 0.0
    %1245 = vmatpush1.msra.mxu0 0.0
    %1246 = vmatprep.subr.mxu0 0.0
    %1247 = vmatpush1.msra.mxu0 0.0
    %1248 = vmatprep.subr.mxu0 0.0
    %1249 = vmatpush1.msra.mxu0 0.0
    %1250 = vmatprep.subr.mxu0 0.0
    %1251 = vmatpush1.msra.mxu0 %v1211
    %1252 = vmatprep.subr.mxu0 0.0
    %1253 = vmatpush1.msra.mxu0 %v1210
    %1254 = vmatprep.subr.mxu0 0.0
    %1255 = vmatpush2.msra.mxu0 0.0
    %1256 = vmatprep.subr.mxu0 0.0
    %1257 = vmatpush2.msra.mxu0 0.0
    %1258 = vmatprep.subr.mxu0 0.0
    %1259 = vmatpush2.msra.mxu0 0.0
    %1260 = vmatprep.subr.mxu0 0.0
    %1261 = vmatpush2.msra.mxu0 0.0
    %1262 = vmatprep.subr.mxu0 0.0
    %1263 = vmatpush2.msra.mxu0 0.0
    %1264 = vmatprep.subr.mxu0 0.0
    %1265 = vmatpush2.msra.mxu0 0.0
    %1266 = vmatprep.subr.mxu0 0.0
    %1267 = vmatpush2.msra.mxu0 0.0
    %1268 = vmatprep.subr.mxu0 0.0
    %1269 = vmatpush2.msra.mxu0 0.0
    %1270 = vmatprep.subr.mxu0 0.0
    %1271 = vmatpush2.msra.mxu0 0.0
    %1272 = vmatprep.subr.mxu0 0.0
    %1273 = vmatpush2.msra.mxu0 0.0
    %1274 = vmatprep.subr.mxu0 0.0
    %1275 = vmatpush2.msra.mxu0 0.0
    %1276 = vmatprep.subr.mxu0 0.0
    %1277 = vmatpush2.msra.mxu0 0.0
    %1278 = vmatprep.subr.mxu0 0.0
    %1279 = vmatpush2.msra.mxu0 0.0
    %1280 = vmatprep.subr.mxu0 0.0
    %1281 = vmatpush2.msra.mxu0 0.0
    %1282 = vmatprep.subr.mxu0 0.0
    %1283 = vmatpush2.msra.mxu0 0.0
    %1284 = vmatprep.subr.mxu0 0.0
    %1285 = vmatpush2.msra.mxu0 0.0
    %1286 = vmatprep.mubr.f32.mxu0 0.0
    %1287 = vmatmul.mubr.f32.gmra.mxu0 %v1220
    %v1288 = vpop.f32.mrf.mxu0
    %v1289 = vadd.f32 %v1217, %v1288
    %v1290 = vpop.f32.mrf.mxu0
    %1291 = vdwg.mxu0
    %1292 = vrot.lane.b32.xlu0 %v1199, 120
    %v1293 = vpop.permute.xlu0 %1292
    %v1295 = vadd.f32 %v1289, %v1293
    %v1296 = vmax.f32 %v1295, 0.0
    %v1298 = vrot.slane %v1296, 1
    %1299 = vrot.lane.b32.xlu0 %v1298, 8
    %v1300 = vpop.permute.xlu0 %1299
    %v1302 = vrot.slane %v1296, 2
    %1303 = vrot.lane.b32.xlu0 %v1302, 16
    %v1304 = vpop.permute.xlu0 %1303
    %v1306 = vrot.slane %v1296, 3
    %1307 = vrot.lane.b32.xlu0 %v1306, 24
    %v1308 = vpop.permute.xlu0 %1307
    %v1310 = vrot.slane %v1296, 4
    %1311 = vrot.lane.b32.xlu0 %v1310, 32
    %v1312 = vpop.permute.xlu0 %1311
    %v1314 = vrot.slane %v1296, 5
    %1315 = vrot.lane.b32.xlu0 %v1314, 40
    %v1316 = vpop.permute.xlu0 %1315
    %v1318 = vsel %vm127, %v1296, %v1300
    %v1319 = vsel %vm263, %v1318, %v1304
    %v1320 = vsel %vm610, %v1319, %v1308
    %vm1321 = vcmask 261120
    %v1322 = vsel %vm1321, %v1320, %v1312
    %vm1323 = vcmask 326656
    %v1324 = vsel %vm1323, %v1322, %v1316
    %s1325 = scalar_lea.vmem %s0, 24
    %v1326 = vld [vmem:[%s1325] sm:$0xff]
    %v1327 = vld [vmem:[%s1325 + $0x8] sm:$0xff]
    %v1328 = vld [vmem:[%s1325 + $0x10] sm:$0xff]
    %v1332 = vrot.slane %v1326, 7
    %v1333 = vrot.slane %v1327, 7
    %v1334 = vsel %vm75, %v1332, %v1333
    %v1335 = vrot.slane %v1328, 7
    %v1336 = vsel %vm75, %v1333, %v1335
    %v1341 = vsel %vm75, 0.0, %v1332
    %v1342 = vsel %vm75, %v1335, 0.0
    %v1345 = vrot.slane %v1341, 1
    %v1346 = vrot.slane %v1334, 1
    %v1347 = vsel %vm89, %v1345, %v1346
    %v1348 = vrot.slane %v1336, 1
    %v1349 = vsel %vm89, %v1346, %v1348
    %v1350 = vrot.slane %v1342, 1
    %v1351 = vsel %vm89, %v1348, %v1350
    %1352 = vrot.lane.b32.xlu0 %v1347, 4
    %v1353 = vpop.permute.xlu0 %1352
    %1354 = vrot.lane.b32.xlu0 %v1349, 4
    %v1355 = vpop.permute.xlu0 %1354
    %1356 = vrot.lane.b32.xlu0 %v1351, 4
    %v1357 = vpop.permute.xlu0 %1356
    %v1361 = vrot.slane %v1341, 2
    %v1362 = vrot.slane %v1334, 2
    %v1363 = vsel %vm106, %v1361, %v1362
    %v1364 = vrot.slane %v1336, 2
    %v1365 = vsel %vm106, %v1362, %v1364
    %v1366 = vrot.slane %v1342, 2
    %v1367 = vsel %vm106, %v1364, %v1366
    %1368 = vrot.lane.b32.xlu0 %v1363, 8
    %v1369 = vpop.permute.xlu0 %1368
    %1370 = vrot.lane.b32.xlu0 %v1365, 8
    %v1371 = vpop.permute.xlu0 %1370
    %1372 = vrot.lane.b32.xlu0 %v1367, 8
    %v1373 = vpop.permute.xlu0 %1372
    %v1377 = vsel %vm123, %v1341, %v1353
    %v1378 = vsel %vm123, %v1334, %v1355
    %v1379 = vsel %vm123, %v1336, %v1357
    %v1380 = vsel %vm127, %v1377, %v1369
    %v1381 = vsel %vm127, %v1378, %v1371
    %v1382 = vsel %vm127, %v1379, %v1373
    %v1384 = vsel %vm140, %v1380, 0
    %v1387 = vsel %vm140, %v1381, 0
    %v1390 = vsel %vm140, %v1382, 0
    %1392 = vmatprep.subr.mxu0 0.0
    %1393 = vmatpush1.msra.mxu0 0.0
    %1394 = vmatprep.subr.mxu0 0.0
    %1395 = vmatpush1.msra.mxu0 0.0
    %1396 = vmatprep.subr.mxu0 0.0
    %1397 = vmatpush1.msra.mxu0 0.0
    %1398 = vmatprep.subr.mxu0 0.0
    %1399 = vmatpush1.msra.mxu0 0.0
    %1400 = vmatprep.subr.mxu0 0.0
    %1401 = vmatpush1.msra.mxu0 0.0
    %1402 = vmatprep.subr.mxu0 0.0
    %1403 = vmatpush1.msra.mxu0 0.0
    %1404 = vmatprep.subr.mxu0 0.0
    %1405 = vmatpush1.msra.mxu0 0.0
    %1406 = vmatprep.subr.mxu0 0.0
    %1407 = vmatpush1.msra.mxu0 0.0
    %1408 = vmatprep.subr.mxu0 0.0
    %1409 = vmatpush1.msra.mxu0 0.0
    %1410 = vmatprep.subr.mxu0 0.0
    %1411 = vmatpush1.msra.mxu0 0.0
    %1412 = vmatprep.subr.mxu0 0.0
    %1413 = vmatpush1.msra.mxu0 0.0
    %1414 = vmatprep.subr.mxu0 0.0
    %1415 = vmatpush1.msra.mxu0 0.0
    %1416 = vmatprep.subr.mxu0 0.0
    %1417 = vmatpush1.msra.mxu0 0.0
    %1418 = vmatprep.subr.mxu0 0.0
    %1419 = vmatpush1.msra.mxu0 0.0
    %1420 = vmatprep.subr.mxu0 0.0
    %1421 = vmatpush1.msra.mxu0 %v152
    %1422 = vmatprep.subr.mxu0 0.0
    %1423 = vmatpush1.msra.mxu0 %v131
    %1424 = vmatprep.subr.mxu0 0.0
    %1425 = vmatpush2.msra.mxu0 0.0
    %1426 = vmatprep.subr.mxu0 0.0
    %1427 = vmatpush2.msra.mxu0 0.0
    %1428 = vmatprep.subr.mxu0 0.0
    %1429 = vmatpush2.msra.mxu0 0.0
    %1430 = vmatprep.subr.mxu0 0.0
    %1431 = vmatpush2.msra.mxu0 0.0
    %1432 = vmatprep.subr.mxu0 0.0
    %1433 = vmatpush2.msra.mxu0 0.0
    %1434 = vmatprep.subr.mxu0 0.0
    %1435 = vmatpush2.msra.mxu0 0.0
    %1436 = vmatprep.subr.mxu0 0.0
    %1437 = vmatpush2.msra.mxu0 0.0
    %1438 = vmatprep.subr.mxu0 0.0
    %1439 = vmatpush2.msra.mxu0 0.0
    %1440 = vmatprep.subr.mxu0 0.0
    %1441 = vmatpush2.msra.mxu0 0.0
    %1442 = vmatprep.subr.mxu0 0.0
    %1443 = vmatpush2.msra.mxu0 0.0
    %1444 = vmatprep.subr.mxu0 0.0
    %1445 = vmatpush2.msra.mxu0 0.0
    %1446 = vmatprep.subr.mxu0 0.0
    %1447 = vmatpush2.msra.mxu0 0.0
    %1448 = vmatprep.subr.mxu0 0.0
    %1449 = vmatpush2.msra.mxu0 0.0
    %1450 = vmatprep.subr.mxu0 0.0
    %1451 = vmatpush2.msra.mxu0 0.0
    %1452 = vmatprep.subr.mxu0 0.0
    %1453 = vmatpush2.msra.mxu0 0.0
    %1454 = vmatprep.subr.mxu0 0.0
    %1455 = vmatpush2.msra.mxu0 0.0
    %1456 = vmatprep.mubr.f32.mxu0 0.0
    %1457 = vmatmul.mubr.f32.gmra.mxu0 %v1384
    %v1458 = vpop.f32.mrf.mxu0
    %v1459 = vadd.f32 %v138, %v1458
    %v1460 = vpop.f32.mrf.mxu0
    %1461 = vmatprep.mubr.f32.mxu0 0.0
    %1462 = vmatmul.mubr.f32.gmra.mxu0 %v1387
    %v1463 = vpop.f32.mrf.mxu0
    %v1464 = vadd.f32 %v138, %v1463
    %v1465 = vpop.f32.mrf.mxu0
    %1466 = vmatprep.mubr.f32.mxu0 0.0
    %1467 = vmatmul.mubr.f32.gmra.mxu0 %v1390
    %v1468 = vpop.f32.mrf.mxu0
    %v1469 = vadd.f32 %v138, %v1468
    %v1470 = vpop.f32.mrf.mxu0
    %1471 = vdwg.mxu0
    %v1475 = vrot.slane %v1459, 1
    %v1476 = vrot.slane %v1464, 1
    %v1477 = vsel %vm89, %v1475, %v1476
    %v1478 = vrot.slane %v1469, 1
    %v1479 = vsel %vm89, %v1476, %v1478
    %1480 = vrot.lane.b32.xlu0 %v1477, 8
    %v1481 = vpop.permute.xlu0 %1480
    %1482 = vrot.lane.b32.xlu0 %v1479, 8
    %v1483 = vpop.permute.xlu0 %1482
    %1484 = vrot.lane.b32.xlu0 %v1478, 8
    %v1485 = vpop.permute.xlu0 %1484
    %v1489 = vsel %vm127, %v1459, %v1481
    %v1490 = vsel %vm127, %v1464, %v1483
    %v1491 = vsel %vm127, %v1469, %v1485
    %v1493 = vsel %vm263, %v1489, 0
    %v1496 = vsel %vm263, %v1490, 0
    %v1499 = vsel %vm263, %v1491, 0
    %1501 = vmatprep.subr.mxu0 0.0
    %1502 = vmatpush1.msra.mxu0 0.0
    %1503 = vmatprep.subr.mxu0 0.0
    %1504 = vmatpush1.msra.mxu0 0.0
    %1505 = vmatprep.subr.mxu0 0.0
    %1506 = vmatpush1.msra.mxu0 0.0
    %1507 = vmatprep.subr.mxu0 0.0
    %1508 = vmatpush1.msra.mxu0 0.0
    %1509 = vmatprep.subr.mxu0 0.0
    %1510 = vmatpush1.msra.mxu0 0.0
    %1511 = vmatprep.subr.mxu0 0.0
    %1512 = vmatpush1.msra.mxu0 0.0
    %1513 = vmatprep.subr.mxu0 0.0
    %1514 = vmatpush1.msra.mxu0 0.0
    %1515 = vmatprep.subr.mxu0 0.0
    %1516 = vmatpush1.msra.mxu0 0.0
    %1517 = vmatprep.subr.mxu0 0.0
    %1518 = vmatpush1.msra.mxu0 0.0
    %1519 = vmatprep.subr.mxu0 0.0
    %1520 = vmatpush1.msra.mxu0 0.0
    %1521 = vmatprep.subr.mxu0 0.0
    %1522 = vmatpush1.msra.mxu0 0.0
    %1523 = vmatprep.subr.mxu0 0.0
    %1524 = vmatpush1.msra.mxu0 0.0
    %1525 = vmatprep.subr.mxu0 0.0
    %1526 = vmatpush1.msra.mxu0 0.0
    %1527 = vmatprep.subr.mxu0 0.0
    %1528 = vmatpush1.msra.mxu0 0.0
    %1529 = vmatprep.subr.mxu0 0.0
    %1530 = vmatpush1.msra.mxu0 %v255
    %1531 = vmatprep.subr.mxu0 0.0
    %1532 = vmatpush1.msra.mxu0 %v254
    %1533 = vmatprep.subr.mxu0 0.0
    %1534 = vmatpush2.msra.mxu0 0.0
    %1535 = vmatprep.subr.mxu0 0.0
    %1536 = vmatpush2.msra.mxu0 0.0
    %1537 = vmatprep.subr.mxu0 0.0
    %1538 = vmatpush2.msra.mxu0 0.0
    %1539 = vmatprep.subr.mxu0 0.0
    %1540 = vmatpush2.msra.mxu0 0.0
    %1541 = vmatprep.subr.mxu0 0.0
    %1542 = vmatpush2.msra.mxu0 0.0
    %1543 = vmatprep.subr.mxu0 0.0
    %1544 = vmatpush2.msra.mxu0 0.0
    %1545 = vmatprep.subr.mxu0 0.0
    %1546 = vmatpush2.msra.mxu0 0.0
    %1547 = vmatprep.subr.mxu0 0.0
    %1548 = vmatpush2.msra.mxu0 0.0
    %1549 = vmatprep.subr.mxu0 0.0
    %1550 = vmatpush2.msra.mxu0 0.0
    %1551 = vmatprep.subr.mxu0 0.0
    %1552 = vmatpush2.msra.mxu0 0.0
    %1553 = vmatprep.subr.mxu0 0.0
    %1554 = vmatpush2.msra.mxu0 0.0
    %1555 = vmatprep.subr.mxu0 0.0
    %1556 = vmatpush2.msra.mxu0 0.0
    %1557 = vmatprep.subr.mxu0 0.0
    %1558 = vmatpush2.msra.mxu0 0.0
    %1559 = vmatprep.subr.mxu0 0.0
    %1560 = vmatpush2.msra.mxu0 0.0
    %1561 = vmatprep.subr.mxu0 0.0
    %1562 = vmatpush2.msra.mxu0 0.0
    %1563 = vmatprep.subr.mxu0 0.0
    %1564 = vmatpush2.msra.mxu0 0.0
    %1565 = vmatprep.mubr.f32.mxu0 0.0
    %1566 = vmatmul.mubr.f32.gmra.mxu0 %v1493
    %v1567 = vpop.f32.mrf.mxu0
    %v1568 = vadd.f32 %v261, %v1567
    %v1569 = vpop.f32.mrf.mxu0
    %1570 = vmatprep.mubr.f32.mxu0 0.0
    %1571 = vmatmul.mubr.f32.gmra.mxu0 %v1496
    %v1572 = vpop.f32.mrf.mxu0
    %v1573 = vadd.f32 %v261, %v1572
    %v1574 = vpop.f32.mrf.mxu0
    %1575 = vmatprep.mubr.f32.mxu0 0.0
    %1576 = vmatmul.mubr.f32.gmra.mxu0 %v1499
    %v1577 = vpop.f32.mrf.mxu0
    %v1578 = vadd.f32 %v261, %v1577
    %v1579 = vpop.f32.mrf.mxu0
    %1580 = vdwg.mxu0
    %v1582 = vsel %vm89, %v1578, 0
    %1584 = vmatprep.subr.mxu0 0.0
    %1585 = vmatpush1.msra.mxu0 0.0
    %1586 = vmatprep.subr.mxu0 0.0
    %1587 = vmatpush1.msra.mxu0 0.0
    %1588 = vmatprep.subr.mxu0 0.0
    %1589 = vmatpush1.msra.mxu0 0.0
    %1590 = vmatprep.subr.mxu0 0.0
    %1591 = vmatpush1.msra.mxu0 0.0
    %1592 = vmatprep.subr.mxu0 0.0
    %1593 = vmatpush1.msra.mxu0 0.0
    %1594 = vmatprep.subr.mxu0 0.0
    %1595 = vmatpush1.msra.mxu0 0.0
    %1596 = vmatprep.subr.mxu0 0.0
    %1597 = vmatpush1.msra.mxu0 0.0
    %1598 = vmatprep.subr.mxu0 0.0
    %1599 = vmatpush1.msra.mxu0 0.0
    %1600 = vmatprep.subr.mxu0 0.0
    %1601 = vmatpush1.msra.mxu0 0.0
    %1602 = vmatprep.subr.mxu0 0.0
    %1603 = vmatpush1.msra.mxu0 0.0
    %1604 = vmatprep.subr.mxu0 0.0
    %1605 = vmatpush1.msra.mxu0 0.0
    %1606 = vmatprep.subr.mxu0 0.0
    %1607 = vmatpush1.msra.mxu0 0.0
    %1608 = vmatprep.subr.mxu0 0.0
    %1609 = vmatpush1.msra.mxu0 0.0
    %1610 = vmatprep.subr.mxu0 0.0
    %1611 = vmatpush1.msra.mxu0 %v1582
    %1612 = vmatprep.subr.mxu0 0.0
    %1613 = vmatpush1.msra.mxu0 %v1573
    %1614 = vmatprep.subr.mxu0 0.0
    %1615 = vmatpush1.msra.mxu0 %v1568
    %1616 = vmatprep.subr.mxu0 0.0
    %1617 = vmatpush2.msra.mxu0 0.0
    %1618 = vmatprep.subr.mxu0 0.0
    %1619 = vmatpush2.msra.mxu0 0.0
    %1620 = vmatprep.subr.mxu0 0.0
    %1621 = vmatpush2.msra.mxu0 0.0
    %1622 = vmatprep.subr.mxu0 0.0
    %1623 = vmatpush2.msra.mxu0 0.0
    %1624 = vmatprep.subr.mxu0 0.0
    %1625 = vmatpush2.msra.mxu0 0.0
    %1626 = vmatprep.subr.mxu0 0.0
    %1627 = vmatpush2.msra.mxu0 0.0
    %1628 = vmatprep.subr.mxu0 0.0
    %1629 = vmatpush2.msra.mxu0 0.0
    %1630 = vmatprep.subr.mxu0 0.0
    %1631 = vmatpush2.msra.mxu0 0.0
    %1632 = vmatprep.subr.mxu0 0.0
    %1633 = vmatpush2.msra.mxu0 0.0
    %1634 = vmatprep.subr.mxu0 0.0
    %1635 = vmatpush2.msra.mxu0 0.0
    %1636 = vmatprep.subr.mxu0 0.0
    %1637 = vmatpush2.msra.mxu0 0.0
    %1638 = vmatprep.subr.mxu0 0.0
    %1639 = vmatpush2.msra.mxu0 0.0
    %1640 = vmatprep.subr.mxu0 0.0
    %1641 = vmatpush2.msra.mxu0 0.0
    %1642 = vmatprep.subr.mxu0 0.0
    %1643 = vmatpush2.msra.mxu0 0.0
    %1644 = vmatprep.subr.mxu0 0.0
    %1645 = vmatpush2.msra.mxu0 0.0
    %1646 = vmatprep.subr.mxu0 0.0
    %1647 = vmatpush2.msra.mxu0 0.0
    %1648 = vmatprep.mubr.f32.mxu0 0.0
    %1649 = vmatmul.mubr.f32.gmra.mxu0 %v366
    %v1650 = vpop.f32.mrf.mxu0
    %v1651 = vadd.f32 0.0, %v1650
    %v1652 = vpop.f32.mrf.mxu0
    %1653 = vmatprep.mubr.f32.mxu0 0.0
    %1654 = vmatmul.mubr.f32.gmra.mxu0 %v369
    %v1655 = vpop.f32.mrf.mxu0
    %v1656 = vadd.f32 0.0, %v1655
    %v1657 = vpop.f32.mrf.mxu0
    %1658 = vdwg.mxu0
    %v1659 = vmax.f32 %v1651, 0.0
    %v1660 = vmax.f32 %v1656, 0.0
    %v1661 = vsel %vm150, %v1660, 0.0
    %v1664 = vrot.slane %v1659, 1
    %v1665 = vrot.slane %v1661, 1
    %v1666 = vsel %vm89, %v1664, %v1665
    %1667 = vrot.lane.b32.xlu0 %v1666, 8
    %v1668 = vpop.permute.xlu0 %1667
    %1669 = vrot.lane.b32.xlu0 %v1665, 8
    %v1670 = vpop.permute.xlu0 %1669
    %v1673 = vsel %vm127, %v1659, %v1668
    %v1674 = vsel %vm127, %v1661, %v1670
    %v1676 = vsel %vm263, %v1673, 0
    %v1679 = vsel %vm263, %v1674, 0
    %1681 = vmatprep.subr.mxu0 0.0
    %1682 = vmatpush1.msra.mxu0 0.0
    %1683 = vmatprep.subr.mxu0 0.0
    %1684 = vmatpush1.msra.mxu0 0.0
    %1685 = vmatprep.subr.mxu0 0.0
    %1686 = vmatpush1.msra.mxu0 0.0
    %1687 = vmatprep.subr.mxu0 0.0
    %1688 = vmatpush1.msra.mxu0 0.0
    %1689 = vmatprep.subr.mxu0 0.0
    %1690 = vmatpush1.msra.mxu0 0.0
    %1691 = vmatprep.subr.mxu0 0.0
    %1692 = vmatpush1.msra.mxu0 0.0
    %1693 = vmatprep.subr.mxu0 0.0
    %1694 = vmatpush1.msra.mxu0 0.0
    %1695 = vmatprep.subr.mxu0 0.0
    %1696 = vmatpush1.msra.mxu0 0.0
    %1697 = vmatprep.subr.mxu0 0.0
    %1698 = vmatpush1.msra.mxu0 0.0
    %1699 = vmatprep.subr.mxu0 0.0
    %1700 = vmatpush1.msra.mxu0 0.0
    %1701 = vmatprep.subr.mxu0 0.0
    %1702 = vmatpush1.msra.mxu0 0.0
    %1703 = vmatprep.subr.mxu0 0.0
    %1704 = vmatpush1.msra.mxu0 0.0
    %1705 = vmatprep.subr.mxu0 0.0
    %1706 = vmatpush1.msra.mxu0 0.0
    %1707 = vmatprep.subr.mxu0 0.0
    %1708 = vmatpush1.msra.mxu0 0.0
    %1709 = vmatprep.subr.mxu0 0.0
    %1710 = vmatpush1.msra.mxu0 %v466
    %1711 = vmatprep.subr.mxu0 0.0
    %1712 = vmatpush1.msra.mxu0 %v465
    %1713 = vmatprep.subr.mxu0 0.0
    %1714 = vmatpush2.msra.mxu0 0.0
    %1715 = vmatprep.subr.mxu0 0.0
    %1716 = vmatpush2.msra.mxu0 0.0
    %1717 = vmatprep.subr.mxu0 0.0
    %1718 = vmatpush2.msra.mxu0 0.0
    %1719 = vmatprep.subr.mxu0 0.0
    %1720 = vmatpush2.msra.mxu0 0.0
    %1721 = vmatprep.subr.mxu0 0.0
    %1722 = vmatpush2.msra.mxu0 0.0
    %1723 = vmatprep.subr.mxu0 0.0
    %1724 = vmatpush2.msra.mxu0 0.0
    %1725 = vmatprep.subr.mxu0 0.0
    %1726 = vmatpush2.msra.mxu0 0.0
    %1727 = vmatprep.subr.mxu0 0.0
    %1728 = vmatpush2.msra.mxu0 0.0
    %1729 = vmatprep.subr.mxu0 0.0
    %1730 = vmatpush2.msra.mxu0 0.0
    %1731 = vmatprep.subr.mxu0 0.0
    %1732 = vmatpush2.msra.mxu0 0.0
    %1733 = vmatprep.subr.mxu0 0.0
    %1734 = vmatpush2.msra.mxu0 0.0
    %1735 = vmatprep.subr.mxu0 0.0
    %1736 = vmatpush2.msra.mxu0 0.0
    %1737 = vmatprep.subr.mxu0 0.0
    %1738 = vmatpush2.msra.mxu0 0.0
    %1739 = vmatprep.subr.mxu0 0.0
    %1740 = vmatpush2.msra.mxu0 0.0
    %1741 = vmatprep.subr.mxu0 0.0
    %1742 = vmatpush2.msra.mxu0 0.0
    %1743 = vmatprep.subr.mxu0 0.0
    %1744 = vmatpush2.msra.mxu0 0.0
    %1745 = vmatprep.mubr.f32.mxu0 0.0
    %1746 = vmatmul.mubr.f32.gmra.mxu0 %v1676
    %v1747 = vpop.f32.mrf.mxu0
    %v1748 = vadd.f32 %v472, %v1747
    %v1749 = vpop.f32.mrf.mxu0
    %1750 = vmatprep.mubr.f32.mxu0 0.0
    %1751 = vmatmul.mubr.f32.gmra.mxu0 %v1679
    %v1752 = vpop.f32.mrf.mxu0
    %v1753 = vadd.f32 %v472, %v1752
    %v1754 = vpop.f32.mrf.mxu0
    %1755 = vdwg.mxu0
    %1757 = vrot.lane.b32.xlu0 %v1659, 120
    %v1758 = vpop.permute.xlu0 %1757
    %1759 = vrot.lane.b32.xlu0 %v1660, 120
    %v1760 = vpop.permute.xlu0 %1759
    %v1763 = vadd.f32 %v1748, %v1758
    %v1764 = vadd.f32 %v1753, %v1760
    %v1765 = vmax.f32 %v1763, 0.0
    %v1766 = vmax.f32 %v1764, 0.0
    %v1769 = vrot.slane %v1765, 7
    %v1770 = vrot.slane %v1766, 7
    %v1771 = vsel %vm75, %v1769, %v1770
    %v1774 = vsel %vm75, 0.0, %v1769
    %v1775 = vsel %vm574, %v1771, 0.0
    %v1778 = vrot.slane %v1774, 1
    %v1779 = vrot.slane %v1775, 1
    %v1780 = vsel %vm89, %v1778, %v1779
    %1781 = vrot.lane.b32.xlu0 %v1780, 8
    %v1782 = vpop.permute.xlu0 %1781
    %1783 = vrot.lane.b32.xlu0 %v1779, 8
    %v1784 = vpop.permute.xlu0 %1783
    %v1787 = vrot.slane %v1774, 2
    %v1788 = vrot.slane %v1775, 2
    %v1789 = vsel %vm106, %v1787, %v1788
    %1790 = vrot.lane.b32.xlu0 %v1789, 16
    %v1791 = vpop.permute.xlu0 %1790
    %1792 = vrot.lane.b32.xlu0 %v1788, 16
    %v1793 = vpop.permute.xlu0 %1792
    %v1796 = vsel %vm127, %v1774, %v1782
    %v1797 = vsel %vm127, %v1775, %v1784
    %v1798 = vsel %vm263, %v1796, %v1791
    %v1799 = vsel %vm263, %v1797, %v1793
    %v1801 = vsel %vm610, %v1798, 0
    %v1804 = vsel %vm610, %v1799, 0
    %1806 = vmatprep.subr.mxu0 0.0
    %1807 = vmatpush1.msra.mxu0 0.0
    %1808 = vmatprep.subr.mxu0 0.0
    %1809 = vmatpush1.msra.mxu0 0.0
    %1810 = vmatprep.subr.mxu0 0.0
    %1811 = vmatpush1.msra.mxu0 0.0
    %1812 = vmatprep.subr.mxu0 0.0
    %1813 = vmatpush1.msra.mxu0 0.0
    %1814 = vmatprep.subr.mxu0 0.0
    %1815 = vmatpush1.msra.mxu0 0.0
    %1816 = vmatprep.subr.mxu0 0.0
    %1817 = vmatpush1.msra.mxu0 0.0
    %1818 = vmatprep.subr.mxu0 0.0
    %1819 = vmatpush1.msra.mxu0 0.0
    %1820 = vmatprep.subr.mxu0 0.0
    %1821 = vmatpush1.msra.mxu0 0.0
    %1822 = vmatprep.subr.mxu0 0.0
    %1823 = vmatpush1.msra.mxu0 0.0
    %1824 = vmatprep.subr.mxu0 0.0
    %1825 = vmatpush1.msra.mxu0 0.0
    %1826 = vmatprep.subr.mxu0 0.0
    %1827 = vmatpush1.msra.mxu0 0.0
    %1828 = vmatprep.subr.mxu0 0.0
    %1829 = vmatpush1.msra.mxu0 0.0
    %1830 = vmatprep.subr.mxu0 0.0
    %1831 = vmatpush1.msra.mxu0 0.0
    %1832 = vmatprep.subr.mxu0 0.0
    %1833 = vmatpush1.msra.mxu0 %v602
    %1834 = vmatprep.subr.mxu0 0.0
    %1835 = vmatpush1.msra.mxu0 %v601
    %1836 = vmatprep.subr.mxu0 0.0
    %1837 = vmatpush1.msra.mxu0 %v600
    %1838 = vmatprep.subr.mxu0 0.0
    %1839 = vmatpush2.msra.mxu0 0.0
    %1840 = vmatprep.subr.mxu0 0.0
    %1841 = vmatpush2.msra.mxu0 0.0
    %1842 = vmatprep.subr.mxu0 0.0
    %1843 = vmatpush2.msra.mxu0 0.0
    %1844 = vmatprep.subr.mxu0 0.0
    %1845 = vmatpush2.msra.mxu0 0.0
    %1846 = vmatprep.subr.mxu0 0.0
    %1847 = vmatpush2.msra.mxu0 0.0
    %1848 = vmatprep.subr.mxu0 0.0
    %1849 = vmatpush2.msra.mxu0 0.0
    %1850 = vmatprep.subr.mxu0 0.0
    %1851 = vmatpush2.msra.mxu0 0.0
    %1852 = vmatprep.subr.mxu0 0.0
    %1853 = vmatpush2.msra.mxu0 0.0
    %1854 = vmatprep.subr.mxu0 0.0
    %1855 = vmatpush2.msra.mxu0 0.0
    %1856 = vmatprep.subr.mxu0 0.0
    %1857 = vmatpush2.msra.mxu0 0.0
    %1858 = vmatprep.subr.mxu0 0.0
    %1859 = vmatpush2.msra.mxu0 0.0
    %1860 = vmatprep.subr.mxu0 0.0
    %1861 = vmatpush2.msra.mxu0 0.0
    %1862 = vmatprep.subr.mxu0 0.0
    %1863 = vmatpush2.msra.mxu0 0.0
    %1864 = vmatprep.subr.mxu0 0.0
    %1865 = vmatpush2.msra.mxu0 0.0
    %1866 = vmatprep.subr.mxu0 0.0
    %1867 = vmatpush2.msra.mxu0 0.0
    %1868 = vmatprep.subr.mxu0 0.0
    %1869 = vmatpush2.msra.mxu0 0.0
    %1870 = vmatprep.mubr.f32.mxu0 0.0
    %1871 = vmatmul.mubr.f32.gmra.mxu0 %v1801
    %v1872 = vpop.f32.mrf.mxu0
    %v1873 = vadd.f32 %v608, %v1872
    %v1874 = vpop.f32.mrf.mxu0
    %1875 = vmatprep.mubr.f32.mxu0 0.0
    %1876 = vmatmul.mubr.f32.gmra.mxu0 %v1804
    %v1877 = vpop.f32.mrf.mxu0
    %v1878 = vadd.f32 %v608, %v1877
    %v1879 = vpop.f32.mrf.mxu0
    %1880 = vdwg.mxu0
    %v1881 = vmax.f32 %v1873, 0.0
    %v1882 = vmax.f32 %v1878, 0.0
    %v1885 = vrot.slane %v1881, 7
    %v1886 = vrot.slane %v1882, 7
    %v1887 = vsel %vm75, %v1885, %v1886
    %v1890 = vsel %vm75, 0.0, %v1885
    %v1891 = vsel %vm574, %v1887, 0.0
    %v1894 = vrot.slane %v1890, 2
    %v1895 = vrot.slane %v1891, 2
    %v1896 = vsel %vm106, %v1894, %v1895
    %1897 = vrot.lane.b32.xlu0 %v1896, 8
    %v1898 = vpop.permute.xlu0 %1897
    %1899 = vrot.lane.b32.xlu0 %v1895, 8
    %v1900 = vpop.permute.xlu0 %1899
    %v1903 = vsel %vm127, %v1890, %v1898
    %v1904 = vsel %vm127, %v1891, %v1900
    %v1906 = vsel %vm263, %v1903, 0
    %v1909 = vsel %vm263, %v1904, 0
    %1911 = vmatprep.subr.mxu0 0.0
    %1912 = vmatpush1.msra.mxu0 0.0
    %1913 = vmatprep.subr.mxu0 0.0
    %1914 = vmatpush1.msra.mxu0 0.0
    %1915 = vmatprep.subr.mxu0 0.0
    %1916 = vmatpush1.msra.mxu0 0.0
    %1917 = vmatprep.subr.mxu0 0.0
    %1918 = vmatpush1.msra.mxu0 0.0
    %1919 = vmatprep.subr.mxu0 0.0
    %1920 = vmatpush1.msra.mxu0 0.0
    %1921 = vmatprep.subr.mxu0 0.0
    %1922 = vmatpush1.msra.mxu0 0.0
    %1923 = vmatprep.subr.mxu0 0.0
    %1924 = vmatpush1.msra.mxu0 0.0
    %1925 = vmatprep.subr.mxu0 0.0
    %1926 = vmatpush1.msra.mxu0 0.0
    %1927 = vmatprep.subr.mxu0 0.0
    %1928 = vmatpush1.msra.mxu0 0.0
    %1929 = vmatprep.subr.mxu0 0.0
    %1930 = vmatpush1.msra.mxu0 0.0
    %1931 = vmatprep.subr.mxu0 0.0
    %1932 = vmatpush1.msra.mxu0 0.0
    %1933 = vmatprep.subr.mxu0 0.0
    %1934 = vmatpush1.msra.mxu0 0.0
    %1935 = vmatprep.subr.mxu0 0.0
    %1936 = vmatpush1.msra.mxu0 0.0
    %1937 = vmatprep.subr.mxu0 0.0
    %1938 = vmatpush1.msra.mxu0 0.0
    %1939 = vmatprep.subr.mxu0 0.0
    %1940 = vmatpush1.msra.mxu0 %v717
    %1941 = vmatprep.subr.mxu0 0.0
    %1942 = vmatpush1.msra.mxu0 %v716
    %1943 = vmatprep.subr.mxu0 0.0
    %1944 = vmatpush2.msra.mxu0 0.0
    %1945 = vmatprep.subr.mxu0 0.0
    %1946 = vmatpush2.msra.mxu0 0.0
    %1947 = vmatprep.subr.mxu0 0.0
    %1948 = vmatpush2.msra.mxu0 0.0
    %1949 = vmatprep.subr.mxu0 0.0
    %1950 = vmatpush2.msra.mxu0 0.0
    %1951 = vmatprep.subr.mxu0 0.0
    %1952 = vmatpush2.msra.mxu0 0.0
    %1953 = vmatprep.subr.mxu0 0.0
    %1954 = vmatpush2.msra.mxu0 0.0
    %1955 = vmatprep.subr.mxu0 0.0
    %1956 = vmatpush2.msra.mxu0 0.0
    %1957 = vmatprep.subr.mxu0 0.0
    %1958 = vmatpush2.msra.mxu0 0.0
    %1959 = vmatprep.subr.mxu0 0.0
    %1960 = vmatpush2.msra.mxu0 0.0
    %1961 = vmatprep.subr.mxu0 0.0
    %1962 = vmatpush2.msra.mxu0 0.0
    %1963 = vmatprep.subr.mxu0 0.0
    %1964 = vmatpush2.msra.mxu0 0.0
    %1965 = vmatprep.subr.mxu0 0.0
    %1966 = vmatpush2.msra.mxu0 0.0
    %1967 = vmatprep.subr.mxu0 0.0
    %1968 = vmatpush2.msra.mxu0 0.0
    %1969 = vmatprep.subr.mxu0 0.0
    %1970 = vmatpush2.msra.mxu0 0.0
    %1971 = vmatprep.subr.mxu0 0.0
    %1972 = vmatpush2.msra.mxu0 0.0
    %1973 = vmatprep.subr.mxu0 0.0
    %1974 = vmatpush2.msra.mxu0 0.0
    %1975 = vmatprep.mubr.f32.mxu0 0.0
    %1976 = vmatmul.mubr.f32.gmra.mxu0 %v1906
    %v1977 = vpop.f32.mrf.mxu0
    %v1978 = vadd.f32 %v723, %v1977
    %v1979 = vpop.f32.mrf.mxu0
    %1980 = vmatprep.mubr.f32.mxu0 0.0
    %1981 = vmatmul.mubr.f32.gmra.mxu0 %v1909
    %v1982 = vpop.f32.mrf.mxu0
    %v1983 = vadd.f32 %v723, %v1982
    %v1984 = vpop.f32.mrf.mxu0
    %1985 = vdwg.mxu0
    %1986 = vrot.lane.b32.xlu0 %v1881, 120
    %v1987 = vpop.permute.xlu0 %1986
    %1988 = vrot.lane.b32.xlu0 %v1882, 120
    %v1989 = vpop.permute.xlu0 %1988
    %v1992 = vadd.f32 %v1978, %v1987
    %v1993 = vadd.f32 %v1983, %v1989
    %v1994 = vmax.f32 %v1992, 0.0
    %v1995 = vmax.f32 %v1993, 0.0
    %v1998 = vrot.slane %v1994, 1
    %v1999 = vrot.slane %v1995, 1
    %v2000 = vsel %vm89, %v1998, %v1999
    %2001 = vrot.lane.b32.xlu0 %v2000, 8
    %v2002 = vpop.permute.xlu0 %2001
    %2003 = vrot.lane.b32.xlu0 %v1999, 8
    %v2004 = vpop.permute.xlu0 %2003
    %v2007 = vsel %vm127, %v1994, %v2002
    %v2008 = vsel %vm127, %v1995, %v2004
    %v2010 = vsel %vm263, %v2007, 0
    %v2013 = vsel %vm263, %v2008, 0
    %2015 = vmatprep.subr.mxu0 0.0
    %2016 = vmatpush1.msra.mxu0 0.0
    %2017 = vmatprep.subr.mxu0 0.0
    %2018 = vmatpush1.msra.mxu0 0.0
    %2019 = vmatprep.subr.mxu0 0.0
    %2020 = vmatpush1.msra.mxu0 0.0
    %2021 = vmatprep.subr.mxu0 0.0
    %2022 = vmatpush1.msra.mxu0 0.0
    %2023 = vmatprep.subr.mxu0 0.0
    %2024 = vmatpush1.msra.mxu0 0.0
    %2025 = vmatprep.subr.mxu0 0.0
    %2026 = vmatpush1.msra.mxu0 0.0
    %2027 = vmatprep.subr.mxu0 0.0
    %2028 = vmatpush1.msra.mxu0 0.0
    %2029 = vmatprep.subr.mxu0 0.0
    %2030 = vmatpush1.msra.mxu0 0.0
    %2031 = vmatprep.subr.mxu0 0.0
    %2032 = vmatpush1.msra.mxu0 0.0
    %2033 = vmatprep.subr.mxu0 0.0
    %2034 = vmatpush1.msra.mxu0 0.0
    %2035 = vmatprep.subr.mxu0 0.0
    %2036 = vmatpush1.msra.mxu0 0.0
    %2037 = vmatprep.subr.mxu0 0.0
    %2038 = vmatpush1.msra.mxu0 0.0
    %2039 = vmatprep.subr.mxu0 0.0
    %2040 = vmatpush1.msra.mxu0 0.0
    %2041 = vmatprep.subr.mxu0 0.0
    %2042 = vmatpush1.msra.mxu0 0.0
    %2043 = vmatprep.subr.mxu0 0.0
    %2044 = vmatpush1.msra.mxu0 %v830
    %2045 = vmatprep.subr.mxu0 0.0
    %2046 = vmatpush1.msra.mxu0 %v829
    %2047 = vmatprep.subr.mxu0 0.0
    %2048 = vmatpush2.msra.mxu0 0.0
    %2049 = vmatprep.subr.mxu0 0.0
    %2050 = vmatpush2.msra.mxu0 0.0
    %2051 = vmatprep.subr.mxu0 0.0
    %2052 = vmatpush2.msra.mxu0 0.0
    %2053 = vmatprep.subr.mxu0 0.0
    %2054 = vmatpush2.msra.mxu0 0.0
    %2055 = vmatprep.subr.mxu0 0.0
    %2056 = vmatpush2.msra.mxu0 0.0
    %2057 = vmatprep.subr.mxu0 0.0
    %2058 = vmatpush2.msra.mxu0 0.0
    %2059 = vmatprep.subr.mxu0 0.0
    %2060 = vmatpush2.msra.mxu0 0.0
    %2061 = vmatprep.subr.mxu0 0.0
    %2062 = vmatpush2.msra.mxu0 0.0
    %2063 = vmatprep.subr.mxu0 0.0
    %2064 = vmatpush2.msra.mxu0 0.0
    %2065 = vmatprep.subr.mxu0 0.0
    %2066 = vmatpush2.msra.mxu0 0.0
    %2067 = vmatprep.subr.mxu0 0.0
    %2068 = vmatpush2.msra.mxu0 0.0
    %2069 = vmatprep.subr.mxu0 0.0
    %2070 = vmatpush2.msra.mxu0 0.0
    %2071 = vmatprep.subr.mxu0 0.0
    %2072 = vmatpush2.msra.mxu0 0.0
    %2073 = vmatprep.subr.mxu0 0.0
    %2074 = vmatpush2.msra.mxu0 0.0
    %2075 = vmatprep.subr.mxu0 0.0
    %2076 = vmatpush2.msra.mxu0 0.0
    %2077 = vmatprep.subr.mxu0 0.0
    %2078 = vmatpush2.msra.mxu0 0.0
    %2079 = vmatprep.mubr.f32.mxu0 0.0
    %2080 = vmatmul.mubr.f32.gmra.mxu0 %v2010
    %v2081 = vpop.f32.mrf.mxu0
    %v2082 = vadd.f32 %v836, %v2081
    %v2083 = vpop.f32.mrf.mxu0
    %2084 = vmatprep.mubr.f32.mxu0 0.0
    %2085 = vmatmul.mubr.f32.gmra.mxu0 %v2013
    %v2086 = vpop.f32.mrf.mxu0
    %v2087 = vadd.f32 %v836, %v2086
    %v2088 = vpop.f32.mrf.mxu0
    %2089 = vdwg.mxu0
    %v2091 = vsel %vm922, %v2087, 0
    %2093 = vmatprep.subr.mxu0 0.0
    %2094 = vmatpush1.msra.mxu0 0.0
    %2095 = vmatprep.subr.mxu0 0.0
    %2096 = vmatpush1.msra.mxu0 0.0
    %2097 = vmatprep.subr.mxu0 0.0
    %2098 = vmatpush1.msra.mxu0 0.0
    %2099 = vmatprep.subr.mxu0 0.0
    %2100 = vmatpush1.msra.mxu0 0.0
    %2101 = vmatprep.subr.mxu0 0.0
    %2102 = vmatpush1.msra.mxu0 0.0
    %2103 = vmatprep.subr.mxu0 0.0
    %2104 = vmatpush1.msra.mxu0 0.0
    %2105 = vmatprep.subr.mxu0 0.0
    %2106 = vmatpush1.msra.mxu0 0.0
    %2107 = vmatprep.subr.mxu0 0.0
    %2108 = vmatpush1.msra.mxu0 0.0
    %2109 = vmatprep.subr.mxu0 0.0
    %2110 = vmatpush1.msra.mxu0 0.0
    %2111 = vmatprep.subr.mxu0 0.0
    %2112 = vmatpush1.msra.mxu0 0.0
    %2113 = vmatprep.subr.mxu0 0.0
    %2114 = vmatpush1.msra.mxu0 0.0
    %2115 = vmatprep.subr.mxu0 0.0
    %2116 = vmatpush1.msra.mxu0 0.0
    %2117 = vmatprep.subr.mxu0 0.0
    %2118 = vmatpush1.msra.mxu0 0.0
    %2119 = vmatprep.subr.mxu0 0.0
    %2120 = vmatpush1.msra.mxu0 0.0
    %2121 = vmatprep.subr.mxu0 0.0
    %2122 = vmatpush1.msra.mxu0 %v2091
    %2123 = vmatprep.subr.mxu0 0.0
    %2124 = vmatpush1.msra.mxu0 %v2082
    %2125 = vmatprep.subr.mxu0 0.0
    %2126 = vmatpush2.msra.mxu0 0.0
    %2127 = vmatprep.subr.mxu0 0.0
    %2128 = vmatpush2.msra.mxu0 0.0
    %2129 = vmatprep.subr.mxu0 0.0
    %2130 = vmatpush2.msra.mxu0 0.0
    %2131 = vmatprep.subr.mxu0 0.0
    %2132 = vmatpush2.msra.mxu0 0.0
    %2133 = vmatprep.subr.mxu0 0.0
    %2134 = vmatpush2.msra.mxu0 0.0
    %2135 = vmatprep.subr.mxu0 0.0
    %2136 = vmatpush2.msra.mxu0 0.0
    %2137 = vmatprep.subr.mxu0 0.0
    %2138 = vmatpush2.msra.mxu0 0.0
    %2139 = vmatprep.subr.mxu0 0.0
    %2140 = vmatpush2.msra.mxu0 0.0
    %2141 = vmatprep.subr.mxu0 0.0
    %2142 = vmatpush2.msra.mxu0 0.0
    %2143 = vmatprep.subr.mxu0 0.0
    %2144 = vmatpush2.msra.mxu0 0.0
    %2145 = vmatprep.subr.mxu0 0.0
    %2146 = vmatpush2.msra.mxu0 0.0
    %2147 = vmatprep.subr.mxu0 0.0
    %2148 = vmatpush2.msra.mxu0 0.0
    %2149 = vmatprep.subr.mxu0 0.0
    %2150 = vmatpush2.msra.mxu0 0.0
    %2151 = vmatprep.subr.mxu0 0.0
    %2152 = vmatpush2.msra.mxu0 0.0
    %2153 = vmatprep.subr.mxu0 0.0
    %2154 = vmatpush2.msra.mxu0 0.0
    %2155 = vmatprep.subr.mxu0 0.0
    %2156 = vmatpush2.msra.mxu0 0.0
    %2157 = vmatprep.mubr.f32.mxu0 0.0
    %2158 = vmatmul.mubr.f32.gmra.mxu0 %v920
    %v2159 = vpop.f32.mrf.mxu0
    %v2160 = vadd.f32 0.0, %v2159
    %v2161 = vpop.f32.mrf.mxu0
    %2162 = vdwg.mxu0
    %v2163 = vmax.f32 %v2160, 0.0
    %v2165 = vrot.slane %v2163, 6
    %v2167 = vsel %vm1000, 0.0, %v2165
    %v2169 = vrot.slane %v2167, 4
    %v2170 = vsel %vm150, %v2169, %v1005
    %2171 = vrot.lane.b32.xlu0 %v2170, 8
    %v2172 = vpop.permute.xlu0 %2171
    %v2174 = vsel %vm127, %v2167, %v2172
    %v2176 = vsel %vm263, %v2174, 0
    %2178 = vmatprep.subr.mxu0 0.0
    %2179 = vmatpush1.msra.mxu0 0.0
    %2180 = vmatprep.subr.mxu0 0.0
    %2181 = vmatpush1.msra.mxu0 0.0
    %2182 = vmatprep.subr.mxu0 0.0
    %2183 = vmatpush1.msra.mxu0 0.0
    %2184 = vmatprep.subr.mxu0 0.0
    %2185 = vmatpush1.msra.mxu0 0.0
    %2186 = vmatprep.subr.mxu0 0.0
    %2187 = vmatpush1.msra.mxu0 0.0
    %2188 = vmatprep.subr.mxu0 0.0
    %2189 = vmatpush1.msra.mxu0 0.0
    %2190 = vmatprep.subr.mxu0 0.0
    %2191 = vmatpush1.msra.mxu0 0.0
    %2192 = vmatprep.subr.mxu0 0.0
    %2193 = vmatpush1.msra.mxu0 0.0
    %2194 = vmatprep.subr.mxu0 0.0
    %2195 = vmatpush1.msra.mxu0 0.0
    %2196 = vmatprep.subr.mxu0 0.0
    %2197 = vmatpush1.msra.mxu0 0.0
    %2198 = vmatprep.subr.mxu0 0.0
    %2199 = vmatpush1.msra.mxu0 0.0
    %2200 = vmatprep.subr.mxu0 0.0
    %2201 = vmatpush1.msra.mxu0 0.0
    %2202 = vmatprep.subr.mxu0 0.0
    %2203 = vmatpush1.msra.mxu0 0.0
    %2204 = vmatprep.subr.mxu0 0.0
    %2205 = vmatpush1.msra.mxu0 0.0
    %2206 = vmatprep.subr.mxu0 0.0
    %2207 = vmatpush1.msra.mxu0 %v1012
    %2208 = vmatprep.subr.mxu0 0.0
    %2209 = vmatpush1.msra.mxu0 %v1011
    %2210 = vmatprep.subr.mxu0 0.0
    %2211 = vmatpush2.msra.mxu0 0.0
    %2212 = vmatprep.subr.mxu0 0.0
    %2213 = vmatpush2.msra.mxu0 0.0
    %2214 = vmatprep.subr.mxu0 0.0
    %2215 = vmatpush2.msra.mxu0 0.0
    %2216 = vmatprep.subr.mxu0 0.0
    %2217 = vmatpush2.msra.mxu0 0.0
    %2218 = vmatprep.subr.mxu0 0.0
    %2219 = vmatpush2.msra.mxu0 0.0
    %2220 = vmatprep.subr.mxu0 0.0
    %2221 = vmatpush2.msra.mxu0 0.0
    %2222 = vmatprep.subr.mxu0 0.0
    %2223 = vmatpush2.msra.mxu0 0.0
    %2224 = vmatprep.subr.mxu0 0.0
    %2225 = vmatpush2.msra.mxu0 0.0
    %2226 = vmatprep.subr.mxu0 0.0
    %2227 = vmatpush2.msra.mxu0 0.0
    %2228 = vmatprep.subr.mxu0 0.0
    %2229 = vmatpush2.msra.mxu0 0.0
    %2230 = vmatprep.subr.mxu0 0.0
    %2231 = vmatpush2.msra.mxu0 0.0
    %2232 = vmatprep.subr.mxu0 0.0
    %2233 = vmatpush2.msra.mxu0 0.0
    %2234 = vmatprep.subr.mxu0 0.0
    %2235 = vmatpush2.msra.mxu0 0.0
    %2236 = vmatprep.subr.mxu0 0.0
    %2237 = vmatpush2.msra.mxu0 0.0
    %2238 = vmatprep.subr.mxu0 0.0
    %2239 = vmatpush2.msra.mxu0 0.0
    %2240 = vmatprep.subr.mxu0 0.0
    %2241 = vmatpush2.msra.mxu0 0.0
    %2242 = vmatprep.mubr.f32.mxu0 0.0
    %2243 = vmatmul.mubr.f32.gmra.mxu0 %v2176
    %v2244 = vpop.f32.mrf.mxu0
    %v2245 = vadd.f32 %v1018, %v2244
    %v2246 = vpop.f32.mrf.mxu0
    %2247 = vdwg.mxu0
    %2248 = vrot.lane.b32.xlu0 %v2163, 120
    %v2249 = vpop.permute.xlu0 %2248
    %v2251 = vadd.f32 %v2245, %v2249
    %v2252 = vmax.f32 %v2251, 0.0
    %v2254 = vrot.slane %v2252, 4
    %v2256 = vsel %vm150, 0.0, %v2254
    %v2257 = vsel %vm1000, %v2254, 0.0
    %v2260 = vrot.slane %v2256, 4
    %v2261 = vrot.slane %v2257, 4
    %v2262 = vsel %vm150, %v2260, %v2261
    %2263 = vrot.lane.b32.xlu0 %v2262, 8
    %v2264 = vpop.permute.xlu0 %2263
    %2266 = vrot.lane.b32.xlu0 %v2257, 16
    %v2267 = vpop.permute.xlu0 %2266
    %v2269 = vsel %vm127, %v2256, %v2264
    %v2270 = vsel %vm263, %v2269, %v2267
    %v2272 = vsel %vm610, %v2270, 0
    %2274 = vmatprep.subr.mxu0 0.0
    %2275 = vmatpush1.msra.mxu0 0.0
    %2276 = vmatprep.subr.mxu0 0.0
    %2277 = vmatpush1.msra.mxu0 0.0
    %2278 = vmatprep.subr.mxu0 0.0
    %2279 = vmatpush1.msra.mxu0 0.0
    %2280 = vmatprep.subr.mxu0 0.0
    %2281 = vmatpush1.msra.mxu0 0.0
    %2282 = vmatprep.subr.mxu0 0.0
    %2283 = vmatpush1.msra.mxu0 0.0
    %2284 = vmatprep.subr.mxu0 0.0
    %2285 = vmatpush1.msra.mxu0 0.0
    %2286 = vmatprep.subr.mxu0 0.0
    %2287 = vmatpush1.msra.mxu0 0.0
    %2288 = vmatprep.subr.mxu0 0.0
    %2289 = vmatpush1.msra.mxu0 0.0
    %2290 = vmatprep.subr.mxu0 0.0
    %2291 = vmatpush1.msra.mxu0 0.0
    %2292 = vmatprep.subr.mxu0 0.0
    %2293 = vmatpush1.msra.mxu0 0.0
    %2294 = vmatprep.subr.mxu0 0.0
    %2295 = vmatpush1.msra.mxu0 0.0
    %2296 = vmatprep.subr.mxu0 0.0
    %2297 = vmatpush1.msra.mxu0 0.0
    %2298 = vmatprep.subr.mxu0 0.0
    %2299 = vmatpush1.msra.mxu0 0.0
    %2300 = vmatprep.subr.mxu0 0.0
    %2301 = vmatpush1.msra.mxu0 %v1118
    %2302 = vmatprep.subr.mxu0 0.0
    %2303 = vmatpush1.msra.mxu0 %v1117
    %2304 = vmatprep.subr.mxu0 0.0
    %2305 = vmatpush1.msra.mxu0 %v1116
    %2306 = vmatprep.subr.mxu0 0.0
    %2307 = vmatpush2.msra.mxu0 0.0
    %2308 = vmatprep.subr.mxu0 0.0
    %2309 = vmatpush2.msra.mxu0 0.0
    %2310 = vmatprep.subr.mxu0 0.0
    %2311 = vmatpush2.msra.mxu0 0.0
    %2312 = vmatprep.subr.mxu0 0.0
    %2313 = vmatpush2.msra.mxu0 0.0
    %2314 = vmatprep.subr.mxu0 0.0
    %2315 = vmatpush2.msra.mxu0 0.0
    %2316 = vmatprep.subr.mxu0 0.0
    %2317 = vmatpush2.msra.mxu0 0.0
    %2318 = vmatprep.subr.mxu0 0.0
    %2319 = vmatpush2.msra.mxu0 0.0
    %2320 = vmatprep.subr.mxu0 0.0
    %2321 = vmatpush2.msra.mxu0 0.0
    %2322 = vmatprep.subr.mxu0 0.0
    %2323 = vmatpush2.msra.mxu0 0.0
    %2324 = vmatprep.subr.mxu0 0.0
    %2325 = vmatpush2.msra.mxu0 0.0
    %2326 = vmatprep.subr.mxu0 0.0
    %2327 = vmatpush2.msra.mxu0 0.0
    %2328 = vmatprep.subr.mxu0 0.0
    %2329 = vmatpush2.msra.mxu0 0.0
    %2330 = vmatprep.subr.mxu0 0.0
    %2331 = vmatpush2.msra.mxu0 0.0
    %2332 = vmatprep.subr.mxu0 0.0
    %2333 = vmatpush2.msra.mxu0 0.0
    %2334 = vmatprep.subr.mxu0 0.0
    %2335 = vmatpush2.msra.mxu0 0.0
    %2336 = vmatprep.subr.mxu0 0.0
    %2337 = vmatpush2.msra.mxu0 0.0
    %2338 = vmatprep.mubr.f32.mxu0 0.0
    %2339 = vmatmul.mubr.f32.gmra.mxu0 %v2272
    %v2340 = vpop.f32.mrf.mxu0
    %v2341 = vadd.f32 %v1124, %v2340
    %v2342 = vpop.f32.mrf.mxu0
    %2343 = vdwg.mxu0
    %v2344 = vmax.f32 %v2341, 0.0
    %v2346 = vrot.slane %v2344, 4
    %v2348 = vsel %vm150, 0.0, %v2346
    %v2349 = vsel %vm1000, %v2346, 0.0
    %2351 = vrot.lane.b32.xlu0 %v2349, 8
    %v2352 = vpop.permute.xlu0 %2351
    %v2354 = vsel %vm127, %v2348, %v2352
    %v2356 = vsel %vm263, %v2354, 0
    %2358 = vmatprep.subr.mxu0 0.0
    %2359 = vmatpush1.msra.mxu0 0.0
    %2360 = vmatprep.subr.mxu0 0.0
    %2361 = vmatpush1.msra.mxu0 0.0
    %2362 = vmatprep.subr.mxu0 0.0
    %2363 = vmatpush1.msra.mxu0 0.0
    %2364 = vmatprep.subr.mxu0 0.0
    %2365 = vmatpush1.msra.mxu0 0.0
    %2366 = vmatprep.subr.mxu0 0.0
    %2367 = vmatpush1.msra.mxu0 0.0
    %2368 = vmatprep.subr.mxu0 0.0
    %2369 = vmatpush1.msra.mxu0 0.0
    %2370 = vmatprep.subr.mxu0 0.0
    %2371 = vmatpush1.msra.mxu0 0.0
    %2372 = vmatprep.subr.mxu0 0.0
    %2373 = vmatpush1.msra.mxu0 0.0
    %2374 = vmatprep.subr.mxu0 0.0
    %2375 = vmatpush1.msra.mxu0 0.0
    %2376 = vmatprep.subr.mxu0 0.0
    %2377 = vmatpush1.msra.mxu0 0.0
    %2378 = vmatprep.subr.mxu0 0.0
    %2379 = vmatpush1.msra.mxu0 0.0
    %2380 = vmatprep.subr.mxu0 0.0
    %2381 = vmatpush1.msra.mxu0 0.0
    %2382 = vmatprep.subr.mxu0 0.0
    %2383 = vmatpush1.msra.mxu0 0.0
    %2384 = vmatprep.subr.mxu0 0.0
    %2385 = vmatpush1.msra.mxu0 0.0
    %2386 = vmatprep.subr.mxu0 0.0
    %2387 = vmatpush1.msra.mxu0 %v1211
    %2388 = vmatprep.subr.mxu0 0.0
    %2389 = vmatpush1.msra.mxu0 %v1210
    %2390 = vmatprep.subr.mxu0 0.0
    %2391 = vmatpush2.msra.mxu0 0.0
    %2392 = vmatprep.subr.mxu0 0.0
    %2393 = vmatpush2.msra.mxu0 0.0
    %2394 = vmatprep.subr.mxu0 0.0
    %2395 = vmatpush2.msra.mxu0 0.0
    %2396 = vmatprep.subr.mxu0 0.0
    %2397 = vmatpush2.msra.mxu0 0.0
    %2398 = vmatprep.subr.mxu0 0.0
    %2399 = vmatpush2.msra.mxu0 0.0
    %2400 = vmatprep.subr.mxu0 0.0
    %2401 = vmatpush2.msra.mxu0 0.0
    %2402 = vmatprep.subr.mxu0 0.0
    %2403 = vmatpush2.msra.mxu0 0.0
    %2404 = vmatprep.subr.mxu0 0.0
    %2405 = vmatpush2.msra.mxu0 0.0
    %2406 = vmatprep.subr.mxu0 0.0
    %2407 = vmatpush2.msra.mxu0 0.0
    %2408 = vmatprep.subr.mxu0 0.0
    %2409 = vmatpush2.msra.mxu0 0.0
    %2410 = vmatprep.subr.mxu0 0.0
    %2411 = vmatpush2.msra.mxu0 0.0
    %2412 = vmatprep.subr.mxu0 0.0
    %2413 = vmatpush2.msra.mxu0 0.0
    %2414 = vmatprep.subr.mxu0 0.0
    %2415 = vmatpush2.msra.mxu0 0.0
    %2416 = vmatprep.subr.mxu0 0.0
    %2417 = vmatpush2.msra.mxu0 0.0
    %2418 = vmatprep.subr.mxu0 0.0
    %2419 = vmatpush2.msra.mxu0 0.0
    %2420 = vmatprep.subr.mxu0 0.0
    %2421 = vmatpush2.msra.mxu0 0.0
    %2422 = vmatprep.mubr.f32.mxu0 0.0
    %2423 = vmatmul.mubr.f32.gmra.mxu0 %v2356
    %v2424 = vpop.f32.mrf.mxu0
    %v2425 = vadd.f32 %v1217, %v2424
    %v2426 = vpop.f32.mrf.mxu0
    %2427 = vdwg.mxu0
    %2428 = vrot.lane.b32.xlu0 %v2344, 120
    %v2429 = vpop.permute.xlu0 %2428
    %v2431 = vadd.f32 %v2425, %v2429
    %v2432 = vmax.f32 %v2431, 0.0
    %v2434 = vrot.slane %v2432, 1
    %2435 = vrot.lane.b32.xlu0 %v2434, 8
    %v2436 = vpop.permute.xlu0 %2435
    %v2438 = vrot.slane %v2432, 2
    %2439 = vrot.lane.b32.xlu0 %v2438, 16
    %v2440 = vpop.permute.xlu0 %2439
    %v2442 = vrot.slane %v2432, 3
    %2443 = vrot.lane.b32.xlu0 %v2442, 24
    %v2444 = vpop.permute.xlu0 %2443
    %v2446 = vrot.slane %v2432, 4
    %2447 = vrot.lane.b32.xlu0 %v2446, 32
    %v2448 = vpop.permute.xlu0 %2447
    %v2450 = vrot.slane %v2432, 5
    %2451 = vrot.lane.b32.xlu0 %v2450, 40
    %v2452 = vpop.permute.xlu0 %2451
    %v2454 = vsel %vm127, %v2432, %v2436
    %v2455 = vsel %vm263, %v2454, %v2440
    %v2456 = vsel %vm610, %v2455, %v2444
    %v2457 = vsel %vm1321, %v2456, %v2448
    %v2458 = vsel %vm1323, %v2457, %v2452
    %v2460 = vrot.slane %v2458, 7
    %v2462 = vsel %vm75, %v1324, %v2460
    %v2463 = vld [vmem:[%s19] sm:$0xff]
    %v2464 = vld [vmem:[%s19 + $0x8] sm:$0xff]
    %v2465 = vld [vmem:[%s19 + $0x10] sm:$0xff]
    %v2466 = vld [vmem:[%s19 + $0x18] sm:$0xff]
    %v2467 = vld [vmem:[%s19 + $0x20] sm:$0xff]
    %v2468 = vld [vmem:[%s19 + $0x28] sm:$0xff]
    %v2469 = vld [vmem:[%s20] sm:$0x1]
    %v2471 = vlaneseq
    %v2472 = vshrl.u32 %v2471, 7
    %v2473 = vsub.s32 0, %v2472
    %v2474 = vrot.slane %v2469, %v2473
    %vm2476 = vcmask 392192
    %v2478 = vsel %vm2476, %v2462, 0
    %2480 = vmatprep.subr.mxu0 0.0
    %2481 = vmatpush1.msra.mxu0 0.0
    %2482 = vmatprep.subr.mxu0 0.0
    %2483 = vmatpush1.msra.mxu0 0.0
    %2484 = vmatprep.subr.mxu0 0.0
    %2485 = vmatpush1.msra.mxu0 0.0
    %2486 = vmatprep.subr.mxu0 0.0
    %2487 = vmatpush1.msra.mxu0 0.0
    %2488 = vmatprep.subr.mxu0 0.0
    %2489 = vmatpush1.msra.mxu0 0.0
    %2490 = vmatprep.subr.mxu0 0.0
    %2491 = vmatpush1.msra.mxu0 0.0
    %2492 = vmatprep.subr.mxu0 0.0
    %2493 = vmatpush1.msra.mxu0 0.0
    %2494 = vmatprep.subr.mxu0 0.0
    %2495 = vmatpush1.msra.mxu0 0.0
    %2496 = vmatprep.subr.mxu0 0.0
    %2497 = vmatpush1.msra.mxu0 0.0
    %2498 = vmatprep.subr.mxu0 0.0
    %2499 = vmatpush1.msra.mxu0 0.0
    %2500 = vmatprep.subr.mxu0 0.0
    %2501 = vmatpush1.msra.mxu0 %v2468
    %2502 = vmatprep.subr.mxu0 0.0
    %2503 = vmatpush1.msra.mxu0 %v2467
    %2504 = vmatprep.subr.mxu0 0.0
    %2505 = vmatpush1.msra.mxu0 %v2466
    %2506 = vmatprep.subr.mxu0 0.0
    %2507 = vmatpush1.msra.mxu0 %v2465
    %2508 = vmatprep.subr.mxu0 0.0
    %2509 = vmatpush1.msra.mxu0 %v2464
    %2510 = vmatprep.subr.mxu0 0.0
    %2511 = vmatpush1.msra.mxu0 %v2463
    %2512 = vmatprep.subr.mxu0 0.0
    %2513 = vmatpush2.msra.mxu0 0.0
    %2514 = vmatprep.subr.mxu0 0.0
    %2515 = vmatpush2.msra.mxu0 0.0
    %2516 = vmatprep.subr.mxu0 0.0
    %2517 = vmatpush2.msra.mxu0 0.0
    %2518 = vmatprep.subr.mxu0 0.0
    %2519 = vmatpush2.msra.mxu0 0.0
    %2520 = vmatprep.subr.mxu0 0.0
    %2521 = vmatpush2.msra.mxu0 0.0
    %2522 = vmatprep.subr.mxu0 0.0
    %2523 = vmatpush2.msra.mxu0 0.0
    %2524 = vmatprep.subr.mxu0 0.0
    %2525 = vmatpush2.msra.mxu0 0.0
    %2526 = vmatprep.subr.mxu0 0.0
    %2527 = vmatpush2.msra.mxu0 0.0
    %2528 = vmatprep.subr.mxu0 0.0
    %2529 = vmatpush2.msra.mxu0 0.0
    %2530 = vmatprep.subr.mxu0 0.0
    %2531 = vmatpush2.msra.mxu0 0.0
    %2532 = vmatprep.subr.mxu0 0.0
    %2533 = vmatpush2.msra.mxu0 0.0
    %2534 = vmatprep.subr.mxu0 0.0
    %2535 = vmatpush2.msra.mxu0 0.0
    %2536 = vmatprep.subr.mxu0 0.0
    %2537 = vmatpush2.msra.mxu0 0.0
    %2538 = vmatprep.subr.mxu0 0.0
    %2539 = vmatpush2.msra.mxu0 0.0
    %2540 = vmatprep.subr.mxu0 0.0
    %2541 = vmatpush2.msra.mxu0 0.0
    %2542 = vmatprep.subr.mxu0 0.0
    %2543 = vmatpush2.msra.mxu0 0.0
    %2544 = vmatprep.mubr.f32.mxu0 0.0
    %2545 = vmatmul.mubr.f32.gmra.mxu0 %v2478
    %v2546 = vpop.f32.mrf.mxu0
    %v2547 = vadd.f32 %v2474, %v2546
    %v2548 = vpop.f32.mrf.mxu0
    %2549 = vdwg.mxu0
    %vm2550 = vcmask 91136
    %v2551 = vsel %vm2550, %v2547, -inf
    %2552 = vmax.xlane.f32.xlu0 %v2551
    %v2553 = vpop.xlane.xlu0 %2552
    %v2554 = vsub.f32 %v2547, %v2553
    %v2555 = vmul.f32 %v2554, 1.442695
    %v2556 = vpow.pop %v2555
    %v2557 = vsel %vm2550, %v2556, 0.0
    %2558 = vadd.xlane.f32.xlu0 %v2557
    %v2559 = vpop.xlane.xlu0 %2558
    %v2560 = vlog2.pop %v2559
    %v2561 = vmul.f32 %v2560, 0.6931472
    %v2562 = vadd.f32 %v2553, %v2561
    %v2563 = vsub.f32 %v2547, %v2562
    %2564 = vst.msk [vmem:[#allocation2] sm:$0x3] %vm2550, %v2563
    // Predicated region
    $region86: #{_lambda_.1} parent=1 // pred_check
      _
    $region87: #{_lambda_.1} parent=1 // pred_check_branch
      %2566 = sbr.rel (0) target = $region89
    $region88: #{_lambda_.1} parent=1 // pred_region
      %s2568 = ssub.s32 32, 32
      %2569 = vsyncadd [#allocation3], %s2568
      %s2571 = sshll.u32 [#allocation2], 4
      %s2572 = int_to_ptr.vmem [resolvable:$true] %s2571
      %2574 = dma.vmem_to_hbm [thread:$0]  %s2572, 32, %s21, [#allocation3]
    $region89: #{_lambda_.1} parent=1 // pred_fallthru
      _
    // Predicated region
    $region90: #{_lambda_.1} parent=1 // pred_check
      _
    $region91: #{_lambda_.1} parent=1 // pred_check_branch
      %2576 = sbr.rel (0) target = $region93
    $region92: #{_lambda_.1} parent=1 // pred_region
      %2577 = dma.done [#allocation3], 32
    $region93: #{_lambda_.1} parent=1 // pred_fallthru
      _
    %2578 = vsyncpa [#allocation3], 1

</llo_original>
